<compile_context>
chip_gen: v7x
topology: tpu7x:2x2x1
jax: 0.10.0
libtpu: 0.0.40
codegen_flags: <defaults>
</compile_context>

<pallas_src>
import math
import numpy as np
import jax
import jax.numpy as jnp
from jax import lax
from jax.scipy.linalg import block_diag
from jax.experimental import pallas as pl
from jax.experimental.pallas import tpu as pltpu

SQRT_HALF = 1.0 / math.sqrt(2.0)
PREC = lax.Precision.HIGHEST


def _erf(x):
    # Abramowitz & Stegun 7.1.26 (|err| < 1.5e-7); used identically in kernel and reference.
    # TODO(synk): swap for jax.lax.erf once Mosaic lowering of erf_p is guaranteed.
    a1, a2, a3, a4, a5 = 0.254829592, -0.284496736, 1.421413741, -1.453152027, 1.061405429
    p = 0.3275911
    sgn = jnp.where(x >= 0.0, 1.0, -1.0)
    ax = jnp.abs(x)
    t = 1.0 / (1.0 + p * ax)
    poly = ((((a5 * t + a4) * t + a3) * t + a2) * t + a1) * t
    return sgn * (1.0 - poly * jnp.exp(-ax * ax))


def _gelu_exact(x):
    # nn.GELU() default (erf form): 0.5 * x * (1 + erf(x / sqrt(2)))
    return 0.5 * x * (1.0 + _erf(x * SQRT_HALF))


def _step_vmem_bytes(bt, S, C_in, C_out):
    """Rough f32 per-grid-step VMEM footprint (double-buffered I/O slabs + weights +
    intermediates + one head's score/prob tiles)."""
    rows = bt * S
    slabs = 2 * 2 * rows * max(C_in, C_out)                       # in/out, double buffered
    weights = 2 * (3 * C_in * C_out + 9 * C_out * C_out + C_out * C_out + 8 * C_out)
    inter = rows * (3 * C_out + 3 * C_out + 2 * C_out)            # h, qkv, att/y
    scores = 2 * bt * S * S                                       # scores + probs (one head)
    return 4 * (slabs + weights + inter + scores)


def _pick_batch_tile(B, S, C_in, C_out, budget_bytes=24 << 20, target_rows=512):
    """Largest divisor of B whose row slab keeps (8,128)-legal blocks, fits a v7x-safe
    VMEM budget, leaves >=2 grid steps when B allows (v7x: 2 TensorCores/chip), with
    rows near `target_rows` to amortize the ~0.35us/step serial-grid overhead."""
    divisors = [d for d in range(1, B + 1) if B % d == 0]

    def legal(d):
        rows = d * S
        return ((rows % 8 == 0 or rows == B * S)
                and _step_vmem_bytes(d, S, C_in, C_out) <= budget_bytes)

    cands = [d for d in divisors if legal(d) and (B < 2 or B // d >= 2)]
    small = [d for d in cands if d * S <= target_rows]
    if small:
        return max(small)
    if cands:
        return min(cands)
    # TODO(synk): pad S to a multiple of 8 instead of collapsing to a single grid step.
    return B


def _make_kernel(num_heads, head_dim, batch_tile, seq_len, lipschitz_num, fuse_l2,
                 ln_eps=1e-5):
    scale = 1.0 / math.sqrt(head_dim)
    c_out = num_heads * head_dim
    rows = batch_tile * seq_len

    def kernel(x_ref, w1_ref, b1_ref, w2_ref, b2_ref,
               wo_ref, bo_ref, g_ref, beta_ref, o_ref):
        x = x_ref[...]                                        # (rows, C_in)

        # --- fused layer-1 QKV: (rows, C_in) @ (C_in, 3*C_out), single GELU pass ---
        h = jnp.dot(x, w1_ref[...], preferred_element_type=jnp.float32,
                    precision=PREC) + b1_ref[...]
        h = _gelu_exact(h)

        # --- layer-2: one block-diagonal dot (3C x 3C) when small, split otherwise ---
        if fuse_l2:
            qkv = jnp.dot(h, w2_ref[...], preferred_element_type=jnp.float32,
                          precision=PREC) + b2_ref[...]       # (rows, 3*C_out)
        else:
            parts = []
            for i in range(3):
                hi = h[:, i * c_out:(i + 1) * c_out]
                parts.append(jnp.dot(hi, w2_ref[i], preferred_element_type=jnp.float32,
                                     precision=PREC) + b2_ref[i])
            qkv = jnp.concatenate(parts, axis=-1)

        qkv = qkv.reshape(batch_tile, seq_len, 3 * c_out)     # leading-dim split (free)

        # --- attention: batched over batch_tile via dot_general, loop only over heads;
        #     per-head outputs stay in registers and are concatenated along channels ---
        head_outs = []
        for hh in range(num_heads):
            qh = qkv[:, :, hh * head_dim:(hh + 1) * head_dim]
            kh = qkv[:, :, c_out + hh * head_dim:c_out + (hh + 1) * head_dim]
            vh = qkv[:, :, 2 * c_out + hh * head_dim:2 * c_out + (hh + 1) * head_dim]
            # q @ k^T: contract last dims, batch over batch_tile.
            s = lax.dot_general(qh, kh, (((2,), (2,)), ((0,), (0,))),
                                preferred_element_type=jnp.float32,
                                precision=PREC) * scale        # (Bt, S, S)
            # Lipschitz normalization (reference's exact eps placement).
            nrm = jnp.sqrt(jnp.sum(s * s, axis=-1, keepdims=True))
            s = s / (nrm * lipschitz_num + 1e-12)
            # softmax over keys (exact divide; approx reciprocal removed for accuracy).
            s = s - jnp.max(s, axis=-1, keepdims=True)
            p = jnp.exp(s)
            p = p / jnp.sum(p, axis=-1, keepdims=True)
            head_outs.append(lax.dot_general(p, vh, (((2,), (1,)), ((0,), (0,))),
                                             preferred_element_type=jnp.float32,
                                             precision=PREC))  # (Bt, S, head_dim)
        att = jnp.concatenate(head_outs, axis=-1).reshape(rows, c_out)

        # --- single full-width output projection: (rows, C_out) @ (C_out, C_out) ---
        y = jnp.dot(att, wo_ref[...], preferred_element_type=jnp.float32,
                    precision=PREC) + bo_ref[...]

        # --- LayerNorm over channels (eps=1e-5, biased variance, affine) ---
        mean = jnp.mean(y, axis=-1, keepdims=True)
        var = jnp.mean((y - mean) ** 2, axis=-1, keepdims=True)
        yn = (y - mean) / jnp.sqrt(var + ln_eps) * g_ref[...] + beta_ref[...]

        # --- ELU(alpha=1) (exp arg clamped); dropout(p=0.0)=identity; residual add ---
        e = jnp.where(yn > 0.0, yn, jnp.exp(jnp.minimum(yn, 0.0)) - 1.0)
        # TODO(synk): for C_out < 128 and store-bound shapes, fold rows into lanes for a
        # lane-dense output slab (skipped: needs an in-kernel relayout).
        o_ref[...] = e + x

    return kernel


def dilated_attention_block_attention(x_in, params, *, num_heads, lipschitz_num=1.0,
                                      batch_tile=None):
    """x_in: (B, C_in, S).  Returns (B, C_out, S); requires C_out == C_in
    (the module's LayerNorm(in_channels) + residual only type-check when they match)."""
    B, C_in, S = x_in.shape
    w1, b1, w2, b2, wo, bo, gamma, beta = params
    C_out = wo.shape[-1]
    head_dim = C_out // num_heads
    assert head_dim * num_heads == C_out, "out_channels must be divisible by num_heads"
    assert C_in == C_out, "module requires in_channels == out_channels"

    # Fuse the three layer-1 weights: (3, C_in, C_out) -> (C_in, 3*C_out).
    w1f = jnp.transpose(w1, (1, 0, 2)).reshape(C_in, 3 * C_out).astype(jnp.float32)
    b1f = b1.reshape(1, 3 * C_out).astype(jnp.float32)

    # Layer-2: block-diagonal fusion when one MXU pass can cover all three projections.
    fuse_l2 = (3 * C_out) <= 256
    if fuse_l2:
        w2_eff = block_diag(w2[0], w2[1], w2[2]).astype(jnp.float32)   # (3C, 3C)
        b2_eff = b2.reshape(1, 3 * C_out).astype(jnp.float32)
    else:
        w2_eff = w2.astype(jnp.float32)                                # (3, C, C)
        b2_eff = b2.reshape(3, 1, C_out).astype(jnp.float32)

    if batch_tile is None:
        batch_tile = _pick_batch_tile(B, S, C_in, C_out)
    assert B % batch_tile == 0
    rows = batch_tile * S
    grid = (B // batch_tile,)

    # (B, C, S) -> (B, S, C) -> (B*S, C): the kernel sees a flat row slab.
    x = jnp.transpose(x_in, (0, 2, 1)).astype(jnp.float32).reshape(B * S, C_in)

    kernel = _make_kernel(num_heads, head_dim, batch_tile, S, lipschitz_num, fuse_l2)

    def full(shape):
        n = len(shape)
        return pl.BlockSpec(shape, lambda i, _n=n: (0,) * _n)
    # TODO(synk): single-buffer the constant-index weight specs (pipeline_mode=
    # pl.Buffered(1)) once validated; the VMEM saving is negligible at C=32.

    est = _step_vmem_bytes(batch_tile, S, C_in, C_out)
    vmem_limit = int(min(56 << 20, max(32 << 20, 2 * est)))   # stays under v7x's 64 MiB

    out = pl.pallas_call(
        kernel,
        out_shape=jax.ShapeDtypeStruct((B * S, C_out), jnp.float32),
        grid=grid,
        in_specs=[
            pl.BlockSpec((rows, C_in), lambda i: (i, 0)),     # x row-slab per step
            full(w1f.shape), full(b1f.shape),                 # fused qkv layer-1
            full(w2_eff.shape), full(b2_eff.shape),           # (block-diag) qkv layer-2
            full(wo.shape), full(bo.shape),                   # out_linear
            full(gamma.shape), full(beta.shape),              # layernorm affine
        ],
        out_specs=pl.BlockSpec((rows, C_out), lambda i: (i, 0)),
        compiler_params=pltpu.CompilerParams(
            dimension_semantics=("parallel",),
            vmem_limit_bytes=vmem_limit),
        # TODO(synk): for large S, add a query-tile grid axis (flash-style online softmax);
        # the (S,S) score tile hits v7x's 64 MiB VMEM twice as early as v5e/v6e.
    )(x, w1f, b1f, w2_eff, b2_eff, wo, bo, gamma, beta)

    return jnp.transpose(out.reshape(B, S, C_out), (0, 2, 1))  # (B, C_out, S)


def init_params(key, in_channels, out_channels):
    """Deterministic init mimicking PyTorch nn.Linear (uniform +/- 1/sqrt(fan_in))."""
    ks = jax.random.split(key, 7)

    def lin(k, fan_in, fan_out):
        bound = 1.0 / math.sqrt(fan_in)
        kw, kb = jax.random.split(k)
        w = jax.random.uniform(kw, (fan_in, fan_out), jnp.float32, -bound, bound)
        b = jax.random.uniform(kb, (1, fan_out), jnp.float32, -bound, bound)
        return w, b

    w1s, b1s, w2s, b2s = [], [], [], []
    for i in range(3):  # q, k, v
        w, b = lin(ks[i], in_channels, out_channels)
        w1s.append(w); b1s.append(b)
        w, b = lin(ks[3 + i], out_channels, out_channels)
        w2s.append(w); b2s.append(b)
    w1, b1 = jnp.stack(w1s), jnp.stack(b1s)   # (3, C_in, C_out), (3, 1, C_out)
    w2, b2 = jnp.stack(w2s), jnp.stack(b2s)   # (3, C_out, C_out), (3, 1, C_out)
    wo, bo = lin(ks[6], out_channels, out_channels)
    gamma = jnp.ones((1, in_channels), jnp.float32)
    beta = jnp.zeros((1, in_channels), jnp.float32)
    return (w1, b1, w2, b2, wo, bo, gamma, beta)


def reference(x_in, params, num_heads, lipschitz_num=1.0):
    """Pure-JAX reference of the PyTorch forward (exact formulas, plain XLA ops,
    precision pinned to HIGHEST so f32 matmul paths match the kernel)."""
    w1, b1, w2, b2, wo, bo, gamma, beta = params
    B, C, S = x_in.shape
    hd = wo.shape[0] // num_heads
    x = jnp.transpose(x_in, (0, 2, 1)).astype(jnp.float32)

    def mlp(i):
        h = _gelu_exact(jnp.dot(x, w1[i], precision=PREC) + b1[i])
        return jnp.dot(h, w2[i], precision=PREC) + b2[i]

    def heads(t):
        return t.reshape(B, S, num_heads, hd).transpose(0, 2, 1, 3)

    qh, kh, vh = heads(mlp(0)), heads(mlp(1)), heads(mlp(2))
    s = jnp.einsum("bhqd,bhkd->bhqk", qh, kh, precision=PREC) / math.sqrt(hd)
    nrm = jnp.sqrt(jnp.sum(s * s, axis=-1, keepdims=True))
    s = s / (nrm * lipschitz_num + 1e-12)
    p = jax.nn.softmax(s, axis=-1)
    o = jnp.einsum("bhqk,bhkd->bhqd", p, vh,
                   precision=PREC).transpose(0, 2, 1, 3).reshape(B, S, -1)
    y = jnp.dot(o, wo, precision=PREC) + bo
    mean = jnp.mean(y, axis=-1, keepdims=True)
    var = jnp.mean((y - mean) ** 2, axis=-1, keepdims=True)
    yn = (y - mean) / jnp.sqrt(var + 1e-5) * gamma + beta
    e = jnp.where(yn > 0.0, yn, jnp.exp(yn) - 1.0)
    return jnp.transpose(e + x, (0, 2, 1))


if __name__ == "__main__":
    B, C, S = 2, 32, 16         # in_channels == out_channels (required by norm_time + residual)
    NUM_HEADS = 2

    key = jax.random.PRNGKey(0)
    kx, kp = jax.random.split(key)
    x_in = jax.random.normal(kx, (B, C, S), jnp.float32)
    params = init_params(kp, C, C)

    out = dilated_attention_block_attention(x_in, params, num_heads=NUM_HEADS)
    out = jax.block_until_ready(out)

    ref = reference(x_in, params, NUM_HEADS)
    # Kernel and reference now share formulas, eps placement and matmul precision;
    # remaining differences are reduction-order-level f32 noise.
    np.testing.assert_allclose(np.asarray(out), np.asarray(ref), rtol=3e-3, atol=3e-3)
    print("KERNEL_OK")
</pallas_src>

<mosaic_0001>
module attributes {stable_mosaic.version = 11 : i64} {
  func.func @kernel(%arg0: i32, %arg1: memref<16x32xf32, #tpu.memory_space<vmem>>, %arg2: memref<32x96xf32, #tpu.memory_space<vmem>>, %arg3: memref<1x96xf32, #tpu.memory_space<vmem>>, %arg4: memref<96x96xf32, #tpu.memory_space<vmem>>, %arg5: memref<1x96xf32, #tpu.memory_space<vmem>>, %arg6: memref<32x32xf32, #tpu.memory_space<vmem>>, %arg7: memref<1x32xf32, #tpu.memory_space<vmem>>, %arg8: memref<1x32xf32, #tpu.memory_space<vmem>>, %arg9: memref<1x32xf32, #tpu.memory_space<vmem>>, %arg10: memref<16x32xf32, #tpu.memory_space<vmem>>) attributes {dimension_semantics = [#tpu.dimension_semantics<parallel>], iteration_bounds = array<i64: 2>, scalar_prefetch = 0 : i64, scratch_operands = 0 : i64, tpu.core_type = #tpu.core_type<tc>, window_params = [{transform_indices = @transform_0, window_bounds = array<i64: 16, 32>}, {pipeline_mode = #tpu.pipeline_mode<synchronous>, transform_indices = @transform_1, window_bounds = array<i64: 32, 96>}, {pipeline_mode = #tpu.pipeline_mode<synchronous>, transform_indices = @transform_2, window_bounds = array<i64: 1, 96>}, {pipeline_mode = #tpu.pipeline_mode<synchronous>, transform_indices = @transform_3, window_bounds = array<i64: 96, 96>}, {pipeline_mode = #tpu.pipeline_mode<synchronous>, transform_indices = @transform_4, window_bounds = array<i64: 1, 96>}, {pipeline_mode = #tpu.pipeline_mode<synchronous>, transform_indices = @transform_5, window_bounds = array<i64: 32, 32>}, {pipeline_mode = #tpu.pipeline_mode<synchronous>, transform_indices = @transform_6, window_bounds = array<i64: 1, 32>}, {pipeline_mode = #tpu.pipeline_mode<synchronous>, transform_indices = @transform_7, window_bounds = array<i64: 1, 32>}, {pipeline_mode = #tpu.pipeline_mode<synchronous>, transform_indices = @transform_8, window_bounds = array<i64: 1, 32>}, {transform_indices = @transform_9, window_bounds = array<i64: 16, 32>}]} {
    %c0 = arith.constant 0 : index
    %c0_0 = arith.constant 0 : index
    %0 = vector.load %arg1[%c0, %c0_0] : memref<16x32xf32, #tpu.memory_space<vmem>>, vector<16x32xf32>
    %c0_1 = arith.constant 0 : index
    %c0_2 = arith.constant 0 : index
    %1 = vector.load %arg2[%c0_1, %c0_2] : memref<32x96xf32, #tpu.memory_space<vmem>>, vector<32x96xf32>
    %cst = arith.constant dense<0.000000e+00> : vector<16x96xf32>
    %2 = tpu.matmul %0, %1, %cst {dimension_numbers = #tpu.dot_dimension_numbers<[1], [0], [0], [1], [0, 0, 1, 1], [], []>, precision = #tpu.contract_precision<fp32>} : vector<16x32xf32>, vector<32x96xf32>, vector<16x96xf32> -> vector<16x96xf32>
    %c0_3 = arith.constant 0 : index
    %c0_4 = arith.constant 0 : index
    %3 = vector.load %arg3[%c0_3, %c0_4] : memref<1x96xf32, #tpu.memory_space<vmem>>, vector<1x96xf32>
    %4 = vector.broadcast %3 : vector<1x96xf32> to vector<16x96xf32>
    %5 = arith.addf %2, %4 : vector<16x96xf32>
    %cst_5 = arith.constant 5.000000e-01 : f32
    %6 = vector.broadcast %cst_5 : f32 to vector<16x96xf32>
    %7 = arith.mulf %6, %5 : vector<16x96xf32>
    %cst_6 = arith.constant 0.707106769 : f32
    %8 = vector.broadcast %cst_6 : f32 to vector<16x96xf32>
    %9 = arith.mulf %5, %8 : vector<16x96xf32>
    %cst_7 = arith.constant 0.000000e+00 : f32
    %10 = vector.broadcast %cst_7 : f32 to vector<16x96xf32>
    %11 = arith.cmpf oge, %9, %10 : vector<16x96xf32>
    %cst_8 = arith.constant 1.000000e+00 : f32
    %cst_9 = arith.constant -1.000000e+00 : f32
    %12 = vector.broadcast %cst_8 : f32 to vector<16x96xf32>
    %13 = vector.broadcast %cst_9 : f32 to vector<16x96xf32>
    %14 = arith.select %11, %12, %13 : vector<16x96xi1>, vector<16x96xf32>
    %15 = math.absf %9 : vector<16x96xf32>
    %cst_10 = arith.constant 0.327591091 : f32
    %16 = vector.broadcast %cst_10 : f32 to vector<16x96xf32>
    %17 = arith.mulf %16, %15 : vector<16x96xf32>
    %cst_11 = arith.constant 1.000000e+00 : f32
    %18 = vector.broadcast %cst_11 : f32 to vector<16x96xf32>
    %19 = arith.addf %18, %17 : vector<16x96xf32>
    %cst_12 = arith.constant 1.000000e+00 : f32
    %20 = vector.broadcast %cst_12 : f32 to vector<16x96xf32>
    %21 = arith.divf %20, %19 : vector<16x96xf32>
    %cst_13 = arith.constant 1.06140542 : f32
    %22 = vector.broadcast %cst_13 : f32 to vector<16x96xf32>
    %23 = arith.mulf %22, %21 : vector<16x96xf32>
    %cst_14 = arith.constant -1.45315206 : f32
    %24 = vector.broadcast %cst_14 : f32 to vector<16x96xf32>
    %25 = arith.addf %23, %24 : vector<16x96xf32>
    %26 = arith.mulf %25, %21 : vector<16x96xf32>
    %cst_15 = arith.constant 1.42141378 : f32
    %27 = vector.broadcast %cst_15 : f32 to vector<16x96xf32>
    %28 = arith.addf %26, %27 : vector<16x96xf32>
    %29 = arith.mulf %28, %21 : vector<16x96xf32>
    %cst_16 = arith.constant -0.284496725 : f32
    %30 = vector.broadcast %cst_16 : f32 to vector<16x96xf32>
    %31 = arith.addf %29, %30 : vector<16x96xf32>
    %32 = arith.mulf %31, %21 : vector<16x96xf32>
    %cst_17 = arith.constant 0.254829586 : f32
    %33 = vector.broadcast %cst_17 : f32 to vector<16x96xf32>
    %34 = arith.addf %32, %33 : vector<16x96xf32>
    %35 = arith.mulf %34, %21 : vector<16x96xf32>
    %cst_18 = arith.constant 0.000000e+00 : f32
    %36 = vector.broadcast %cst_18 : f32 to vector<16x96xf32>
    %37 = arith.subf %36, %15 : vector<16x96xf32>
    %38 = arith.mulf %37, %15 : vector<16x96xf32>
    %39 = math.exp %38 : vector<16x96xf32>
    %40 = arith.mulf %35, %39 : vector<16x96xf32>
    %cst_19 = arith.constant 1.000000e+00 : f32
    %41 = vector.broadcast %cst_19 : f32 to vector<16x96xf32>
    %42 = arith.subf %41, %40 : vector<16x96xf32>
    %43 = arith.mulf %14, %42 : vector<16x96xf32>
    %cst_20 = arith.constant 1.000000e+00 : f32
    %44 = vector.broadcast %cst_20 : f32 to vector<16x96xf32>
    %45 = arith.addf %44, %43 : vector<16x96xf32>
    %46 = arith.mulf %7, %45 : vector<16x96xf32>
    %c0_21 = arith.constant 0 : index
    %c0_22 = arith.constant 0 : index
    %47 = vector.load %arg4[%c0_21, %c0_22] : memref<96x96xf32, #tpu.memory_space<vmem>>, vector<96x96xf32>
    %cst_23 = arith.constant dense<0.000000e+00> : vector<16x96xf32>
    %48 = tpu.matmul %46, %47, %cst_23 {dimension_numbers = #tpu.dot_dimension_numbers<[1], [0], [0], [1], [0, 0, 1, 1], [], []>, precision = #tpu.contract_precision<fp32>} : vector<16x96xf32>, vector<96x96xf32>, vector<16x96xf32> -> vector<16x96xf32>
    %c0_24 = arith.constant 0 : index
    %c0_25 = arith.constant 0 : index
    %49 = vector.load %arg5[%c0_24, %c0_25] : memref<1x96xf32, #tpu.memory_space<vmem>>, vector<1x96xf32>
    %50 = vector.broadcast %49 : vector<1x96xf32> to vector<16x96xf32>
    %51 = arith.addf %48, %50 : vector<16x96xf32>
    %52 = vector.shape_cast %51 : vector<16x96xf32> to vector<1x16x96xf32>
    %53 = vector.extract_strided_slice %52 {offsets = [0, 0, 0], sizes = [1, 16, 16], strides = [1, 1, 1]} : vector<1x16x96xf32> to vector<1x16x16xf32>
    %54 = vector.extract_strided_slice %52 {offsets = [0, 0, 32], sizes = [1, 16, 16], strides = [1, 1, 1]} : vector<1x16x96xf32> to vector<1x16x16xf32>
    %55 = vector.extract_strided_slice %52 {offsets = [0, 0, 64], sizes = [1, 16, 16], strides = [1, 1, 1]} : vector<1x16x96xf32> to vector<1x16x16xf32>
    %cst_26 = arith.constant dense<0.000000e+00> : vector<1x16x16xf32>
    %56 = tpu.matmul %53, %54, %cst_26 {dimension_numbers = #tpu.dot_dimension_numbers<[2], [2], [1], [1], [0, 0, 0, 1, 1, 1], [0], [0]>, precision = #tpu.contract_precision<fp32>} : vector<1x16x16xf32>, vector<1x16x16xf32>, vector<1x16x16xf32> -> vector<1x16x16xf32>
    %cst_27 = arith.constant 2.500000e-01 : f32
    %57 = vector.broadcast %cst_27 : f32 to vector<1x16x16xf32>
    %58 = arith.mulf %56, %57 : vector<1x16x16xf32>
    %59 = arith.mulf %58, %58 : vector<1x16x16xf32>
    %cst_28 = arith.constant dense<0.000000e+00> : vector<1x16xf32>
    %60 = vector.multi_reduction <add>, %59, %cst_28 [2] : vector<1x16x16xf32> to vector<1x16xf32>
    %61 = vector.shape_cast %60 : vector<1x16xf32> to vector<1x16x1xf32>
    %62 = math.sqrt %61 : vector<1x16x1xf32>
    %cst_29 = arith.constant 1.000000e+00 : f32
    %63 = vector.broadcast %cst_29 : f32 to vector<1x16x1xf32>
    %64 = arith.mulf %62, %63 : vector<1x16x1xf32>
    %cst_30 = arith.constant 9.99999996E-13 : f32
    %65 = vector.broadcast %cst_30 : f32 to vector<1x16x1xf32>
    %66 = arith.addf %64, %65 : vector<1x16x1xf32>
    %67 = vector.broadcast %66 : vector<1x16x1xf32> to vector<1x16x16xf32>
    %68 = arith.divf %58, %67 : vector<1x16x16xf32>
    %cst_31 = arith.constant dense<0xFF800000> : vector<1x16xf32>
    %69 = vector.multi_reduction <maximumf>, %68, %cst_31 [2] : vector<1x16x16xf32> to vector<1x16xf32>
    %70 = vector.shape_cast %69 : vector<1x16xf32> to vector<1x16x1xf32>
    %71 = vector.broadcast %70 : vector<1x16x1xf32> to vector<1x16x16xf32>
    %72 = arith.subf %68, %71 : vector<1x16x16xf32>
    %73 = math.exp %72 : vector<1x16x16xf32>
    %cst_32 = arith.constant dense<0.000000e+00> : vector<1x16xf32>
    %74 = vector.multi_reduction <add>, %73, %cst_32 [2] : vector<1x16x16xf32> to vector<1x16xf32>
    %75 = vector.shape_cast %74 : vector<1x16xf32> to vector<1x16x1xf32>
    %76 = vector.broadcast %75 : vector<1x16x1xf32> to vector<1x16x16xf32>
    %77 = arith.divf %73, %76 : vector<1x16x16xf32>
    %cst_33 = arith.constant dense<0.000000e+00> : vector<1x16x16xf32>
    %78 = tpu.matmul %77, %55, %cst_33 {dimension_numbers = #tpu.dot_dimension_numbers<[2], [1], [1], [2], [0, 0, 0, 1, 1, 2], [0], [0]>, precision = #tpu.contract_precision<fp32>} : vector<1x16x16xf32>, vector<1x16x16xf32>, vector<1x16x16xf32> -> vector<1x16x16xf32>
    %79 = vector.extract_strided_slice %52 {offsets = [0, 0, 16], sizes = [1, 16, 16], strides = [1, 1, 1]} : vector<1x16x96xf32> to vector<1x16x16xf32>
    %80 = vector.extract_strided_slice %52 {offsets = [0, 0, 48], sizes = [1, 16, 16], strides = [1, 1, 1]} : vector<1x16x96xf32> to vector<1x16x16xf32>
    %81 = vector.extract_strided_slice %52 {offsets = [0, 0, 80], sizes = [1, 16, 16], strides = [1, 1, 1]} : vector<1x16x96xf32> to vector<1x16x16xf32>
    %cst_34 = arith.constant dense<0.000000e+00> : vector<1x16x16xf32>
    %82 = tpu.matmul %79, %80, %cst_34 {dimension_numbers = #tpu.dot_dimension_numbers<[2], [2], [1], [1], [0, 0, 0, 1, 1, 1], [0], [0]>, precision = #tpu.contract_precision<fp32>} : vector<1x16x16xf32>, vector<1x16x16xf32>, vector<1x16x16xf32> -> vector<1x16x16xf32>
    %cst_35 = arith.constant 2.500000e-01 : f32
    %83 = vector.broadcast %cst_35 : f32 to vector<1x16x16xf32>
    %84 = arith.mulf %82, %83 : vector<1x16x16xf32>
    %85 = arith.mulf %84, %84 : vector<1x16x16xf32>
    %cst_36 = arith.constant dense<0.000000e+00> : vector<1x16xf32>
    %86 = vector.multi_reduction <add>, %85, %cst_36 [2] : vector<1x16x16xf32> to vector<1x16xf32>
    %87 = vector.shape_cast %86 : vector<1x16xf32> to vector<1x16x1xf32>
    %88 = math.sqrt %87 : vector<1x16x1xf32>
    %cst_37 = arith.constant 1.000000e+00 : f32
    %89 = vector.broadcast %cst_37 : f32 to vector<1x16x1xf32>
    %90 = arith.mulf %88, %89 : vector<1x16x1xf32>
    %cst_38 = arith.constant 9.99999996E-13 : f32
    %91 = vector.broadcast %cst_38 : f32 to vector<1x16x1xf32>
    %92 = arith.addf %90, %91 : vector<1x16x1xf32>
    %93 = vector.broadcast %92 : vector<1x16x1xf32> to vector<1x16x16xf32>
    %94 = arith.divf %84, %93 : vector<1x16x16xf32>
    %cst_39 = arith.constant dense<0xFF800000> : vector<1x16xf32>
    %95 = vector.multi_reduction <maximumf>, %94, %cst_39 [2] : vector<1x16x16xf32> to vector<1x16xf32>
    %96 = vector.shape_cast %95 : vector<1x16xf32> to vector<1x16x1xf32>
    %97 = vector.broadcast %96 : vector<1x16x1xf32> to vector<1x16x16xf32>
    %98 = arith.subf %94, %97 : vector<1x16x16xf32>
    %99 = math.exp %98 : vector<1x16x16xf32>
    %cst_40 = arith.constant dense<0.000000e+00> : vector<1x16xf32>
    %100 = vector.multi_reduction <add>, %99, %cst_40 [2] : vector<1x16x16xf32> to vector<1x16xf32>
    %101 = vector.shape_cast %100 : vector<1x16xf32> to vector<1x16x1xf32>
    %102 = vector.broadcast %101 : vector<1x16x1xf32> to vector<1x16x16xf32>
    %103 = arith.divf %99, %102 : vector<1x16x16xf32>
    %cst_41 = arith.constant dense<0.000000e+00> : vector<1x16x16xf32>
    %104 = tpu.matmul %103, %81, %cst_41 {dimension_numbers = #tpu.dot_dimension_numbers<[2], [1], [1], [2], [0, 0, 0, 1, 1, 2], [0], [0]>, precision = #tpu.contract_precision<fp32>} : vector<1x16x16xf32>, vector<1x16x16xf32>, vector<1x16x16xf32> -> vector<1x16x16xf32>
    %105 = tpu.concatenate %78, %104 in 2 : vector<1x16x16xf32>, vector<1x16x16xf32> -> vector<1x16x32xf32>
    %106 = vector.shape_cast %105 : vector<1x16x32xf32> to vector<16x32xf32>
    %c0_42 = arith.constant 0 : index
    %c0_43 = arith.constant 0 : index
    %107 = vector.load %arg6[%c0_42, %c0_43] : memref<32x32xf32, #tpu.memory_space<vmem>>, vector<32x32xf32>
    %cst_44 = arith.constant dense<0.000000e+00> : vector<16x32xf32>
    %108 = tpu.matmul %106, %107, %cst_44 {dimension_numbers = #tpu.dot_dimension_numbers<[1], [0], [0], [1], [0, 0, 1, 1], [], []>, precision = #tpu.contract_precision<fp32>} : vector<16x32xf32>, vector<32x32xf32>, vector<16x32xf32> -> vector<16x32xf32>
    %c0_45 = arith.constant 0 : index
    %c0_46 = arith.constant 0 : index
    %109 = vector.load %arg7[%c0_45, %c0_46] : memref<1x32xf32, #tpu.memory_space<vmem>>, vector<1x32xf32>
    %110 = vector.broadcast %109 : vector<1x32xf32> to vector<16x32xf32>
    %111 = arith.addf %108, %110 : vector<16x32xf32>
    %cst_47 = arith.constant dense<0.000000e+00> : vector<16xf32>
    %112 = vector.multi_reduction <add>, %111, %cst_47 [1] : vector<16x32xf32> to vector<16xf32>
    %113 = vector.shape_cast %112 : vector<16xf32> to vector<16x1xf32>
    %cst_48 = arith.constant 3.200000e+01 : f32
    %114 = vector.broadcast %cst_48 : f32 to vector<16x1xf32>
    %115 = arith.divf %113, %114 : vector<16x1xf32>
    %116 = vector.broadcast %115 : vector<16x1xf32> to vector<16x32xf32>
    %117 = arith.subf %111, %116 : vector<16x32xf32>
    %118 = arith.mulf %117, %117 : vector<16x32xf32>
    %cst_49 = arith.constant dense<0.000000e+00> : vector<16xf32>
    %119 = vector.multi_reduction <add>, %118, %cst_49 [1] : vector<16x32xf32> to vector<16xf32>
    %120 = vector.shape_cast %119 : vector<16xf32> to vector<16x1xf32>
    %cst_50 = arith.constant 3.200000e+01 : f32
    %121 = vector.broadcast %cst_50 : f32 to vector<16x1xf32>
    %122 = arith.divf %120, %121 : vector<16x1xf32>
    %123 = vector.broadcast %115 : vector<16x1xf32> to vector<16x32xf32>
    %124 = arith.subf %111, %123 : vector<16x32xf32>
    %cst_51 = arith.constant 9.99999974E-6 : f32
    %125 = vector.broadcast %cst_51 : f32 to vector<16x1xf32>
    %126 = arith.addf %122, %125 : vector<16x1xf32>
    %127 = math.sqrt %126 : vector<16x1xf32>
    %128 = vector.broadcast %127 : vector<16x1xf32> to vector<16x32xf32>
    %129 = arith.divf %124, %128 : vector<16x32xf32>
    %c0_52 = arith.constant 0 : index
    %c0_53 = arith.constant 0 : index
    %130 = vector.load %arg8[%c0_52, %c0_53] : memref<1x32xf32, #tpu.memory_space<vmem>>, vector<1x32xf32>
    %131 = vector.broadcast %130 : vector<1x32xf32> to vector<16x32xf32>
    %132 = arith.mulf %129, %131 : vector<16x32xf32>
    %c0_54 = arith.constant 0 : index
    %c0_55 = arith.constant 0 : index
    %133 = vector.load %arg9[%c0_54, %c0_55] : memref<1x32xf32, #tpu.memory_space<vmem>>, vector<1x32xf32>
    %134 = vector.broadcast %133 : vector<1x32xf32> to vector<16x32xf32>
    %135 = arith.addf %132, %134 : vector<16x32xf32>
    %cst_56 = arith.constant 0.000000e+00 : f32
    %136 = vector.broadcast %cst_56 : f32 to vector<16x32xf32>
    %137 = arith.cmpf ogt, %135, %136 : vector<16x32xf32>
    %cst_57 = arith.constant 0.000000e+00 : f32
    %138 = vector.broadcast %cst_57 : f32 to vector<16x32xf32>
    %139 = arith.minimumf %135, %138 : vector<16x32xf32>
    %140 = math.exp %139 : vector<16x32xf32>
    %cst_58 = arith.constant 1.000000e+00 : f32
    %141 = vector.broadcast %cst_58 : f32 to vector<16x32xf32>
    %142 = arith.subf %140, %141 : vector<16x32xf32>
    %143 = arith.select %137, %135, %142 : vector<16x32xi1>, vector<16x32xf32>
    %144 = arith.addf %143, %0 : vector<16x32xf32>
    %c0_59 = arith.constant 0 : index
    %c0_60 = arith.constant 0 : index
    %145 = vector.load %arg10[%c0_59, %c0_60] : memref<16x32xf32, #tpu.memory_space<vmem>>, vector<16x32xf32>
    tpu.vector_store %arg10[%c0_59, %c0_60], %144 {strides = array<i32>} : memref<16x32xf32, #tpu.memory_space<vmem>>, vector<16x32xf32>,
    return
  }
  func.func @transform_0(%arg0: i32) -> (i32, i32) {
    %c0_i32 = arith.constant 0 : i32
    %c0_i32_0 = arith.constant 0 : i32
    return %arg0, %c0_i32 : i32, i32
  }
  func.func @transform_1(%arg0: i32) -> (i32, i32) {
    %c0_i32 = arith.constant 0 : i32
    %c0_i32_0 = arith.constant 0 : i32
    %c0_i32_1 = arith.constant 0 : i32
    return %c0_i32, %c0_i32_0 : i32, i32
  }
  func.func @transform_2(%arg0: i32) -> (i32, i32) {
    %c0_i32 = arith.constant 0 : i32
    %c0_i32_0 = arith.constant 0 : i32
    %c0_i32_1 = arith.constant 0 : i32
    return %c0_i32, %c0_i32_0 : i32, i32
  }
  func.func @transform_3(%arg0: i32) -> (i32, i32) {
    %c0_i32 = arith.constant 0 : i32
    %c0_i32_0 = arith.constant 0 : i32
    %c0_i32_1 = arith.constant 0 : i32
    return %c0_i32, %c0_i32_0 : i32, i32
  }
  func.func @transform_4(%arg0: i32) -> (i32, i32) {
    %c0_i32 = arith.constant 0 : i32
    %c0_i32_0 = arith.constant 0 : i32
    %c0_i32_1 = arith.constant 0 : i32
    return %c0_i32, %c0_i32_0 : i32, i32
  }
  func.func @transform_5(%arg0: i32) -> (i32, i32) {
    %c0_i32 = arith.constant 0 : i32
    %c0_i32_0 = arith.constant 0 : i32
    %c0_i32_1 = arith.constant 0 : i32
    return %c0_i32, %c0_i32_0 : i32, i32
  }
  func.func @transform_6(%arg0: i32) -> (i32, i32) {
    %c0_i32 = arith.constant 0 : i32
    %c0_i32_0 = arith.constant 0 : i32
    %c0_i32_1 = arith.constant 0 : i32
    return %c0_i32, %c0_i32_0 : i32, i32
  }
  func.func @transform_7(%arg0: i32) -> (i32, i32) {
    %c0_i32 = arith.constant 0 : i32
    %c0_i32_0 = arith.constant 0 : i32
    %c0_i32_1 = arith.constant 0 : i32
    return %c0_i32, %c0_i32_0 : i32, i32
  }
  func.func @transform_8(%arg0: i32) -> (i32, i32) {
    %c0_i32 = arith.constant 0 : i32
    %c0_i32_0 = arith.constant 0 : i32
    %c0_i32_1 = arith.constant 0 : i32
    return %c0_i32, %c0_i32_0 : i32, i32
  }
  func.func @transform_9(%arg0: i32) -> (i32, i32) {
    %c0_i32 = arith.constant 0 : i32
    %c0_i32_0 = arith.constant 0 : i32
    return %arg0, %c0_i32 : i32, i32
  }
}

</mosaic_0001>

<llo_original>
// kernel: tpu_custom_call.1
$region0: #{tpu_custom_call.1}
  #allocation0 [shape = 'u32[]', space=smem, size = 0x4, offset = 0x4, fixed_abs, tag = 'smem constant byte address 0x4 - core index']
  #allocation1 [shape = 'u32[144,128]{1,0:T(1,128)}', space=vmem, size = 0x12000, scoped, tag = 'internal scratch']
  %s0 = inlined_call_operand.hbm [shape: f32[32,32], index: 0, kind: input, shape index: {}]
  %s1 = inlined_call_operand.hbm [shape: f32[32,96], index: 1, kind: input, shape index: {}]
  %s2 = inlined_call_operand.vmem [shape: f32[1,96], index: 2, kind: input, shape index: {}]
  %s3 = inlined_call_operand.hbm [shape: f32[96,96], index: 3, kind: input, shape index: {}]
  %s4 = inlined_call_operand.vmem [shape: f32[1,96], index: 4, kind: input, shape index: {}]
  %s5 = inlined_call_operand.hbm [shape: f32[32,32], index: 5, kind: input, shape index: {}]
  %s6 = inlined_call_operand.vmem [shape: f32[1,32], index: 6, kind: input, shape index: {}]
  %s7 = inlined_call_operand.vmem [shape: f32[1,32], index: 7, kind: input, shape index: {}]
  %s8 = inlined_call_operand.vmem [shape: f32[1,32], index: 8, kind: input, shape index: {}]
  %s9 = inlined_call_operand.hbm [shape: f32[32,32], index: 9, kind: output, shape index: {}]
  %s10 = sld [smem:[#allocation0]]
  $region85: #{tpu_custom_call.1} parent=0
    _
  %s12 = ssub.s32 1, %s10
  %s13 = scalar_select 0, %s12, %s10
  $region1: #{tpu_custom_call.1} parent=0
    #allocation2 [shape = 'u8[16384]{0}', space=vmem, size = 0x4000, scoped, tag = 'input window, operand 0']
    #allocation3 [shape = 's32[2]{0}', space=sflag, size = 0x8, scoped, tag = 'scoped memory for tpu_custom_call.1']
    #allocation4 [shape = 's32[2]{0}', space=sflag, size = 0x8, scoped, tag = 'scoped memory for tpu_custom_call.1']
    #allocation5 [shape = 'u8[16384]{0}', space=vmem, size = 0x4000, scoped, tag = 'input window, operand 1, single buffered']
    #allocation6 [shape = 's32[1]{0}', space=sflag, size = 0x4, scoped, tag = 'scoped memory for tpu_custom_call.1']
    #allocation7 [shape = 'u8[49152]{0}', space=vmem, size = 0xc000, scoped, tag = 'input window, operand 3, single buffered']
    #allocation8 [shape = 'u8[16384]{0}', space=vmem, size = 0x4000, scoped, tag = 'input window, operand 5, single buffered']
    #allocation9 [shape = 's32[1]{0}', space=sflag, size = 0x4, scoped, tag = 'scoped memory for tpu_custom_call.1']
    #allocation10 [shape = 'u8[16384]{0}', space=vmem, size = 0x4000, scoped, tag = 'output window, operand 0']
    %14 = vsyncpa [#allocation3], 0
    %s15 = scalar_lea.sflag [#allocation3], 1
    %16 = vsyncpa %s15, 0
    %17 = vsyncpa [#allocation6], 0
    %18 = vsyncpa [#allocation9], 0
    %19 = vsyncpa [#allocation4], 0
    %s20 = scalar_lea.sflag [#allocation4], 1
    %21 = vsyncpa %s20, 0
    loop: start=0, step=1, limit=4
    $region2: #{tpu_custom_call.1} parent=1 // loop_pre_header
      _
    $region3: #{tpu_custom_call.1} parent=1 // loop_header
      %s23 = sphi 0, %s27
      %p24 = scmp.ge.s32.totalorder %s23, 4
      %s33 = sphi 0, %s35
      %s36 = sphi 0, %s33
      %s37 = sphi 0, %s36
      %s53 = sphi 0, %s37
      %s57 = sphi 0, %s57
      %s59 = sphi 0, %s57
      %s60 = sphi 0, %s59
      %s74 = sphi 0, %s60
      %s78 = sphi 0, %s78
      %s80 = sphi 0, %s78
      %s81 = sphi 0, %s80
      %s95 = sphi 0, %s81
      %s99 = sphi 0, %s99
      %s101 = sphi 0, %s99
      %s102 = sphi 0, %s101
      %s116 = sphi 0, %s102
      %s120 = sphi 0, %s120
      %s122 = sphi 0, %s120
      %s123 = sphi 0, %s122
      %s137 = sphi 0, %s123
      %s141 = sphi 0, %s141
      %s143 = sphi 0, %s141
      %s144 = sphi 0, %s143
      %s158 = sphi 0, %s144
      %s162 = sphi 0, %s162
      %s164 = sphi 0, %s162
      %s165 = sphi 0, %s164
      %s179 = sphi 0, %s165
      %s183 = sphi 0, %s183
      %s185 = sphi 0, %s183
      %s186 = sphi 0, %s185
      %s200 = sphi 0, %s186
      %s204 = sphi 0, %s204
      %s206 = sphi 0, %s204
      %s207 = sphi 0, %s206
      %s221 = sphi 0, %s207
      %s227 = sphi 0, %s229
      %s230 = sphi 0, %s227
      %s231 = sphi 0, %s230
      %s247 = sphi 0, %s231
    $region4: #{tpu_custom_call.1} parent=1 // loop_header_branch
      %26 = sbr.rel (%p24) target = $region8
    $region5: #{tpu_custom_call.1} parent=1 // loop_body
      %s28 = ssub.s32 %s23, 1
      %s29 = ssub.s32 %s23, 2
      %s30 = sadd.s32 %s23, 1
      %s31 = ssub.s32 %s23, %s30
      %p32 = scmp.eq.s32.totalorder %s31, 0
      %s34 = sadd.s32 %s33, 1
      %s35 = scalar_select %p32, %s33, %s34
      %p38 = pneg %p32
      %p39 = scmp.eq.s32.totalorder %s23, 1
      %p40 = por %p38, %p39
      %p41 = scmp.ne.s32.totalorder %s33, %s36
      %p42 = scmp.eq.s32.totalorder %s23, 0
      %p43 = por %p41, %p42
      %p44 = scmp.ne.s32.totalorder %s33, %s36
      %p45 = scmp.eq.s32.totalorder %s28, 1
      %p46 = por %p44, %p45
      %p47 = scmp.ne.s32.totalorder %s36, %s37
      %p48 = scmp.eq.s32.totalorder %s28, 0
      %p49 = por %p47, %p48
      %p50 = scmp.ne.s32.totalorder %s36, %s37
      %p51 = scmp.eq.s32.totalorder %s29, 1
      %p52 = por %p50, %p51
      %p54 = scmp.ne.s32.totalorder %s37, %s53
      %p55 = scmp.eq.s32.totalorder %s29, 0
      %p56 = por %p54, %p55
      %s58 = sadd.s32 %s57, 1
      %p61 = scmp.eq.s32.totalorder %s23, 1
      %p62 = scmp.ne.s32.totalorder %s57, %s59
      %p63 = scmp.eq.s32.totalorder %s23, 0
      %p64 = por %p62, %p63
      %p65 = scmp.ne.s32.totalorder %s57, %s59
      %p66 = scmp.eq.s32.totalorder %s28, 1
      %p67 = por %p65, %p66
      %p68 = scmp.ne.s32.totalorder %s59, %s60
      %p69 = scmp.eq.s32.totalorder %s28, 0
      %p70 = por %p68, %p69
      %p71 = scmp.ne.s32.totalorder %s59, %s60
      %p72 = scmp.eq.s32.totalorder %s29, 1
      %p73 = por %p71, %p72
      %p75 = scmp.ne.s32.totalorder %s60, %s74
      %p76 = scmp.eq.s32.totalorder %s29, 0
      %p77 = por %p75, %p76
      %s79 = sadd.s32 %s78, 1
      %p82 = scmp.eq.s32.totalorder %s23, 1
      %p83 = scmp.ne.s32.totalorder %s78, %s80
      %p84 = scmp.eq.s32.totalorder %s23, 0
      %p85 = por %p83, %p84
      %p86 = scmp.ne.s32.totalorder %s78, %s80
      %p87 = scmp.eq.s32.totalorder %s28, 1
      %p88 = por %p86, %p87
      %p89 = scmp.ne.s32.totalorder %s80, %s81
      %p90 = scmp.eq.s32.totalorder %s28, 0
      %p91 = por %p89, %p90
      %p92 = scmp.ne.s32.totalorder %s80, %s81
      %p93 = scmp.eq.s32.totalorder %s29, 1
      %p94 = por %p92, %p93
      %p96 = scmp.ne.s32.totalorder %s81, %s95
      %p97 = scmp.eq.s32.totalorder %s29, 0
      %p98 = por %p96, %p97
      %s100 = sadd.s32 %s99, 1
      %p103 = scmp.eq.s32.totalorder %s23, 1
      %p104 = scmp.ne.s32.totalorder %s99, %s101
      %p105 = scmp.eq.s32.totalorder %s23, 0
      %p106 = por %p104, %p105
      %p107 = scmp.ne.s32.totalorder %s99, %s101
      %p108 = scmp.eq.s32.totalorder %s28, 1
      %p109 = por %p107, %p108
      %p110 = scmp.ne.s32.totalorder %s101, %s102
      %p111 = scmp.eq.s32.totalorder %s28, 0
      %p112 = por %p110, %p111
      %p113 = scmp.ne.s32.totalorder %s101, %s102
      %p114 = scmp.eq.s32.totalorder %s29, 1
      %p115 = por %p113, %p114
      %p117 = scmp.ne.s32.totalorder %s102, %s116
      %p118 = scmp.eq.s32.totalorder %s29, 0
      %p119 = por %p117, %p118
      %s121 = sadd.s32 %s120, 1
      %p124 = scmp.eq.s32.totalorder %s23, 1
      %p125 = scmp.ne.s32.totalorder %s120, %s122
      %p126 = scmp.eq.s32.totalorder %s23, 0
      %p127 = por %p125, %p126
      %p128 = scmp.ne.s32.totalorder %s120, %s122
      %p129 = scmp.eq.s32.totalorder %s28, 1
      %p130 = por %p128, %p129
      %p131 = scmp.ne.s32.totalorder %s122, %s123
      %p132 = scmp.eq.s32.totalorder %s28, 0
      %p133 = por %p131, %p132
      %p134 = scmp.ne.s32.totalorder %s122, %s123
      %p135 = scmp.eq.s32.totalorder %s29, 1
      %p136 = por %p134, %p135
      %p138 = scmp.ne.s32.totalorder %s123, %s137
      %p139 = scmp.eq.s32.totalorder %s29, 0
      %p140 = por %p138, %p139
      %s142 = sadd.s32 %s141, 1
      %p145 = scmp.eq.s32.totalorder %s23, 1
      %p146 = scmp.ne.s32.totalorder %s141, %s143
      %p147 = scmp.eq.s32.totalorder %s23, 0
      %p148 = por %p146, %p147
      %p149 = scmp.ne.s32.totalorder %s141, %s143
      %p150 = scmp.eq.s32.totalorder %s28, 1
      %p151 = por %p149, %p150
      %p152 = scmp.ne.s32.totalorder %s143, %s144
      %p153 = scmp.eq.s32.totalorder %s28, 0
      %p154 = por %p152, %p153
      %p155 = scmp.ne.s32.totalorder %s143, %s144
      %p156 = scmp.eq.s32.totalorder %s29, 1
      %p157 = por %p155, %p156
      %p159 = scmp.ne.s32.totalorder %s144, %s158
      %p160 = scmp.eq.s32.totalorder %s29, 0
      %p161 = por %p159, %p160
      %s163 = sadd.s32 %s162, 1
      %p166 = scmp.eq.s32.totalorder %s23, 1
      %p167 = scmp.ne.s32.totalorder %s162, %s164
      %p168 = scmp.eq.s32.totalorder %s23, 0
      %p169 = por %p167, %p168
      %p170 = scmp.ne.s32.totalorder %s162, %s164
      %p171 = scmp.eq.s32.totalorder %s28, 1
      %p172 = por %p170, %p171
      %p173 = scmp.ne.s32.totalorder %s164, %s165
      %p174 = scmp.eq.s32.totalorder %s28, 0
      %p175 = por %p173, %p174
      %p176 = scmp.ne.s32.totalorder %s164, %s165
      %p177 = scmp.eq.s32.totalorder %s29, 1
      %p178 = por %p176, %p177
      %p180 = scmp.ne.s32.totalorder %s165, %s179
      %p181 = scmp.eq.s32.totalorder %s29, 0
      %p182 = por %p180, %p181
      %s184 = sadd.s32 %s183, 1
      %p187 = scmp.eq.s32.totalorder %s23, 1
      %p188 = scmp.ne.s32.totalorder %s183, %s185
      %p189 = scmp.eq.s32.totalorder %s23, 0
      %p190 = por %p188, %p189
      %p191 = scmp.ne.s32.totalorder %s183, %s185
      %p192 = scmp.eq.s32.totalorder %s28, 1
      %p193 = por %p191, %p192
      %p194 = scmp.ne.s32.totalorder %s185, %s186
      %p195 = scmp.eq.s32.totalorder %s28, 0
      %p196 = por %p194, %p195
      %p197 = scmp.ne.s32.totalorder %s185, %s186
      %p198 = scmp.eq.s32.totalorder %s29, 1
      %p199 = por %p197, %p198
      %p201 = scmp.ne.s32.totalorder %s186, %s200
      %p202 = scmp.eq.s32.totalorder %s29, 0
      %p203 = por %p201, %p202
      %s205 = sadd.s32 %s204, 1
      %p208 = scmp.eq.s32.totalorder %s23, 1
      %p209 = scmp.ne.s32.totalorder %s204, %s206
      %p210 = scmp.eq.s32.totalorder %s23, 0
      %p211 = por %p209, %p210
      %p212 = scmp.ne.s32.totalorder %s204, %s206
      %p213 = scmp.eq.s32.totalorder %s28, 1
      %p214 = por %p212, %p213
      %p215 = scmp.ne.s32.totalorder %s206, %s207
      %p216 = scmp.eq.s32.totalorder %s28, 0
      %p217 = por %p215, %p216
      %p218 = scmp.ne.s32.totalorder %s206, %s207
      %p219 = scmp.eq.s32.totalorder %s29, 1
      %p220 = por %p218, %p219
      %p222 = scmp.ne.s32.totalorder %s207, %s221
      %p223 = scmp.eq.s32.totalorder %s29, 0
      %p224 = por %p222, %p223
      %s225 = ssub.s32 %s23, %s30
      %p226 = scmp.eq.s32.totalorder %s225, 0
      %s228 = sadd.s32 %s227, 1
      %s229 = scalar_select %p226, %s227, %s228
      %p232 = pneg %p226
      %p233 = scmp.eq.s32.totalorder %s23, 1
      %p234 = por %p232, %p233
      %p235 = scmp.ne.s32.totalorder %s227, %s230
      %p236 = scmp.eq.s32.totalorder %s23, 0
      %p237 = por %p235, %p236
      %p238 = scmp.ne.s32.totalorder %s227, %s230
      %p239 = scmp.eq.s32.totalorder %s28, 1
      %p240 = por %p238, %p239
      %p241 = scmp.ne.s32.totalorder %s230, %s231
      %p242 = scmp.eq.s32.totalorder %s28, 0
      %p243 = por %p241, %p242
      %p244 = scmp.ne.s32.totalorder %s230, %s231
      %p245 = scmp.eq.s32.totalorder %s29, 1
      %p246 = por %p244, %p245
      %p248 = scmp.ne.s32.totalorder %s231, %s247
      %p249 = scmp.eq.s32.totalorder %s29, 0
      %p250 = por %p248, %p249
      %p251 = scmp.le.s32.totalorder 1, %s23
      %p252 = scmp.lt.s32.totalorder %s23, 3
      %p253 = pnand %p251, %p252
      %p254 = pneg %p253
      // Predicated region
      $region9: #{tpu_custom_call.1} parent=5 // pred_check
        _
      $region10: #{tpu_custom_call.1} parent=5 // pred_check_branch
        %256 = sbr.rel (%p253) target = $region12
      $region11: #{tpu_custom_call.1} parent=5 // pred_region
        %s257 = ssub.s32 %s23, 1
        // Predicated region
        $region13: #{tpu_custom_call.1} parent=11 // pred_check
          %p258 = pneg %p70
        $region14: #{tpu_custom_call.1} parent=11 // pred_check_branch
          %260 = sbr.rel (%p258) target = $region16
        $region15: #{tpu_custom_call.1} parent=11 // pred_region
          %s262 = ssub.s32 512, 512
          %263 = vsyncadd [#allocation6], %s262
          %s264 = sshll.u32 [#allocation5], 4
          %s265 = int_to_ptr.vmem [resolvable:$true] %s264
          %270 = dma.hbm_to_vmem [thread:$0]  %s1, 512, %s265, [#allocation6], 128, 128, 8
        $region16: #{tpu_custom_call.1} parent=11 // pred_fallthru
          _
        // Predicated region
        $region17: #{tpu_custom_call.1} parent=11 // pred_check
          %p271 = pneg %p91
        $region18: #{tpu_custom_call.1} parent=11 // pred_check_branch
          %273 = sbr.rel (%p271) target = $region20
        $region19: #{tpu_custom_call.1} parent=11 // pred_region
          _
        $region20: #{tpu_custom_call.1} parent=11 // pred_fallthru
          _
        // Predicated region
        $region21: #{tpu_custom_call.1} parent=11 // pred_check
          %p274 = pneg %p112
        $region22: #{tpu_custom_call.1} parent=11 // pred_check_branch
          %276 = sbr.rel (%p274) target = $region24
        $region23: #{tpu_custom_call.1} parent=11 // pred_region
          %s278 = ssub.s32 1536, 1536
          %279 = vsyncadd [#allocation6], %s278
          %s280 = sshll.u32 [#allocation7], 4
          %s281 = int_to_ptr.vmem [resolvable:$true] %s280
          %286 = dma.hbm_to_vmem [thread:$0]  %s3, 1536, %s281, [#allocation6], 128, 128, 8
        $region24: #{tpu_custom_call.1} parent=11 // pred_fallthru
          _
        // Predicated region
        $region25: #{tpu_custom_call.1} parent=11 // pred_check
          %p287 = pneg %p133
        $region26: #{tpu_custom_call.1} parent=11 // pred_check_branch
          %289 = sbr.rel (%p287) target = $region28
        $region27: #{tpu_custom_call.1} parent=11 // pred_region
          _
        $region28: #{tpu_custom_call.1} parent=11 // pred_fallthru
          _
        // Predicated region
        $region29: #{tpu_custom_call.1} parent=11 // pred_check
          %p290 = pneg %p154
        $region30: #{tpu_custom_call.1} parent=11 // pred_check_branch
          %292 = sbr.rel (%p290) target = $region32
        $region31: #{tpu_custom_call.1} parent=11 // pred_region
          %s294 = ssub.s32 512, 512
          %295 = vsyncadd [#allocation9], %s294
          %s296 = sshll.u32 [#allocation8], 4
          %s297 = int_to_ptr.vmem [resolvable:$true] %s296
          %302 = dma.hbm_to_vmem [thread:$0]  %s5, 512, %s297, [#allocation9], 128, 128, 8
        $region32: #{tpu_custom_call.1} parent=11 // pred_fallthru
          _
        // Predicated region
        $region33: #{tpu_custom_call.1} parent=11 // pred_check
          %p303 = pneg %p175
        $region34: #{tpu_custom_call.1} parent=11 // pred_check_branch
          %305 = sbr.rel (%p303) target = $region36
        $region35: #{tpu_custom_call.1} parent=11 // pred_region
          _
        $region36: #{tpu_custom_call.1} parent=11 // pred_fallthru
          _
        // Predicated region
        $region37: #{tpu_custom_call.1} parent=11 // pred_check
          %p306 = pneg %p196
        $region38: #{tpu_custom_call.1} parent=11 // pred_check_branch
          %308 = sbr.rel (%p306) target = $region40
        $region39: #{tpu_custom_call.1} parent=11 // pred_region
          _
        $region40: #{tpu_custom_call.1} parent=11 // pred_fallthru
          _
        // Predicated region
        $region41: #{tpu_custom_call.1} parent=11 // pred_check
          %p309 = pneg %p217
        $region42: #{tpu_custom_call.1} parent=11 // pred_check_branch
          %311 = sbr.rel (%p309) target = $region44
        $region43: #{tpu_custom_call.1} parent=11 // pred_region
          _
        $region44: #{tpu_custom_call.1} parent=11 // pred_fallthru
          _
      $region12: #{tpu_custom_call.1} parent=5 // pred_fallthru
        _
      %p312 = scmp.lt.s32.totalorder %s23, 2
      // Predicated region
      $region45: #{tpu_custom_call.1} parent=5 // pred_check
        %p313 = pneg %p312
      $region46: #{tpu_custom_call.1} parent=5 // pred_check_branch
        %315 = sbr.rel (%p313) target = $region48
      $region47: #{tpu_custom_call.1} parent=5 // pred_region
        // Predicated region
        $region49: #{tpu_custom_call.1} parent=47 // pred_check
          %p316 = pneg %p43
        $region50: #{tpu_custom_call.1} parent=47 // pred_check_branch
          %318 = sbr.rel (%p316) target = $region52
        $region51: #{tpu_custom_call.1} parent=47 // pred_region
          %s319 = sand.u32 %s33, 1
          %s320 = scalar_lea.sflag [#allocation3], %s319
          %s321 = sand.u32 %s33, 1
          %s322 = smul.addr %s321, 16
          %s323 = scalar_lea.vmem [#allocation2], %s322
          %s324 = smul.u32 2, %s23
          %s326 = ssub.s32 256, 256
          %327 = vsyncadd %s320, %s326
          %s328 = smul.addr %s324, 128
          %s329 = scalar_lea.hbm %s0, %s328
          %s330 = sshll.u32 %s323, 4
          %s331 = int_to_ptr.vmem [resolvable:$true] %s330
          %336 = dma.hbm_to_vmem [thread:$0]  %s329, 256, %s331, %s320, 128, 128, 8
        $region52: #{tpu_custom_call.1} parent=47 // pred_fallthru
          _
      $region48: #{tpu_custom_call.1} parent=5 // pred_fallthru
        _
      %p337 = scmp.le.s32.totalorder 1, %s23
      %p338 = scmp.lt.s32.totalorder %s23, 3
      %p339 = pnand %p337, %p338
      %p340 = pneg %p339
      // Predicated region
      $region53: #{tpu_custom_call.1} parent=5 // pred_check
        _
      $region54: #{tpu_custom_call.1} parent=5 // pred_check_branch
        %342 = sbr.rel (%p339) target = $region56
      $region55: #{tpu_custom_call.1} parent=5 // pred_region
        %s343 = ssub.s32 %s23, 1
        %s344 = sand.u32 %s36, 1
        %s345 = scalar_lea.sflag [#allocation3], %s344
        %s346 = sand.u32 %s36, 1
        %s347 = smul.addr %s346, 16
        %s348 = scalar_lea.vmem [#allocation2], %s347
        // Predicated region
        $region57: #{tpu_custom_call.1} parent=55 // pred_check
          %p349 = pneg %p49
        $region58: #{tpu_custom_call.1} parent=55 // pred_check_branch
          %351 = sbr.rel (%p349) target = $region60
        $region59: #{tpu_custom_call.1} parent=55 // pred_region
          %352 = dma.done %s345, 256
        $region60: #{tpu_custom_call.1} parent=55 // pred_fallthru
          _
        // Predicated region
        $region61: #{tpu_custom_call.1} parent=55 // pred_check
          %p353 = pneg %p70
        $region62: #{tpu_custom_call.1} parent=55 // pred_check_branch
          %355 = sbr.rel (%p353) target = $region64
        $region63: #{tpu_custom_call.1} parent=55 // pred_region
          %356 = dma.done [#allocation6], 512
        $region64: #{tpu_custom_call.1} parent=55 // pred_fallthru
          _
        // Predicated region
        $region65: #{tpu_custom_call.1} parent=55 // pred_check
          %p357 = pneg %p112
        $region66: #{tpu_custom_call.1} parent=55 // pred_check_branch
          %359 = sbr.rel (%p357) target = $region68
        $region67: #{tpu_custom_call.1} parent=55 // pred_region
          %360 = dma.done [#allocation6], 1536
        $region68: #{tpu_custom_call.1} parent=55 // pred_fallthru
          _
        // Predicated region
        $region69: #{tpu_custom_call.1} parent=55 // pred_check
          %p361 = pneg %p154
        $region70: #{tpu_custom_call.1} parent=55 // pred_check_branch
          %363 = sbr.rel (%p361) target = $region72
        $region71: #{tpu_custom_call.1} parent=55 // pred_region
          %364 = dma.done [#allocation9], 512
        $region72: #{tpu_custom_call.1} parent=55 // pred_fallthru
          _
        %s365 = sand.u32 %s36, 1
        %s366 = scalar_lea.sflag [#allocation3], %s365
        %s367 = sand.u32 %s36, 1
        %s368 = smul.addr %s367, 16
        %s369 = scalar_lea.vmem [#allocation2], %s368
        %p370 = pneg %p49
        %p371 = pneg %p46
        %p372 = pneg %p70
        %p373 = pneg %p67
        %p374 = pneg %p91
        %p375 = pneg %p88
        %p376 = pneg %p112
        %p377 = pneg %p109
        %p378 = pneg %p133
        %p379 = pneg %p130
        %p380 = pneg %p154
        %p381 = pneg %p151
        %p382 = pneg %p175
        %p383 = pneg %p172
        %p384 = pneg %p196
        %p385 = pneg %p193
        %p386 = pneg %p217
        %p387 = pneg %p214
        %p388 = pneg %p243
        %p389 = pneg %p240
        %s390 = sand.u32 %s230, 1
        %s391 = scalar_lea.sflag [#allocation4], %s390
        %s392 = sand.u32 %s230, 1
        %s393 = smul.addr %s392, 16
        %s394 = scalar_lea.vmem [#allocation10], %s393
        %s395 = smul.u32 2, %s28
        %s396 = smul.u32 2, %s28
        %v397 = vld [vmem:[%s348] sm:$0xff]
        %v398 = vld [vmem:[%s348 + $0x8] sm:$0xff]
        %v399 = vld [vmem:[#allocation5] sm:$0xff]
        %v400 = vld [vmem:[#allocation5 + $0x8] sm:$0xff]
        %v401 = vld [vmem:[#allocation5 + $0x10] sm:$0xff]
        %v402 = vld [vmem:[#allocation5 + $0x18] sm:$0xff]
        %v403 = vld [vmem:[%s2] sm:$0x1]
        %v405 = vlaneseq
        %v406 = vshrl.u32 %v405, 7
        %v407 = vsub.s32 0, %v406
        %v408 = vrot.slane %v403, %v407
        %vm410 = vcmask 261120
        %v412 = vsel %vm410, %v397, 0
        %v415 = vsel %vm410, %v398, 0
        %417 = vmatprep.subr.mxu0 0.0
        %v418 = vand.u32 %v399, 4294901760
        %419 = vmatpush1.msra.mxu0 %v418
        %420 = vmatprep.subr.mxu0 0.0
        %v421 = vand.u32 %v400, 4294901760
        %422 = vmatpush1.msra.mxu0 %v421
        %423 = vmatprep.subr.mxu0 0.0
        %v424 = vand.u32 %v401, 4294901760
        %425 = vmatpush1.msra.mxu0 %v424
        %426 = vmatprep.subr.mxu0 0.0
        %v427 = vand.u32 %v402, 4294901760
        %428 = vmatpush1.msra.mxu0 %v427
        %429 = vmatprep.subr.mxu0 0.0
        %430 = vmatpush1.msra.mxu0 0.0
        %431 = vmatprep.subr.mxu0 0.0
        %432 = vmatpush1.msra.mxu0 0.0
        %433 = vmatprep.subr.mxu0 0.0
        %434 = vmatpush1.msra.mxu0 0.0
        %435 = vmatprep.subr.mxu0 0.0
        %436 = vmatpush1.msra.mxu0 0.0
        %437 = vmatprep.subr.mxu0 0.0
        %438 = vmatpush1.msra.mxu0 0.0
        %439 = vmatprep.subr.mxu0 0.0
        %440 = vmatpush1.msra.mxu0 0.0
        %441 = vmatprep.subr.mxu0 0.0
        %442 = vmatpush1.msra.mxu0 0.0
        %443 = vmatprep.subr.mxu0 0.0
        %444 = vmatpush1.msra.mxu0 0.0
        %445 = vmatprep.subr.mxu0 0.0
        %446 = vmatpush1.msra.mxu0 0.0
        %447 = vmatprep.subr.mxu0 0.0
        %448 = vmatpush1.msra.mxu0 0.0
        %449 = vmatprep.subr.mxu0 0.0
        %450 = vmatpush1.msra.mxu0 0.0
        %451 = vmatprep.subr.mxu0 0.0
        %452 = vmatpush1.msra.mxu0 0.0
        %453 = vmatprep.subr.mxu0 0.0
        %454 = vmatpush1.msra.mxu0 0.0
        %455 = vmatprep.subr.mxu0 0.0
        %456 = vmatpush1.msra.mxu0 0.0
        %457 = vmatprep.subr.mxu0 0.0
        %458 = vmatpush1.msra.mxu0 0.0
        %459 = vmatprep.subr.mxu0 0.0
        %460 = vmatpush1.msra.mxu0 0.0
        %461 = vmatprep.subr.mxu0 0.0
        %462 = vmatpush1.msra.mxu0 0.0
        %463 = vmatprep.subr.mxu0 0.0
        %464 = vmatpush1.msra.mxu0 0.0
        %465 = vmatprep.subr.mxu0 0.0
        %466 = vmatpush1.msra.mxu0 0.0
        %467 = vmatprep.subr.mxu0 0.0
        %468 = vmatpush1.msra.mxu0 0.0
        %469 = vmatprep.subr.mxu0 0.0
        %470 = vmatpush1.msra.mxu0 0.0
        %471 = vmatprep.subr.mxu0 0.0
        %472 = vmatpush1.msra.mxu0 0.0
        %473 = vmatprep.subr.mxu0 0.0
        %474 = vmatpush1.msra.mxu0 0.0
        %475 = vmatprep.subr.mxu0 0.0
        %476 = vmatpush1.msra.mxu0 0.0
        %477 = vmatprep.subr.mxu0 0.0
        %478 = vmatpush1.msra.mxu0 0.0
        %479 = vmatprep.subr.mxu0 0.0
        %480 = vmatpush1.msra.mxu0 0.0
        %481 = vmatprep.subr.mxu0 0.0
        %482 = vmatpush1.msra.mxu0 0.0
        %483 = vmatprep.subr.mxu0 0.0
        %484 = vmatpush1.msra.mxu0 0.0
        %485 = vmatprep.mubr.f32.mxu0 0.0
        %v486 = vand.u32 %v412, 4294901760
        %v487 = vsub.f32 %v412, %v486
        %v488 = vand.u32 %v487, 4294901760
        %v489 = vsub.f32 %v487, %v488
        %v490 = vand.u32 %v489, 4294901760
        %491 = vmatmul.mubr.f32.gmra.mrb[0].mxu0 %v490
        %v492 = vpop.f32.mrb[0].mxu0
        %v493 = vadd.f32 %v408, %v492
        %v494 = vpop.f32.mrb[0].mxu0
        %495 = vmatprep.mubr.f32.mxu0 0.0
        %v496 = vand.u32 %v415, 4294901760
        %v497 = vsub.f32 %v415, %v496
        %v498 = vand.u32 %v497, 4294901760
        %v499 = vsub.f32 %v497, %v498
        %v500 = vand.u32 %v499, 4294901760
        %501 = vmatmul.mubr.f32.gmra.mrb[0].mxu0 %v500
        %v502 = vpop.f32.mrb[0].mxu0
        %v503 = vadd.f32 %v408, %v502
        %v504 = vpop.f32.mrb[0].mxu0
        %505 = vdwg.mxu0
        %506 = vmatprep.subr.mxu0 0.0
        %v507 = vand.u32 %v399, 4294901760
        %v508 = vsub.f32 %v399, %v507
        %v509 = vand.u32 %v508, 4294901760
        %v510 = vsub.f32 %v508, %v509
        %v511 = vand.u32 %v510, 4294901760
        %512 = vmatpush1.msra.mxu0 %v511
        %513 = vmatprep.subr.mxu0 0.0
        %v514 = vand.u32 %v400, 4294901760
        %v515 = vsub.f32 %v400, %v514
        %v516 = vand.u32 %v515, 4294901760
        %v517 = vsub.f32 %v515, %v516
        %v518 = vand.u32 %v517, 4294901760
        %519 = vmatpush1.msra.mxu0 %v518
        %520 = vmatprep.subr.mxu0 0.0
        %v521 = vand.u32 %v401, 4294901760
        %v522 = vsub.f32 %v401, %v521
        %v523 = vand.u32 %v522, 4294901760
        %v524 = vsub.f32 %v522, %v523
        %v525 = vand.u32 %v524, 4294901760
        %526 = vmatpush1.msra.mxu0 %v525
        %527 = vmatprep.subr.mxu0 0.0
        %v528 = vand.u32 %v402, 4294901760
        %v529 = vsub.f32 %v402, %v528
        %v530 = vand.u32 %v529, 4294901760
        %v531 = vsub.f32 %v529, %v530
        %v532 = vand.u32 %v531, 4294901760
        %533 = vmatpush1.msra.mxu0 %v532
        %534 = vmatprep.subr.mxu0 0.0
        %535 = vmatpush1.msra.mxu0 0.0
        %536 = vmatprep.subr.mxu0 0.0
        %537 = vmatpush1.msra.mxu0 0.0
        %538 = vmatprep.subr.mxu0 0.0
        %539 = vmatpush1.msra.mxu0 0.0
        %540 = vmatprep.subr.mxu0 0.0
        %541 = vmatpush1.msra.mxu0 0.0
        %542 = vmatprep.subr.mxu0 0.0
        %543 = vmatpush1.msra.mxu0 0.0
        %544 = vmatprep.subr.mxu0 0.0
        %545 = vmatpush1.msra.mxu0 0.0
        %546 = vmatprep.subr.mxu0 0.0
        %547 = vmatpush1.msra.mxu0 0.0
        %548 = vmatprep.subr.mxu0 0.0
        %549 = vmatpush1.msra.mxu0 0.0
        %550 = vmatprep.subr.mxu0 0.0
        %551 = vmatpush1.msra.mxu0 0.0
        %552 = vmatprep.subr.mxu0 0.0
        %553 = vmatpush1.msra.mxu0 0.0
        %554 = vmatprep.subr.mxu0 0.0
        %555 = vmatpush1.msra.mxu0 0.0
        %556 = vmatprep.subr.mxu0 0.0
        %557 = vmatpush1.msra.mxu0 0.0
        %558 = vmatprep.subr.mxu0 0.0
        %559 = vmatpush1.msra.mxu0 0.0
        %560 = vmatprep.subr.mxu0 0.0
        %561 = vmatpush1.msra.mxu0 0.0
        %562 = vmatprep.subr.mxu0 0.0
        %563 = vmatpush1.msra.mxu0 0.0
        %564 = vmatprep.subr.mxu0 0.0
        %565 = vmatpush1.msra.mxu0 0.0
        %566 = vmatprep.subr.mxu0 0.0
        %567 = vmatpush1.msra.mxu0 0.0
        %568 = vmatprep.subr.mxu0 0.0
        %569 = vmatpush1.msra.mxu0 0.0
        %570 = vmatprep.subr.mxu0 0.0
        %571 = vmatpush1.msra.mxu0 0.0
        %572 = vmatprep.subr.mxu0 0.0
        %573 = vmatpush1.msra.mxu0 0.0
        %574 = vmatprep.subr.mxu0 0.0
        %575 = vmatpush1.msra.mxu0 0.0
        %576 = vmatprep.subr.mxu0 0.0
        %577 = vmatpush1.msra.mxu0 0.0
        %578 = vmatprep.subr.mxu0 0.0
        %579 = vmatpush1.msra.mxu0 0.0
        %580 = vmatprep.subr.mxu0 0.0
        %581 = vmatpush1.msra.mxu0 0.0
        %582 = vmatprep.subr.mxu0 0.0
        %583 = vmatpush1.msra.mxu0 0.0
        %584 = vmatprep.subr.mxu0 0.0
        %585 = vmatpush1.msra.mxu0 0.0
        %586 = vmatprep.subr.mxu0 0.0
        %587 = vmatpush1.msra.mxu0 0.0
        %588 = vmatprep.subr.mxu0 0.0
        %589 = vmatpush1.msra.mxu0 0.0
        %590 = vmatprep.mubr.f32.mxu0 0.0
        %v591 = vand.u32 %v412, 4294901760
        %592 = vmatmul.mubr.f32.gmra.mrb[0].mxu0 %v591
        %v593 = vpop.f32.mrb[0].mxu0
        %v594 = vadd.f32 %v493, %v593
        %v595 = vpop.f32.mrb[0].mxu0
        %596 = vmatprep.mubr.f32.mxu0 0.0
        %v597 = vand.u32 %v415, 4294901760
        %598 = vmatmul.mubr.f32.gmra.mrb[0].mxu0 %v597
        %v599 = vpop.f32.mrb[0].mxu0
        %v600 = vadd.f32 %v503, %v599
        %v601 = vpop.f32.mrb[0].mxu0
        %602 = vdwg.mxu0
        %603 = vmatprep.subr.mxu0 0.0
        %v604 = vand.u32 %v399, 4294901760
        %v605 = vsub.f32 %v399, %v604
        %606 = vmatpush1.msra.mxu0 %v605
        %607 = vmatprep.subr.mxu0 0.0
        %v608 = vand.u32 %v400, 4294901760
        %v609 = vsub.f32 %v400, %v608
        %610 = vmatpush1.msra.mxu0 %v609
        %611 = vmatprep.subr.mxu0 0.0
        %v612 = vand.u32 %v401, 4294901760
        %v613 = vsub.f32 %v401, %v612
        %614 = vmatpush1.msra.mxu0 %v613
        %615 = vmatprep.subr.mxu0 0.0
        %v616 = vand.u32 %v402, 4294901760
        %v617 = vsub.f32 %v402, %v616
        %618 = vmatpush1.msra.mxu0 %v617
        %619 = vmatprep.subr.mxu0 0.0
        %620 = vmatpush1.msra.mxu0 0.0
        %621 = vmatprep.subr.mxu0 0.0
        %622 = vmatpush1.msra.mxu0 0.0
        %623 = vmatprep.subr.mxu0 0.0
        %624 = vmatpush1.msra.mxu0 0.0
        %625 = vmatprep.subr.mxu0 0.0
        %626 = vmatpush1.msra.mxu0 0.0
        %627 = vmatprep.subr.mxu0 0.0
        %628 = vmatpush1.msra.mxu0 0.0
        %629 = vmatprep.subr.mxu0 0.0
        %630 = vmatpush1.msra.mxu0 0.0
        %631 = vmatprep.subr.mxu0 0.0
        %632 = vmatpush1.msra.mxu0 0.0
        %633 = vmatprep.subr.mxu0 0.0
        %634 = vmatpush1.msra.mxu0 0.0
        %635 = vmatprep.subr.mxu0 0.0
        %636 = vmatpush1.msra.mxu0 0.0
        %637 = vmatprep.subr.mxu0 0.0
        %638 = vmatpush1.msra.mxu0 0.0
        %639 = vmatprep.subr.mxu0 0.0
        %640 = vmatpush1.msra.mxu0 0.0
        %641 = vmatprep.subr.mxu0 0.0
        %642 = vmatpush1.msra.mxu0 0.0
        %643 = vmatprep.subr.mxu0 0.0
        %644 = vmatpush1.msra.mxu0 0.0
        %645 = vmatprep.subr.mxu0 0.0
        %646 = vmatpush1.msra.mxu0 0.0
        %647 = vmatprep.subr.mxu0 0.0
        %648 = vmatpush1.msra.mxu0 0.0
        %649 = vmatprep.subr.mxu0 0.0
        %650 = vmatpush1.msra.mxu0 0.0
        %651 = vmatprep.subr.mxu0 0.0
        %652 = vmatpush1.msra.mxu0 0.0
        %653 = vmatprep.subr.mxu0 0.0
        %654 = vmatpush1.msra.mxu0 0.0
        %655 = vmatprep.subr.mxu0 0.0
        %656 = vmatpush1.msra.mxu0 0.0
        %657 = vmatprep.subr.mxu0 0.0
        %658 = vmatpush1.msra.mxu0 0.0
        %659 = vmatprep.subr.mxu0 0.0
        %660 = vmatpush1.msra.mxu0 0.0
        %661 = vmatprep.subr.mxu0 0.0
        %662 = vmatpush1.msra.mxu0 0.0
        %663 = vmatprep.subr.mxu0 0.0
        %664 = vmatpush1.msra.mxu0 0.0
        %665 = vmatprep.subr.mxu0 0.0
        %666 = vmatpush1.msra.mxu0 0.0
        %667 = vmatprep.subr.mxu0 0.0
        %668 = vmatpush1.msra.mxu0 0.0
        %669 = vmatprep.subr.mxu0 0.0
        %670 = vmatpush1.msra.mxu0 0.0
        %671 = vmatprep.subr.mxu0 0.0
        %672 = vmatpush1.msra.mxu0 0.0
        %673 = vmatprep.subr.mxu0 0.0
        %674 = vmatpush1.msra.mxu0 0.0
        %675 = vmatprep.mubr.f32.mxu0 0.0
        %v676 = vand.u32 %v412, 4294901760
        %v677 = vsub.f32 %v412, %v676
        %678 = vmatmul.mubr.f32.gmra.mrb[0].mxu0 %v677
        %v679 = vpop.f32.mrb[0].mxu0
        %v680 = vadd.f32 %v594, %v679
        %v681 = vpop.f32.mrb[0].mxu0
        %682 = vmatprep.mubr.f32.mxu0 0.0
        %v683 = vand.u32 %v415, 4294901760
        %v684 = vsub.f32 %v415, %v683
        %685 = vmatmul.mubr.f32.gmra.mrb[0].mxu0 %v684
        %v686 = vpop.f32.mrb[0].mxu0
        %v687 = vadd.f32 %v600, %v686
        %v688 = vpop.f32.mrb[0].mxu0
        %689 = vdwg.mxu0
        %690 = vmatprep.subr.mxu0 0.0
        %v691 = vand.u32 %v399, 4294901760
        %692 = vmatpush1.msra.mxu0 %v691
        %693 = vmatprep.subr.mxu0 0.0
        %v694 = vand.u32 %v400, 4294901760
        %695 = vmatpush1.msra.mxu0 %v694
        %696 = vmatprep.subr.mxu0 0.0
        %v697 = vand.u32 %v401, 4294901760
        %698 = vmatpush1.msra.mxu0 %v697
        %699 = vmatprep.subr.mxu0 0.0
        %v700 = vand.u32 %v402, 4294901760
        %701 = vmatpush1.msra.mxu0 %v700
        %702 = vmatprep.subr.mxu0 0.0
        %703 = vmatpush1.msra.mxu0 0.0
        %704 = vmatprep.subr.mxu0 0.0
        %705 = vmatpush1.msra.mxu0 0.0
        %706 = vmatprep.subr.mxu0 0.0
        %707 = vmatpush1.msra.mxu0 0.0
        %708 = vmatprep.subr.mxu0 0.0
        %709 = vmatpush1.msra.mxu0 0.0
        %710 = vmatprep.subr.mxu0 0.0
        %711 = vmatpush1.msra.mxu0 0.0
        %712 = vmatprep.subr.mxu0 0.0
        %713 = vmatpush1.msra.mxu0 0.0
        %714 = vmatprep.subr.mxu0 0.0
        %715 = vmatpush1.msra.mxu0 0.0
        %716 = vmatprep.subr.mxu0 0.0
        %717 = vmatpush1.msra.mxu0 0.0
        %718 = vmatprep.subr.mxu0 0.0
        %719 = vmatpush1.msra.mxu0 0.0
        %720 = vmatprep.subr.mxu0 0.0
        %721 = vmatpush1.msra.mxu0 0.0
        %722 = vmatprep.subr.mxu0 0.0
        %723 = vmatpush1.msra.mxu0 0.0
        %724 = vmatprep.subr.mxu0 0.0
        %725 = vmatpush1.msra.mxu0 0.0
        %726 = vmatprep.subr.mxu0 0.0
        %727 = vmatpush1.msra.mxu0 0.0
        %728 = vmatprep.subr.mxu0 0.0
        %729 = vmatpush1.msra.mxu0 0.0
        %730 = vmatprep.subr.mxu0 0.0
        %731 = vmatpush1.msra.mxu0 0.0
        %732 = vmatprep.subr.mxu0 0.0
        %733 = vmatpush1.msra.mxu0 0.0
        %734 = vmatprep.subr.mxu0 0.0
        %735 = vmatpush1.msra.mxu0 0.0
        %736 = vmatprep.subr.mxu0 0.0
        %737 = vmatpush1.msra.mxu0 0.0
        %738 = vmatprep.subr.mxu0 0.0
        %739 = vmatpush1.msra.mxu0 0.0
        %740 = vmatprep.subr.mxu0 0.0
        %741 = vmatpush1.msra.mxu0 0.0
        %742 = vmatprep.subr.mxu0 0.0
        %743 = vmatpush1.msra.mxu0 0.0
        %744 = vmatprep.subr.mxu0 0.0
        %745 = vmatpush1.msra.mxu0 0.0
        %746 = vmatprep.subr.mxu0 0.0
        %747 = vmatpush1.msra.mxu0 0.0
        %748 = vmatprep.subr.mxu0 0.0
        %749 = vmatpush1.msra.mxu0 0.0
        %750 = vmatprep.subr.mxu0 0.0
        %751 = vmatpush1.msra.mxu0 0.0
        %752 = vmatprep.subr.mxu0 0.0
        %753 = vmatpush1.msra.mxu0 0.0
        %754 = vmatprep.subr.mxu0 0.0
        %755 = vmatpush1.msra.mxu0 0.0
        %756 = vmatprep.subr.mxu0 0.0
        %757 = vmatpush1.msra.mxu0 0.0
        %758 = vmatprep.mubr.f32.mxu0 0.0
        %v759 = vand.u32 %v412, 4294901760
        %v760 = vsub.f32 %v412, %v759
        %v761 = vand.u32 %v760, 4294901760
        %762 = vmatmul.mubr.f32.gmra.mrb[0].mxu0 %v761
        %v763 = vpop.f32.mrb[0].mxu0
        %v764 = vadd.f32 %v680, %v763
        %v765 = vpop.f32.mrb[0].mxu0
        %766 = vmatprep.mubr.f32.mxu0 0.0
        %v767 = vand.u32 %v415, 4294901760
        %v768 = vsub.f32 %v415, %v767
        %v769 = vand.u32 %v768, 4294901760
        %770 = vmatmul.mubr.f32.gmra.mrb[0].mxu0 %v769
        %v771 = vpop.f32.mrb[0].mxu0
        %v772 = vadd.f32 %v687, %v771
        %v773 = vpop.f32.mrb[0].mxu0
        %774 = vdwg.mxu0
        %775 = vmatprep.subr.mxu0 0.0
        %v776 = vand.u32 %v399, 4294901760
        %v777 = vsub.f32 %v399, %v776
        %v778 = vand.u32 %v777, 4294901760
        %779 = vmatpush1.msra.mxu0 %v778
        %780 = vmatprep.subr.mxu0 0.0
        %v781 = vand.u32 %v400, 4294901760
        %v782 = vsub.f32 %v400, %v781
        %v783 = vand.u32 %v782, 4294901760
        %784 = vmatpush1.msra.mxu0 %v783
        %785 = vmatprep.subr.mxu0 0.0
        %v786 = vand.u32 %v401, 4294901760
        %v787 = vsub.f32 %v401, %v786
        %v788 = vand.u32 %v787, 4294901760
        %789 = vmatpush1.msra.mxu0 %v788
        %790 = vmatprep.subr.mxu0 0.0
        %v791 = vand.u32 %v402, 4294901760
        %v792 = vsub.f32 %v402, %v791
        %v793 = vand.u32 %v792, 4294901760
        %794 = vmatpush1.msra.mxu0 %v793
        %795 = vmatprep.subr.mxu0 0.0
        %796 = vmatpush1.msra.mxu0 0.0
        %797 = vmatprep.subr.mxu0 0.0
        %798 = vmatpush1.msra.mxu0 0.0
        %799 = vmatprep.subr.mxu0 0.0
        %800 = vmatpush1.msra.mxu0 0.0
        %801 = vmatprep.subr.mxu0 0.0
        %802 = vmatpush1.msra.mxu0 0.0
        %803 = vmatprep.subr.mxu0 0.0
        %804 = vmatpush1.msra.mxu0 0.0
        %805 = vmatprep.subr.mxu0 0.0
        %806 = vmatpush1.msra.mxu0 0.0
        %807 = vmatprep.subr.mxu0 0.0
        %808 = vmatpush1.msra.mxu0 0.0
        %809 = vmatprep.subr.mxu0 0.0
        %810 = vmatpush1.msra.mxu0 0.0
        %811 = vmatprep.subr.mxu0 0.0
        %812 = vmatpush1.msra.mxu0 0.0
        %813 = vmatprep.subr.mxu0 0.0
        %814 = vmatpush1.msra.mxu0 0.0
        %815 = vmatprep.subr.mxu0 0.0
        %816 = vmatpush1.msra.mxu0 0.0
        %817 = vmatprep.subr.mxu0 0.0
        %818 = vmatpush1.msra.mxu0 0.0
        %819 = vmatprep.subr.mxu0 0.0
        %820 = vmatpush1.msra.mxu0 0.0
        %821 = vmatprep.subr.mxu0 0.0
        %822 = vmatpush1.msra.mxu0 0.0
        %823 = vmatprep.subr.mxu0 0.0
        %824 = vmatpush1.msra.mxu0 0.0
        %825 = vmatprep.subr.mxu0 0.0
        %826 = vmatpush1.msra.mxu0 0.0
        %827 = vmatprep.subr.mxu0 0.0
        %828 = vmatpush1.msra.mxu0 0.0
        %829 = vmatprep.subr.mxu0 0.0
        %830 = vmatpush1.msra.mxu0 0.0
        %831 = vmatprep.subr.mxu0 0.0
        %832 = vmatpush1.msra.mxu0 0.0
        %833 = vmatprep.subr.mxu0 0.0
        %834 = vmatpush1.msra.mxu0 0.0
        %835 = vmatprep.subr.mxu0 0.0
        %836 = vmatpush1.msra.mxu0 0.0
        %837 = vmatprep.subr.mxu0 0.0
        %838 = vmatpush1.msra.mxu0 0.0
        %839 = vmatprep.subr.mxu0 0.0
        %840 = vmatpush1.msra.mxu0 0.0
        %841 = vmatprep.subr.mxu0 0.0
        %842 = vmatpush1.msra.mxu0 0.0
        %843 = vmatprep.subr.mxu0 0.0
        %844 = vmatpush1.msra.mxu0 0.0
        %845 = vmatprep.subr.mxu0 0.0
        %846 = vmatpush1.msra.mxu0 0.0
        %847 = vmatprep.subr.mxu0 0.0
        %848 = vmatpush1.msra.mxu0 0.0
        %849 = vmatprep.subr.mxu0 0.0
        %850 = vmatpush1.msra.mxu0 0.0
        %851 = vmatprep.mubr.f32.mxu0 0.0
        %v852 = vand.u32 %v412, 4294901760
        %853 = vmatmul.mubr.f32.gmra.mrb[0].mxu0 %v852
        %v854 = vpop.f32.mrb[0].mxu0
        %v855 = vadd.f32 %v764, %v854
        %v856 = vpop.f32.mrb[0].mxu0
        %857 = vmatprep.mubr.f32.mxu0 0.0
        %v858 = vand.u32 %v415, 4294901760
        %859 = vmatmul.mubr.f32.gmra.mrb[0].mxu0 %v858
        %v860 = vpop.f32.mrb[0].mxu0
        %v861 = vadd.f32 %v772, %v860
        %v862 = vpop.f32.mrb[0].mxu0
        %863 = vdwg.mxu0
        %864 = vmatprep.subr.mxu0 0.0
        %v865 = vand.u32 %v399, 4294901760
        %866 = vmatpush1.msra.mxu0 %v865
        %867 = vmatprep.subr.mxu0 0.0
        %v868 = vand.u32 %v400, 4294901760
        %869 = vmatpush1.msra.mxu0 %v868
        %870 = vmatprep.subr.mxu0 0.0
        %v871 = vand.u32 %v401, 4294901760
        %872 = vmatpush1.msra.mxu0 %v871
        %873 = vmatprep.subr.mxu0 0.0
        %v874 = vand.u32 %v402, 4294901760
        %875 = vmatpush1.msra.mxu0 %v874
        %876 = vmatprep.subr.mxu0 0.0
        %877 = vmatpush1.msra.mxu0 0.0
        %878 = vmatprep.subr.mxu0 0.0
        %879 = vmatpush1.msra.mxu0 0.0
        %880 = vmatprep.subr.mxu0 0.0
        %881 = vmatpush1.msra.mxu0 0.0
        %882 = vmatprep.subr.mxu0 0.0
        %883 = vmatpush1.msra.mxu0 0.0
        %884 = vmatprep.subr.mxu0 0.0
        %885 = vmatpush1.msra.mxu0 0.0
        %886 = vmatprep.subr.mxu0 0.0
        %887 = vmatpush1.msra.mxu0 0.0
        %888 = vmatprep.subr.mxu0 0.0
        %889 = vmatpush1.msra.mxu0 0.0
        %890 = vmatprep.subr.mxu0 0.0
        %891 = vmatpush1.msra.mxu0 0.0
        %892 = vmatprep.subr.mxu0 0.0
        %893 = vmatpush1.msra.mxu0 0.0
        %894 = vmatprep.subr.mxu0 0.0
        %895 = vmatpush1.msra.mxu0 0.0
        %896 = vmatprep.subr.mxu0 0.0
        %897 = vmatpush1.msra.mxu0 0.0
        %898 = vmatprep.subr.mxu0 0.0
        %899 = vmatpush1.msra.mxu0 0.0
        %900 = vmatprep.subr.mxu0 0.0
        %901 = vmatpush1.msra.mxu0 0.0
        %902 = vmatprep.subr.mxu0 0.0
        %903 = vmatpush1.msra.mxu0 0.0
        %904 = vmatprep.subr.mxu0 0.0
        %905 = vmatpush1.msra.mxu0 0.0
        %906 = vmatprep.subr.mxu0 0.0
        %907 = vmatpush1.msra.mxu0 0.0
        %908 = vmatprep.subr.mxu0 0.0
        %909 = vmatpush1.msra.mxu0 0.0
        %910 = vmatprep.subr.mxu0 0.0
        %911 = vmatpush1.msra.mxu0 0.0
        %912 = vmatprep.subr.mxu0 0.0
        %913 = vmatpush1.msra.mxu0 0.0
        %914 = vmatprep.subr.mxu0 0.0
        %915 = vmatpush1.msra.mxu0 0.0
        %916 = vmatprep.subr.mxu0 0.0
        %917 = vmatpush1.msra.mxu0 0.0
        %918 = vmatprep.subr.mxu0 0.0
        %919 = vmatpush1.msra.mxu0 0.0
        %920 = vmatprep.subr.mxu0 0.0
        %921 = vmatpush1.msra.mxu0 0.0
        %922 = vmatprep.subr.mxu0 0.0
        %923 = vmatpush1.msra.mxu0 0.0
        %924 = vmatprep.subr.mxu0 0.0
        %925 = vmatpush1.msra.mxu0 0.0
        %926 = vmatprep.subr.mxu0 0.0
        %927 = vmatpush1.msra.mxu0 0.0
        %928 = vmatprep.subr.mxu0 0.0
        %929 = vmatpush1.msra.mxu0 0.0
        %930 = vmatprep.subr.mxu0 0.0
        %931 = vmatpush1.msra.mxu0 0.0
        %932 = vmatprep.mubr.f32.mxu0 0.0
        %v933 = vand.u32 %v412, 4294901760
        %934 = vmatmul.mubr.f32.gmra.mrb[0].mxu0 %v933
        %v935 = vpop.f32.mrb[0].mxu0
        %v936 = vadd.f32 %v855, %v935
        %v937 = vpop.f32.mrb[0].mxu0
        %938 = vmatprep.mubr.f32.mxu0 0.0
        %v939 = vand.u32 %v415, 4294901760
        %940 = vmatmul.mubr.f32.gmra.mrb[0].mxu0 %v939
        %v941 = vpop.f32.mrb[0].mxu0
        %v942 = vadd.f32 %v861, %v941
        %v943 = vpop.f32.mrb[0].mxu0
        %944 = vdwg.mxu0
        %v945 = vmul.f32 %v936, 0.5
        %v946 = vmul.f32 %v942, 0.5
        %v947 = vmul.f32 %v936, 0.70710677
        %v948 = vmul.f32 %v942, 0.70710677
        %vm949 = vcmp.ge.f32.partialorder %v947, 0.0
        %vm950 = vcmp.ge.f32.partialorder %v948, 0.0
        %v951 = vsel %vm949, 1.0, -1.0
        %v952 = vsel %vm950, 1.0, -1.0
        %v953 = vand.u32 2147483647, %v947
        %v954 = vand.u32 2147483647, %v948
        %v955 = vmul.f32 %v953, 0.3275911
        %v956 = vmul.f32 %v954, 0.3275911
        %v957 = vadd.f32 %v955, 1.0
        %v958 = vadd.f32 %v956, 1.0
        %v959 = vrcp.pop %v957
        %v960 = vmul.f32 1.0, %v959
        %v961 = vrcp.pop %v958
        %v962 = vmul.f32 1.0, %v961
        %v963 = vmul.f32 %v960, 1.0614054
        %v964 = vmul.f32 %v962, 1.0614054
        %v965 = vadd.f32 %v963, -1.4531521
        %v966 = vadd.f32 %v964, -1.4531521
        %v967 = vmul.f32 %v965, %v960
        %v968 = vmul.f32 %v966, %v962
        %v969 = vadd.f32 %v967, 1.4214138
        %v970 = vadd.f32 %v968, 1.4214138
        %v971 = vmul.f32 %v969, %v960
        %v972 = vmul.f32 %v970, %v962
        %v973 = vadd.f32 %v971, -0.28449672
        %v974 = vadd.f32 %v972, -0.28449672
        %v975 = vmul.f32 %v973, %v960
        %v976 = vmul.f32 %v974, %v962
        %v977 = vadd.f32 %v975, 0.2548296
        %v978 = vadd.f32 %v976, 0.2548296
        %v979 = vmul.f32 %v977, %v960
        %v980 = vmul.f32 %v978, %v962
        %v981 = vsub.f32 0.0, %v953
        %v982 = vsub.f32 0.0, %v954
        %v983 = vmul.f32 %v981, %v953
        %v984 = vmul.f32 %v982, %v954
        %v985 = vmul.f32 %v983, 1.442695
        %v986 = vpow.pop %v985
        %v987 = vmul.f32 %v984, 1.442695
        %v988 = vpow.pop %v987
        %v989 = vmul.f32 %v979, %v986
        %v990 = vmul.f32 %v980, %v988
        %v991 = vsub.f32 1.0, %v989
        %v992 = vsub.f32 1.0, %v990
        %v993 = vmul.f32 %v951, %v991
        %v994 = vmul.f32 %v952, %v992
        %v995 = vadd.f32 %v993, 1.0
        %v996 = vadd.f32 %v994, 1.0
        %v997 = vmul.f32 %v945, %v995
        %v998 = vmul.f32 %v946, %v996
        %v999 = vld [vmem:[#allocation7] sm:$0xff]
        %v1000 = vld [vmem:[#allocation7 + $0x8] sm:$0xff]
        %v1001 = vld [vmem:[#allocation7 + $0x10] sm:$0xff]
        %v1002 = vld [vmem:[#allocation7 + $0x18] sm:$0xff]
        %v1003 = vld [vmem:[#allocation7 + $0x20] sm:$0xff]
        %v1004 = vld [vmem:[#allocation7 + $0x28] sm:$0xff]
        %v1005 = vld [vmem:[#allocation7 + $0x30] sm:$0xff]
        %v1006 = vld [vmem:[#allocation7 + $0x38] sm:$0xff]
        %v1007 = vld [vmem:[#allocation7 + $0x40] sm:$0xff]
        %v1008 = vld [vmem:[#allocation7 + $0x48] sm:$0xff]
        %v1009 = vld [vmem:[#allocation7 + $0x50] sm:$0xff]
        %v1010 = vld [vmem:[#allocation7 + $0x58] sm:$0xff]
        %v1011 = vld [vmem:[%s4] sm:$0x1]
        %v1013 = vlaneseq
        %v1014 = vshrl.u32 %v1013, 7
        %v1015 = vsub.s32 0, %v1014
        %v1016 = vrot.slane %v1011, %v1015
        %vm1018 = vcmask 785408
        %v1020 = vsel %vm1018, %v997, 0
        %v1023 = vsel %vm1018, %v998, 0
        %1025 = vmatprep.subr.mxu0 0.0
        %v1026 = vand.u32 %v999, 4294901760
        %1027 = vmatpush1.msra.mxu0 %v1026
        %1028 = vmatprep.subr.mxu0 0.0
        %v1029 = vand.u32 %v1000, 4294901760
        %1030 = vmatpush1.msra.mxu0 %v1029
        %1031 = vmatprep.subr.mxu0 0.0
        %v1032 = vand.u32 %v1001, 4294901760
        %1033 = vmatpush1.msra.mxu0 %v1032
        %1034 = vmatprep.subr.mxu0 0.0
        %v1035 = vand.u32 %v1002, 4294901760
        %1036 = vmatpush1.msra.mxu0 %v1035
        %1037 = vmatprep.subr.mxu0 0.0
        %v1038 = vand.u32 %v1003, 4294901760
        %1039 = vmatpush1.msra.mxu0 %v1038
        %1040 = vmatprep.subr.mxu0 0.0
        %v1041 = vand.u32 %v1004, 4294901760
        %1042 = vmatpush1.msra.mxu0 %v1041
        %1043 = vmatprep.subr.mxu0 0.0
        %v1044 = vand.u32 %v1005, 4294901760
        %1045 = vmatpush1.msra.mxu0 %v1044
        %1046 = vmatprep.subr.mxu0 0.0
        %v1047 = vand.u32 %v1006, 4294901760
        %1048 = vmatpush1.msra.mxu0 %v1047
        %1049 = vmatprep.subr.mxu0 0.0
        %v1050 = vand.u32 %v1007, 4294901760
        %1051 = vmatpush1.msra.mxu0 %v1050
        %1052 = vmatprep.subr.mxu0 0.0
        %v1053 = vand.u32 %v1008, 4294901760
        %1054 = vmatpush1.msra.mxu0 %v1053
        %1055 = vmatprep.subr.mxu0 0.0
        %v1056 = vand.u32 %v1009, 4294901760
        %1057 = vmatpush1.msra.mxu0 %v1056
        %1058 = vmatprep.subr.mxu0 0.0
        %v1059 = vand.u32 %v1010, 4294901760
        %1060 = vmatpush1.msra.mxu0 %v1059
        %1061 = vmatprep.subr.mxu0 0.0
        %1062 = vmatpush1.msra.mxu0 0.0
        %1063 = vmatprep.subr.mxu0 0.0
        %1064 = vmatpush1.msra.mxu0 0.0
        %1065 = vmatprep.subr.mxu0 0.0
        %1066 = vmatpush1.msra.mxu0 0.0
        %1067 = vmatprep.subr.mxu0 0.0
        %1068 = vmatpush1.msra.mxu0 0.0
        %1069 = vmatprep.subr.mxu0 0.0
        %1070 = vmatpush1.msra.mxu0 0.0
        %1071 = vmatprep.subr.mxu0 0.0
        %1072 = vmatpush1.msra.mxu0 0.0
        %1073 = vmatprep.subr.mxu0 0.0
        %1074 = vmatpush1.msra.mxu0 0.0
        %1075 = vmatprep.subr.mxu0 0.0
        %1076 = vmatpush1.msra.mxu0 0.0
        %1077 = vmatprep.subr.mxu0 0.0
        %1078 = vmatpush1.msra.mxu0 0.0
        %1079 = vmatprep.subr.mxu0 0.0
        %1080 = vmatpush1.msra.mxu0 0.0
        %1081 = vmatprep.subr.mxu0 0.0
        %1082 = vmatpush1.msra.mxu0 0.0
        %1083 = vmatprep.subr.mxu0 0.0
        %1084 = vmatpush1.msra.mxu0 0.0
        %1085 = vmatprep.subr.mxu0 0.0
        %1086 = vmatpush1.msra.mxu0 0.0
        %1087 = vmatprep.subr.mxu0 0.0
        %1088 = vmatpush1.msra.mxu0 0.0
        %1089 = vmatprep.subr.mxu0 0.0
        %1090 = vmatpush1.msra.mxu0 0.0
        %1091 = vmatprep.subr.mxu0 0.0
        %1092 = vmatpush1.msra.mxu0 0.0
        %1093 = vmatprep.subr.mxu0 0.0
        %1094 = vmatpush1.msra.mxu0 0.0
        %1095 = vmatprep.subr.mxu0 0.0
        %1096 = vmatpush1.msra.mxu0 0.0
        %1097 = vmatprep.subr.mxu0 0.0
        %1098 = vmatpush1.msra.mxu0 0.0
        %1099 = vmatprep.subr.mxu0 0.0
        %1100 = vmatpush1.msra.mxu0 0.0
        %1101 = vmatprep.mubr.f32.mxu0 0.0
        %v1102 = vand.u32 %v1020, 4294901760
        %v1103 = vsub.f32 %v1020, %v1102
        %v1104 = vand.u32 %v1103, 4294901760
        %v1105 = vsub.f32 %v1103, %v1104
        %v1106 = vand.u32 %v1105, 4294901760
        %1107 = vmatmul.mubr.f32.gmra.mrb[0].mxu0 %v1106
        %v1108 = vpop.f32.mrb[0].mxu0
        %v1109 = vadd.f32 %v1016, %v1108
        %v1110 = vpop.f32.mrb[0].mxu0
        %1111 = vmatprep.mubr.f32.mxu0 0.0
        %v1112 = vand.u32 %v1023, 4294901760
        %v1113 = vsub.f32 %v1023, %v1112
        %v1114 = vand.u32 %v1113, 4294901760
        %v1115 = vsub.f32 %v1113, %v1114
        %v1116 = vand.u32 %v1115, 4294901760
        %1117 = vmatmul.mubr.f32.gmra.mrb[0].mxu0 %v1116
        %v1118 = vpop.f32.mrb[0].mxu0
        %v1119 = vadd.f32 %v1016, %v1118
        %v1120 = vpop.f32.mrb[0].mxu0
        %1121 = vdwg.mxu0
        %1122 = vmatprep.subr.mxu0 0.0
        %v1123 = vand.u32 %v999, 4294901760
        %v1124 = vsub.f32 %v999, %v1123
        %v1125 = vand.u32 %v1124, 4294901760
        %v1126 = vsub.f32 %v1124, %v1125
        %v1127 = vand.u32 %v1126, 4294901760
        %1128 = vmatpush1.msra.mxu0 %v1127
        %1129 = vmatprep.subr.mxu0 0.0
        %v1130 = vand.u32 %v1000, 4294901760
        %v1131 = vsub.f32 %v1000, %v1130
        %v1132 = vand.u32 %v1131, 4294901760
        %v1133 = vsub.f32 %v1131, %v1132
        %v1134 = vand.u32 %v1133, 4294901760
        %1135 = vmatpush1.msra.mxu0 %v1134
        %1136 = vmatprep.subr.mxu0 0.0
        %v1137 = vand.u32 %v1001, 4294901760
        %v1138 = vsub.f32 %v1001, %v1137
        %v1139 = vand.u32 %v1138, 4294901760
        %v1140 = vsub.f32 %v1138, %v1139
        %v1141 = vand.u32 %v1140, 4294901760
        %1142 = vmatpush1.msra.mxu0 %v1141
        %1143 = vmatprep.subr.mxu0 0.0
        %v1144 = vand.u32 %v1002, 4294901760
        %v1145 = vsub.f32 %v1002, %v1144
        %v1146 = vand.u32 %v1145, 4294901760
        %v1147 = vsub.f32 %v1145, %v1146
        %v1148 = vand.u32 %v1147, 4294901760
        %1149 = vmatpush1.msra.mxu0 %v1148
        %1150 = vmatprep.subr.mxu0 0.0
        %v1151 = vand.u32 %v1003, 4294901760
        %v1152 = vsub.f32 %v1003, %v1151
        %v1153 = vand.u32 %v1152, 4294901760
        %v1154 = vsub.f32 %v1152, %v1153
        %v1155 = vand.u32 %v1154, 4294901760
        %1156 = vmatpush1.msra.mxu0 %v1155
        %1157 = vmatprep.subr.mxu0 0.0
        %v1158 = vand.u32 %v1004, 4294901760
        %v1159 = vsub.f32 %v1004, %v1158
        %v1160 = vand.u32 %v1159, 4294901760
        %v1161 = vsub.f32 %v1159, %v1160
        %v1162 = vand.u32 %v1161, 4294901760
        %1163 = vmatpush1.msra.mxu0 %v1162
        %1164 = vmatprep.subr.mxu0 0.0
        %v1165 = vand.u32 %v1005, 4294901760
        %v1166 = vsub.f32 %v1005, %v1165
        %v1167 = vand.u32 %v1166, 4294901760
        %v1168 = vsub.f32 %v1166, %v1167
        %v1169 = vand.u32 %v1168, 4294901760
        %1170 = vmatpush1.msra.mxu0 %v1169
        %1171 = vmatprep.subr.mxu0 0.0
        %v1172 = vand.u32 %v1006, 4294901760
        %v1173 = vsub.f32 %v1006, %v1172
        %v1174 = vand.u32 %v1173, 4294901760
        %v1175 = vsub.f32 %v1173, %v1174
        %v1176 = vand.u32 %v1175, 4294901760
        %1177 = vmatpush1.msra.mxu0 %v1176
        %1178 = vmatprep.subr.mxu0 0.0
        %v1179 = vand.u32 %v1007, 4294901760
        %v1180 = vsub.f32 %v1007, %v1179
        %v1181 = vand.u32 %v1180, 4294901760
        %v1182 = vsub.f32 %v1180, %v1181
        %v1183 = vand.u32 %v1182, 4294901760
        %1184 = vmatpush1.msra.mxu0 %v1183
        %1185 = vmatprep.subr.mxu0 0.0
        %v1186 = vand.u32 %v1008, 4294901760
        %v1187 = vsub.f32 %v1008, %v1186
        %v1188 = vand.u32 %v1187, 4294901760
        %v1189 = vsub.f32 %v1187, %v1188
        %v1190 = vand.u32 %v1189, 4294901760
        %1191 = vmatpush1.msra.mxu0 %v1190
        %1192 = vmatprep.subr.mxu0 0.0
        %v1193 = vand.u32 %v1009, 4294901760
        %v1194 = vsub.f32 %v1009, %v1193
        %v1195 = vand.u32 %v1194, 4294901760
        %v1196 = vsub.f32 %v1194, %v1195
        %v1197 = vand.u32 %v1196, 4294901760
        %1198 = vmatpush1.msra.mxu0 %v1197
        %1199 = vmatprep.subr.mxu0 0.0
        %v1200 = vand.u32 %v1010, 4294901760
        %v1201 = vsub.f32 %v1010, %v1200
        %v1202 = vand.u32 %v1201, 4294901760
        %v1203 = vsub.f32 %v1201, %v1202
        %v1204 = vand.u32 %v1203, 4294901760
        %1205 = vmatpush1.msra.mxu0 %v1204
        %1206 = vmatprep.subr.mxu0 0.0
        %1207 = vmatpush1.msra.mxu0 0.0
        %1208 = vmatprep.subr.mxu0 0.0
        %1209 = vmatpush1.msra.mxu0 0.0
        %1210 = vmatprep.subr.mxu0 0.0
        %1211 = vmatpush1.msra.mxu0 0.0
        %1212 = vmatprep.subr.mxu0 0.0
        %1213 = vmatpush1.msra.mxu0 0.0
        %1214 = vmatprep.subr.mxu0 0.0
        %1215 = vmatpush1.msra.mxu0 0.0
        %1216 = vmatprep.subr.mxu0 0.0
        %1217 = vmatpush1.msra.mxu0 0.0
        %1218 = vmatprep.subr.mxu0 0.0
        %1219 = vmatpush1.msra.mxu0 0.0
        %1220 = vmatprep.subr.mxu0 0.0
        %1221 = vmatpush1.msra.mxu0 0.0
        %1222 = vmatprep.subr.mxu0 0.0
        %1223 = vmatpush1.msra.mxu0 0.0
        %1224 = vmatprep.subr.mxu0 0.0
        %1225 = vmatpush1.msra.mxu0 0.0
        %1226 = vmatprep.subr.mxu0 0.0
        %1227 = vmatpush1.msra.mxu0 0.0
        %1228 = vmatprep.subr.mxu0 0.0
        %1229 = vmatpush1.msra.mxu0 0.0
        %1230 = vmatprep.subr.mxu0 0.0
        %1231 = vmatpush1.msra.mxu0 0.0
        %1232 = vmatprep.subr.mxu0 0.0
        %1233 = vmatpush1.msra.mxu0 0.0
        %1234 = vmatprep.subr.mxu0 0.0
        %1235 = vmatpush1.msra.mxu0 0.0
        %1236 = vmatprep.subr.mxu0 0.0
        %1237 = vmatpush1.msra.mxu0 0.0
        %1238 = vmatprep.subr.mxu0 0.0
        %1239 = vmatpush1.msra.mxu0 0.0
        %1240 = vmatprep.subr.mxu0 0.0
        %1241 = vmatpush1.msra.mxu0 0.0
        %1242 = vmatprep.subr.mxu0 0.0
        %1243 = vmatpush1.msra.mxu0 0.0
        %1244 = vmatprep.subr.mxu0 0.0
        %1245 = vmatpush1.msra.mxu0 0.0
        %1246 = vmatprep.mubr.f32.mxu0 0.0
        %v1247 = vand.u32 %v1020, 4294901760
        %1248 = vmatmul.mubr.f32.gmra.mrb[0].mxu0 %v1247
        %v1249 = vpop.f32.mrb[0].mxu0
        %v1250 = vadd.f32 %v1109, %v1249
        %v1251 = vpop.f32.mrb[0].mxu0
        %1252 = vmatprep.mubr.f32.mxu0 0.0
        %v1253 = vand.u32 %v1023, 4294901760
        %1254 = vmatmul.mubr.f32.gmra.mrb[0].mxu0 %v1253
        %v1255 = vpop.f32.mrb[0].mxu0
        %v1256 = vadd.f32 %v1119, %v1255
        %v1257 = vpop.f32.mrb[0].mxu0
        %1258 = vdwg.mxu0
        %1259 = vmatprep.subr.mxu0 0.0
        %v1260 = vand.u32 %v999, 4294901760
        %v1261 = vsub.f32 %v999, %v1260
        %1262 = vmatpush1.msra.mxu0 %v1261
        %1263 = vmatprep.subr.mxu0 0.0
        %v1264 = vand.u32 %v1000, 4294901760
        %v1265 = vsub.f32 %v1000, %v1264
        %1266 = vmatpush1.msra.mxu0 %v1265
        %1267 = vmatprep.subr.mxu0 0.0
        %v1268 = vand.u32 %v1001, 4294901760
        %v1269 = vsub.f32 %v1001, %v1268
        %1270 = vmatpush1.msra.mxu0 %v1269
        %1271 = vmatprep.subr.mxu0 0.0
        %v1272 = vand.u32 %v1002, 4294901760
        %v1273 = vsub.f32 %v1002, %v1272
        %1274 = vmatpush1.msra.mxu0 %v1273
        %1275 = vmatprep.subr.mxu0 0.0
        %v1276 = vand.u32 %v1003, 4294901760
        %v1277 = vsub.f32 %v1003, %v1276
        %1278 = vmatpush1.msra.mxu0 %v1277
        %1279 = vmatprep.subr.mxu0 0.0
        %v1280 = vand.u32 %v1004, 4294901760
        %v1281 = vsub.f32 %v1004, %v1280
        %1282 = vmatpush1.msra.mxu0 %v1281
        %1283 = vmatprep.subr.mxu0 0.0
        %v1284 = vand.u32 %v1005, 4294901760
        %v1285 = vsub.f32 %v1005, %v1284
        %1286 = vmatpush1.msra.mxu0 %v1285
        %1287 = vmatprep.subr.mxu0 0.0
        %v1288 = vand.u32 %v1006, 4294901760
        %v1289 = vsub.f32 %v1006, %v1288
        %1290 = vmatpush1.msra.mxu0 %v1289
        %1291 = vmatprep.subr.mxu0 0.0
        %v1292 = vand.u32 %v1007, 4294901760
        %v1293 = vsub.f32 %v1007, %v1292
        %1294 = vmatpush1.msra.mxu0 %v1293
        %1295 = vmatprep.subr.mxu0 0.0
        %v1296 = vand.u32 %v1008, 4294901760
        %v1297 = vsub.f32 %v1008, %v1296
        %1298 = vmatpush1.msra.mxu0 %v1297
        %1299 = vmatprep.subr.mxu0 0.0
        %v1300 = vand.u32 %v1009, 4294901760
        %v1301 = vsub.f32 %v1009, %v1300
        %1302 = vmatpush1.msra.mxu0 %v1301
        %1303 = vmatprep.subr.mxu0 0.0
        %v1304 = vand.u32 %v1010, 4294901760
        %v1305 = vsub.f32 %v1010, %v1304
        %1306 = vmatpush1.msra.mxu0 %v1305
        %1307 = vmatprep.subr.mxu0 0.0
        %1308 = vmatpush1.msra.mxu0 0.0
        %1309 = vmatprep.subr.mxu0 0.0
        %1310 = vmatpush1.msra.mxu0 0.0
        %1311 = vmatprep.subr.mxu0 0.0
        %1312 = vmatpush1.msra.mxu0 0.0
        %1313 = vmatprep.subr.mxu0 0.0
        %1314 = vmatpush1.msra.mxu0 0.0
        %1315 = vmatprep.subr.mxu0 0.0
        %1316 = vmatpush1.msra.mxu0 0.0
        %1317 = vmatprep.subr.mxu0 0.0
        %1318 = vmatpush1.msra.mxu0 0.0
        %1319 = vmatprep.subr.mxu0 0.0
        %1320 = vmatpush1.msra.mxu0 0.0
        %1321 = vmatprep.subr.mxu0 0.0
        %1322 = vmatpush1.msra.mxu0 0.0
        %1323 = vmatprep.subr.mxu0 0.0
        %1324 = vmatpush1.msra.mxu0 0.0
        %1325 = vmatprep.subr.mxu0 0.0
        %1326 = vmatpush1.msra.mxu0 0.0
        %1327 = vmatprep.subr.mxu0 0.0
        %1328 = vmatpush1.msra.mxu0 0.0
        %1329 = vmatprep.subr.mxu0 0.0
        %1330 = vmatpush1.msra.mxu0 0.0
        %1331 = vmatprep.subr.mxu0 0.0
        %1332 = vmatpush1.msra.mxu0 0.0
        %1333 = vmatprep.subr.mxu0 0.0
        %1334 = vmatpush1.msra.mxu0 0.0
        %1335 = vmatprep.subr.mxu0 0.0
        %1336 = vmatpush1.msra.mxu0 0.0
        %1337 = vmatprep.subr.mxu0 0.0
        %1338 = vmatpush1.msra.mxu0 0.0
        %1339 = vmatprep.subr.mxu0 0.0
        %1340 = vmatpush1.msra.mxu0 0.0
        %1341 = vmatprep.subr.mxu0 0.0
        %1342 = vmatpush1.msra.mxu0 0.0
        %1343 = vmatprep.subr.mxu0 0.0
        %1344 = vmatpush1.msra.mxu0 0.0
        %1345 = vmatprep.subr.mxu0 0.0
        %1346 = vmatpush1.msra.mxu0 0.0
        %1347 = vmatprep.mubr.f32.mxu0 0.0
        %v1348 = vand.u32 %v1020, 4294901760
        %v1349 = vsub.f32 %v1020, %v1348
        %1350 = vmatmul.mubr.f32.gmra.mrb[0].mxu0 %v1349
        %v1351 = vpop.f32.mrb[0].mxu0
        %v1352 = vadd.f32 %v1250, %v1351
        %v1353 = vpop.f32.mrb[0].mxu0
        %1354 = vmatprep.mubr.f32.mxu0 0.0
        %v1355 = vand.u32 %v1023, 4294901760
        %v1356 = vsub.f32 %v1023, %v1355
        %1357 = vmatmul.mubr.f32.gmra.mrb[0].mxu0 %v1356
        %v1358 = vpop.f32.mrb[0].mxu0
        %v1359 = vadd.f32 %v1256, %v1358
        %v1360 = vpop.f32.mrb[0].mxu0
        %1361 = vdwg.mxu0
        %1362 = vmatprep.subr.mxu0 0.0
        %v1363 = vand.u32 %v999, 4294901760
        %1364 = vmatpush1.msra.mxu0 %v1363
        %1365 = vmatprep.subr.mxu0 0.0
        %v1366 = vand.u32 %v1000, 4294901760
        %1367 = vmatpush1.msra.mxu0 %v1366
        %1368 = vmatprep.subr.mxu0 0.0
        %v1369 = vand.u32 %v1001, 4294901760
        %1370 = vmatpush1.msra.mxu0 %v1369
        %1371 = vmatprep.subr.mxu0 0.0
        %v1372 = vand.u32 %v1002, 4294901760
        %1373 = vmatpush1.msra.mxu0 %v1372
        %1374 = vmatprep.subr.mxu0 0.0
        %v1375 = vand.u32 %v1003, 4294901760
        %1376 = vmatpush1.msra.mxu0 %v1375
        %1377 = vmatprep.subr.mxu0 0.0
        %v1378 = vand.u32 %v1004, 4294901760
        %1379 = vmatpush1.msra.mxu0 %v1378
        %1380 = vmatprep.subr.mxu0 0.0
        %v1381 = vand.u32 %v1005, 4294901760
        %1382 = vmatpush1.msra.mxu0 %v1381
        %1383 = vmatprep.subr.mxu0 0.0
        %v1384 = vand.u32 %v1006, 4294901760
        %1385 = vmatpush1.msra.mxu0 %v1384
        %1386 = vmatprep.subr.mxu0 0.0
        %v1387 = vand.u32 %v1007, 4294901760
        %1388 = vmatpush1.msra.mxu0 %v1387
        %1389 = vmatprep.subr.mxu0 0.0
        %v1390 = vand.u32 %v1008, 4294901760
        %1391 = vmatpush1.msra.mxu0 %v1390
        %1392 = vmatprep.subr.mxu0 0.0
        %v1393 = vand.u32 %v1009, 4294901760
        %1394 = vmatpush1.msra.mxu0 %v1393
        %1395 = vmatprep.subr.mxu0 0.0
        %v1396 = vand.u32 %v1010, 4294901760
        %1397 = vmatpush1.msra.mxu0 %v1396
        %1398 = vmatprep.subr.mxu0 0.0
        %1399 = vmatpush1.msra.mxu0 0.0
        %1400 = vmatprep.subr.mxu0 0.0
        %1401 = vmatpush1.msra.mxu0 0.0
        %1402 = vmatprep.subr.mxu0 0.0
        %1403 = vmatpush1.msra.mxu0 0.0
        %1404 = vmatprep.subr.mxu0 0.0
        %1405 = vmatpush1.msra.mxu0 0.0
        %1406 = vmatprep.subr.mxu0 0.0
        %1407 = vmatpush1.msra.mxu0 0.0
        %1408 = vmatprep.subr.mxu0 0.0
        %1409 = vmatpush1.msra.mxu0 0.0
        %1410 = vmatprep.subr.mxu0 0.0
        %1411 = vmatpush1.msra.mxu0 0.0
        %1412 = vmatprep.subr.mxu0 0.0
        %1413 = vmatpush1.msra.mxu0 0.0
        %1414 = vmatprep.subr.mxu0 0.0
        %1415 = vmatpush1.msra.mxu0 0.0
        %1416 = vmatprep.subr.mxu0 0.0
        %1417 = vmatpush1.msra.mxu0 0.0
        %1418 = vmatprep.subr.mxu0 0.0
        %1419 = vmatpush1.msra.mxu0 0.0
        %1420 = vmatprep.subr.mxu0 0.0
        %1421 = vmatpush1.msra.mxu0 0.0
        %1422 = vmatprep.subr.mxu0 0.0
        %1423 = vmatpush1.msra.mxu0 0.0
        %1424 = vmatprep.subr.mxu0 0.0
        %1425 = vmatpush1.msra.mxu0 0.0
        %1426 = vmatprep.subr.mxu0 0.0
        %1427 = vmatpush1.msra.mxu0 0.0
        %1428 = vmatprep.subr.mxu0 0.0
        %1429 = vmatpush1.msra.mxu0 0.0
        %1430 = vmatprep.subr.mxu0 0.0
        %1431 = vmatpush1.msra.mxu0 0.0
        %1432 = vmatprep.subr.mxu0 0.0
        %1433 = vmatpush1.msra.mxu0 0.0
        %1434 = vmatprep.subr.mxu0 0.0
        %1435 = vmatpush1.msra.mxu0 0.0
        %1436 = vmatprep.subr.mxu0 0.0
        %1437 = vmatpush1.msra.mxu0 0.0
        %1438 = vmatprep.mubr.f32.mxu0 0.0
        %v1439 = vand.u32 %v1020, 4294901760
        %v1440 = vsub.f32 %v1020, %v1439
        %v1441 = vand.u32 %v1440, 4294901760
        %1442 = vmatmul.mubr.f32.gmra.mrb[0].mxu0 %v1441
        %v1443 = vpop.f32.mrb[0].mxu0
        %v1444 = vadd.f32 %v1352, %v1443
        %v1445 = vpop.f32.mrb[0].mxu0
        %1446 = vmatprep.mubr.f32.mxu0 0.0
        %v1447 = vand.u32 %v1023, 4294901760
        %v1448 = vsub.f32 %v1023, %v1447
        %v1449 = vand.u32 %v1448, 4294901760
        %1450 = vmatmul.mubr.f32.gmra.mrb[0].mxu0 %v1449
        %v1451 = vpop.f32.mrb[0].mxu0
        %v1452 = vadd.f32 %v1359, %v1451
        %v1453 = vpop.f32.mrb[0].mxu0
        %1454 = vdwg.mxu0
        %1455 = vmatprep.subr.mxu0 0.0
        %v1456 = vand.u32 %v999, 4294901760
        %v1457 = vsub.f32 %v999, %v1456
        %v1458 = vand.u32 %v1457, 4294901760
        %1459 = vmatpush1.msra.mxu0 %v1458
        %1460 = vmatprep.subr.mxu0 0.0
        %v1461 = vand.u32 %v1000, 4294901760
        %v1462 = vsub.f32 %v1000, %v1461
        %v1463 = vand.u32 %v1462, 4294901760
        %1464 = vmatpush1.msra.mxu0 %v1463
        %1465 = vmatprep.subr.mxu0 0.0
        %v1466 = vand.u32 %v1001, 4294901760
        %v1467 = vsub.f32 %v1001, %v1466
        %v1468 = vand.u32 %v1467, 4294901760
        %1469 = vmatpush1.msra.mxu0 %v1468
        %1470 = vmatprep.subr.mxu0 0.0
        %v1471 = vand.u32 %v1002, 4294901760
        %v1472 = vsub.f32 %v1002, %v1471
        %v1473 = vand.u32 %v1472, 4294901760
        %1474 = vmatpush1.msra.mxu0 %v1473
        %1475 = vmatprep.subr.mxu0 0.0
        %v1476 = vand.u32 %v1003, 4294901760
        %v1477 = vsub.f32 %v1003, %v1476
        %v1478 = vand.u32 %v1477, 4294901760
        %1479 = vmatpush1.msra.mxu0 %v1478
        %1480 = vmatprep.subr.mxu0 0.0
        %v1481 = vand.u32 %v1004, 4294901760
        %v1482 = vsub.f32 %v1004, %v1481
        %v1483 = vand.u32 %v1482, 4294901760
        %1484 = vmatpush1.msra.mxu0 %v1483
        %1485 = vmatprep.subr.mxu0 0.0
        %v1486 = vand.u32 %v1005, 4294901760
        %v1487 = vsub.f32 %v1005, %v1486
        %v1488 = vand.u32 %v1487, 4294901760
        %1489 = vmatpush1.msra.mxu0 %v1488
        %1490 = vmatprep.subr.mxu0 0.0
        %v1491 = vand.u32 %v1006, 4294901760
        %v1492 = vsub.f32 %v1006, %v1491
        %v1493 = vand.u32 %v1492, 4294901760
        %1494 = vmatpush1.msra.mxu0 %v1493
        %1495 = vmatprep.subr.mxu0 0.0
        %v1496 = vand.u32 %v1007, 4294901760
        %v1497 = vsub.f32 %v1007, %v1496
        %v1498 = vand.u32 %v1497, 4294901760
        %1499 = vmatpush1.msra.mxu0 %v1498
        %1500 = vmatprep.subr.mxu0 0.0
        %v1501 = vand.u32 %v1008, 4294901760
        %v1502 = vsub.f32 %v1008, %v1501
        %v1503 = vand.u32 %v1502, 4294901760
        %1504 = vmatpush1.msra.mxu0 %v1503
        %1505 = vmatprep.subr.mxu0 0.0
        %v1506 = vand.u32 %v1009, 4294901760
        %v1507 = vsub.f32 %v1009, %v1506
        %v1508 = vand.u32 %v1507, 4294901760
        %1509 = vmatpush1.msra.mxu0 %v1508
        %1510 = vmatprep.subr.mxu0 0.0
        %v1511 = vand.u32 %v1010, 4294901760
        %v1512 = vsub.f32 %v1010, %v1511
        %v1513 = vand.u32 %v1512, 4294901760
        %1514 = vmatpush1.msra.mxu0 %v1513
        %1515 = vmatprep.subr.mxu0 0.0
        %1516 = vmatpush1.msra.mxu0 0.0
        %1517 = vmatprep.subr.mxu0 0.0
        %1518 = vmatpush1.msra.mxu0 0.0
        %1519 = vmatprep.subr.mxu0 0.0
        %1520 = vmatpush1.msra.mxu0 0.0
        %1521 = vmatprep.subr.mxu0 0.0
        %1522 = vmatpush1.msra.mxu0 0.0
        %1523 = vmatprep.subr.mxu0 0.0
        %1524 = vmatpush1.msra.mxu0 0.0
        %1525 = vmatprep.subr.mxu0 0.0
        %1526 = vmatpush1.msra.mxu0 0.0
        %1527 = vmatprep.subr.mxu0 0.0
        %1528 = vmatpush1.msra.mxu0 0.0
        %1529 = vmatprep.subr.mxu0 0.0
        %1530 = vmatpush1.msra.mxu0 0.0
        %1531 = vmatprep.subr.mxu0 0.0
        %1532 = vmatpush1.msra.mxu0 0.0
        %1533 = vmatprep.subr.mxu0 0.0
        %1534 = vmatpush1.msra.mxu0 0.0
        %1535 = vmatprep.subr.mxu0 0.0
        %1536 = vmatpush1.msra.mxu0 0.0
        %1537 = vmatprep.subr.mxu0 0.0
        %1538 = vmatpush1.msra.mxu0 0.0
        %1539 = vmatprep.subr.mxu0 0.0
        %1540 = vmatpush1.msra.mxu0 0.0
        %1541 = vmatprep.subr.mxu0 0.0
        %1542 = vmatpush1.msra.mxu0 0.0
        %1543 = vmatprep.subr.mxu0 0.0
        %1544 = vmatpush1.msra.mxu0 0.0
        %1545 = vmatprep.subr.mxu0 0.0
        %1546 = vmatpush1.msra.mxu0 0.0
        %1547 = vmatprep.subr.mxu0 0.0
        %1548 = vmatpush1.msra.mxu0 0.0
        %1549 = vmatprep.subr.mxu0 0.0
        %1550 = vmatpush1.msra.mxu0 0.0
        %1551 = vmatprep.subr.mxu0 0.0
        %1552 = vmatpush1.msra.mxu0 0.0
        %1553 = vmatprep.subr.mxu0 0.0
        %1554 = vmatpush1.msra.mxu0 0.0
        %1555 = vmatprep.mubr.f32.mxu0 0.0
        %v1556 = vand.u32 %v1020, 4294901760
        %1557 = vmatmul.mubr.f32.gmra.mrb[0].mxu0 %v1556
        %v1558 = vpop.f32.mrb[0].mxu0
        %v1559 = vadd.f32 %v1444, %v1558
        %v1560 = vpop.f32.mrb[0].mxu0
        %1561 = vmatprep.mubr.f32.mxu0 0.0
        %v1562 = vand.u32 %v1023, 4294901760
        %1563 = vmatmul.mubr.f32.gmra.mrb[0].mxu0 %v1562
        %v1564 = vpop.f32.mrb[0].mxu0
        %v1565 = vadd.f32 %v1452, %v1564
        %v1566 = vpop.f32.mrb[0].mxu0
        %1567 = vdwg.mxu0
        %1568 = vmatprep.subr.mxu0 0.0
        %v1569 = vand.u32 %v999, 4294901760
        %1570 = vmatpush1.msra.mxu0 %v1569
        %1571 = vmatprep.subr.mxu0 0.0
        %v1572 = vand.u32 %v1000, 4294901760
        %1573 = vmatpush1.msra.mxu0 %v1572
        %1574 = vmatprep.subr.mxu0 0.0
        %v1575 = vand.u32 %v1001, 4294901760
        %1576 = vmatpush1.msra.mxu0 %v1575
        %1577 = vmatprep.subr.mxu0 0.0
        %v1578 = vand.u32 %v1002, 4294901760
        %1579 = vmatpush1.msra.mxu0 %v1578
        %1580 = vmatprep.subr.mxu0 0.0
        %v1581 = vand.u32 %v1003, 4294901760
        %1582 = vmatpush1.msra.mxu0 %v1581
        %1583 = vmatprep.subr.mxu0 0.0
        %v1584 = vand.u32 %v1004, 4294901760
        %1585 = vmatpush1.msra.mxu0 %v1584
        %1586 = vmatprep.subr.mxu0 0.0
        %v1587 = vand.u32 %v1005, 4294901760
        %1588 = vmatpush1.msra.mxu0 %v1587
        %1589 = vmatprep.subr.mxu0 0.0
        %v1590 = vand.u32 %v1006, 4294901760
        %1591 = vmatpush1.msra.mxu0 %v1590
        %1592 = vmatprep.subr.mxu0 0.0
        %v1593 = vand.u32 %v1007, 4294901760
        %1594 = vmatpush1.msra.mxu0 %v1593
        %1595 = vmatprep.subr.mxu0 0.0
        %v1596 = vand.u32 %v1008, 4294901760
        %1597 = vmatpush1.msra.mxu0 %v1596
        %1598 = vmatprep.subr.mxu0 0.0
        %v1599 = vand.u32 %v1009, 4294901760
        %1600 = vmatpush1.msra.mxu0 %v1599
        %1601 = vmatprep.subr.mxu0 0.0
        %v1602 = vand.u32 %v1010, 4294901760
        %1603 = vmatpush1.msra.mxu0 %v1602
        %1604 = vmatprep.subr.mxu0 0.0
        %1605 = vmatpush1.msra.mxu0 0.0
        %1606 = vmatprep.subr.mxu0 0.0
        %1607 = vmatpush1.msra.mxu0 0.0
        %1608 = vmatprep.subr.mxu0 0.0
        %1609 = vmatpush1.msra.mxu0 0.0
        %1610 = vmatprep.subr.mxu0 0.0
        %1611 = vmatpush1.msra.mxu0 0.0
        %1612 = vmatprep.subr.mxu0 0.0
        %1613 = vmatpush1.msra.mxu0 0.0
        %1614 = vmatprep.subr.mxu0 0.0
        %1615 = vmatpush1.msra.mxu0 0.0
        %1616 = vmatprep.subr.mxu0 0.0
        %1617 = vmatpush1.msra.mxu0 0.0
        %1618 = vmatprep.subr.mxu0 0.0
        %1619 = vmatpush1.msra.mxu0 0.0
        %1620 = vmatprep.subr.mxu0 0.0
        %1621 = vmatpush1.msra.mxu0 0.0
        %1622 = vmatprep.subr.mxu0 0.0
        %1623 = vmatpush1.msra.mxu0 0.0
        %1624 = vmatprep.subr.mxu0 0.0
        %1625 = vmatpush1.msra.mxu0 0.0
        %1626 = vmatprep.subr.mxu0 0.0
        %1627 = vmatpush1.msra.mxu0 0.0
        %1628 = vmatprep.subr.mxu0 0.0
        %1629 = vmatpush1.msra.mxu0 0.0
        %1630 = vmatprep.subr.mxu0 0.0
        %1631 = vmatpush1.msra.mxu0 0.0
        %1632 = vmatprep.subr.mxu0 0.0
        %1633 = vmatpush1.msra.mxu0 0.0
        %1634 = vmatprep.subr.mxu0 0.0
        %1635 = vmatpush1.msra.mxu0 0.0
        %1636 = vmatprep.subr.mxu0 0.0
        %1637 = vmatpush1.msra.mxu0 0.0
        %1638 = vmatprep.subr.mxu0 0.0
        %1639 = vmatpush1.msra.mxu0 0.0
        %1640 = vmatprep.subr.mxu0 0.0
        %1641 = vmatpush1.msra.mxu0 0.0
        %1642 = vmatprep.subr.mxu0 0.0
        %1643 = vmatpush1.msra.mxu0 0.0
        %1644 = vmatprep.mubr.f32.mxu0 0.0
        %v1645 = vand.u32 %v1020, 4294901760
        %1646 = vmatmul.mubr.f32.gmra.mrb[0].mxu0 %v1645
        %v1647 = vpop.f32.mrb[0].mxu0
        %v1648 = vadd.f32 %v1559, %v1647
        %v1649 = vpop.f32.mrb[0].mxu0
        %1650 = vmatprep.mubr.f32.mxu0 0.0
        %v1651 = vand.u32 %v1023, 4294901760
        %1652 = vmatmul.mubr.f32.gmra.mrb[0].mxu0 %v1651
        %v1653 = vpop.f32.mrb[0].mxu0
        %v1654 = vadd.f32 %v1565, %v1653
        %v1655 = vpop.f32.mrb[0].mxu0
        %1656 = vdwg.mxu0
        %1659 = vrot.lane.b32.xlu0 %v1648, 96
        %v1660 = vpop.permute.xlu0 %1659
        %1661 = vrot.lane.b32.xlu0 %v1654, 96
        %v1662 = vpop.permute.xlu0 %1661
        %vm1663 = vcmask 130048
        %v1664 = vsel %vm1663, %v1648, 0
        %v1666 = vsel %vm1663, %v1654, 0
        %v1668 = vsel %vm1663, %v1660, 0
        %v1670 = vsel %vm1663, %v1662, 0
        %1672 = vmatprep.subr.mxu0 0.0
        %v1673 = vand.u32 %v1668, 4294901760
        %1674 = vmatpush1.xpose.msra.mxu0 %v1673
        %1675 = vmatprep.subr.mxu0 0.0
        %v1676 = vand.u32 %v1670, 4294901760
        %1677 = vmatpush1.xpose.msra.mxu0 %v1676
        %1678 = vmatprep.subr.mxu0 0.0
        %1679 = vmatpush1.xpose.msra.mxu0 0.0
        %1680 = vmatprep.subr.mxu0 0.0
        %1681 = vmatpush1.xpose.msra.mxu0 0.0
        %1682 = vmatprep.subr.mxu0 0.0
        %1683 = vmatpush1.xpose.msra.mxu0 0.0
        %1684 = vmatprep.subr.mxu0 0.0
        %1685 = vmatpush1.xpose.msra.mxu0 0.0
        %1686 = vmatprep.subr.mxu0 0.0
        %1687 = vmatpush1.xpose.msra.mxu0 0.0
        %1688 = vmatprep.subr.mxu0 0.0
        %1689 = vmatpush1.xpose.msra.mxu0 0.0
        %1690 = vmatprep.subr.mxu0 0.0
        %1691 = vmatpush1.xpose.msra.mxu0 0.0
        %1692 = vmatprep.subr.mxu0 0.0
        %1693 = vmatpush1.xpose.msra.mxu0 0.0
        %1694 = vmatprep.subr.mxu0 0.0
        %1695 = vmatpush1.xpose.msra.mxu0 0.0
        %1696 = vmatprep.subr.mxu0 0.0
        %1697 = vmatpush1.xpose.msra.mxu0 0.0
        %1698 = vmatprep.subr.mxu0 0.0
        %1699 = vmatpush1.xpose.msra.mxu0 0.0
        %1700 = vmatprep.subr.mxu0 0.0
        %1701 = vmatpush1.xpose.msra.mxu0 0.0
        %1702 = vmatprep.subr.mxu0 0.0
        %1703 = vmatpush1.xpose.msra.mxu0 0.0
        %1704 = vmatprep.subr.mxu0 0.0
        %1705 = vmatpush1.xpose.msra.mxu0 0.0
        %1706 = vmatprep.subr.mxu0 0.0
        %1707 = vmatpush1.xpose.msra.mxu0 0.0
        %1708 = vmatprep.subr.mxu0 0.0
        %1709 = vmatpush1.xpose.msra.mxu0 0.0
        %1710 = vmatprep.subr.mxu0 0.0
        %1711 = vmatpush1.xpose.msra.mxu0 0.0
        %1712 = vmatprep.subr.mxu0 0.0
        %1713 = vmatpush1.xpose.msra.mxu0 0.0
        %1714 = vmatprep.subr.mxu0 0.0
        %1715 = vmatpush1.xpose.msra.mxu0 0.0
        %1716 = vmatprep.subr.mxu0 0.0
        %1717 = vmatpush1.xpose.msra.mxu0 0.0
        %1718 = vmatprep.subr.mxu0 0.0
        %1719 = vmatpush1.xpose.msra.mxu0 0.0
        %1720 = vmatprep.subr.mxu0 0.0
        %1721 = vmatpush1.xpose.msra.mxu0 0.0
        %1722 = vmatprep.subr.mxu0 0.0
        %1723 = vmatpush1.xpose.msra.mxu0 0.0
        %1724 = vmatprep.subr.mxu0 0.0
        %1725 = vmatpush1.xpose.msra.mxu0 0.0
        %1726 = vmatprep.subr.mxu0 0.0
        %1727 = vmatpush1.xpose.msra.mxu0 0.0
        %1728 = vmatprep.subr.mxu0 0.0
        %1729 = vmatpush1.xpose.msra.mxu0 0.0
        %1730 = vmatprep.subr.mxu0 0.0
        %1731 = vmatpush1.xpose.msra.mxu0 0.0
        %1732 = vmatprep.subr.mxu0 0.0
        %1733 = vmatpush1.xpose.msra.mxu0 0.0
        %1734 = vmatprep.subr.mxu0 0.0
        %1735 = vmatpush1.xpose.msra.mxu0 0.0
        %1736 = vmatprep.subr.mxu0 0.0
        %1737 = vmatpush1.xpose.msra.mxu0 0.0
        %1738 = vmatprep.mubr.f32.mxu0 0.0
        %v1739 = vand.u32 %v1664, 4294901760
        %v1740 = vsub.f32 %v1664, %v1739
        %v1741 = vand.u32 %v1740, 4294901760
        %v1742 = vsub.f32 %v1740, %v1741
        %v1743 = vand.u32 %v1742, 4294901760
        %1744 = vmatmul.mubr.f32.gmra.mrb[0].mxu0 %v1743
        %v1745 = vpop.f32.mrb[0].mxu0
        %v1746 = vadd.f32 0.0, %v1745
        %v1747 = vpop.f32.mrb[0].mxu0
        %1748 = vmatprep.mubr.f32.mxu0 0.0
        %v1749 = vand.u32 %v1666, 4294901760
        %v1750 = vsub.f32 %v1666, %v1749
        %v1751 = vand.u32 %v1750, 4294901760
        %v1752 = vsub.f32 %v1750, %v1751
        %v1753 = vand.u32 %v1752, 4294901760
        %1754 = vmatmul.mubr.f32.gmra.mrb[0].mxu0 %v1753
        %v1755 = vpop.f32.mrb[0].mxu0
        %v1756 = vadd.f32 0.0, %v1755
        %v1757 = vpop.f32.mrb[0].mxu0
        %1758 = vdwg.mxu0
        %1759 = vmatprep.subr.mxu0 0.0
        %v1760 = vand.u32 %v1668, 4294901760
        %v1761 = vsub.f32 %v1668, %v1760
        %v1762 = vand.u32 %v1761, 4294901760
        %v1763 = vsub.f32 %v1761, %v1762
        %v1764 = vand.u32 %v1763, 4294901760
        %1765 = vmatpush1.xpose.msra.mxu0 %v1764
        %1766 = vmatprep.subr.mxu0 0.0
        %v1767 = vand.u32 %v1670, 4294901760
        %v1768 = vsub.f32 %v1670, %v1767
        %v1769 = vand.u32 %v1768, 4294901760
        %v1770 = vsub.f32 %v1768, %v1769
        %v1771 = vand.u32 %v1770, 4294901760
        %1772 = vmatpush1.xpose.msra.mxu0 %v1771
        %1773 = vmatprep.subr.mxu0 0.0
        %1774 = vmatpush1.xpose.msra.mxu0 0.0
        %1775 = vmatprep.subr.mxu0 0.0
        %1776 = vmatpush1.xpose.msra.mxu0 0.0
        %1777 = vmatprep.subr.mxu0 0.0
        %1778 = vmatpush1.xpose.msra.mxu0 0.0
        %1779 = vmatprep.subr.mxu0 0.0
        %1780 = vmatpush1.xpose.msra.mxu0 0.0
        %1781 = vmatprep.subr.mxu0 0.0
        %1782 = vmatpush1.xpose.msra.mxu0 0.0
        %1783 = vmatprep.subr.mxu0 0.0
        %1784 = vmatpush1.xpose.msra.mxu0 0.0
        %1785 = vmatprep.subr.mxu0 0.0
        %1786 = vmatpush1.xpose.msra.mxu0 0.0
        %1787 = vmatprep.subr.mxu0 0.0
        %1788 = vmatpush1.xpose.msra.mxu0 0.0
        %1789 = vmatprep.subr.mxu0 0.0
        %1790 = vmatpush1.xpose.msra.mxu0 0.0
        %1791 = vmatprep.subr.mxu0 0.0
        %1792 = vmatpush1.xpose.msra.mxu0 0.0
        %1793 = vmatprep.subr.mxu0 0.0
        %1794 = vmatpush1.xpose.msra.mxu0 0.0
        %1795 = vmatprep.subr.mxu0 0.0
        %1796 = vmatpush1.xpose.msra.mxu0 0.0
        %1797 = vmatprep.subr.mxu0 0.0
        %1798 = vmatpush1.xpose.msra.mxu0 0.0
        %1799 = vmatprep.subr.mxu0 0.0
        %1800 = vmatpush1.xpose.msra.mxu0 0.0
        %1801 = vmatprep.subr.mxu0 0.0
        %1802 = vmatpush1.xpose.msra.mxu0 0.0
        %1803 = vmatprep.subr.mxu0 0.0
        %1804 = vmatpush1.xpose.msra.mxu0 0.0
        %1805 = vmatprep.subr.mxu0 0.0
        %1806 = vmatpush1.xpose.msra.mxu0 0.0
        %1807 = vmatprep.subr.mxu0 0.0
        %1808 = vmatpush1.xpose.msra.mxu0 0.0
        %1809 = vmatprep.subr.mxu0 0.0
        %1810 = vmatpush1.xpose.msra.mxu0 0.0
        %1811 = vmatprep.subr.mxu0 0.0
        %1812 = vmatpush1.xpose.msra.mxu0 0.0
        %1813 = vmatprep.subr.mxu0 0.0
        %1814 = vmatpush1.xpose.msra.mxu0 0.0
        %1815 = vmatprep.subr.mxu0 0.0
        %1816 = vmatpush1.xpose.msra.mxu0 0.0
        %1817 = vmatprep.subr.mxu0 0.0
        %1818 = vmatpush1.xpose.msra.mxu0 0.0
        %1819 = vmatprep.subr.mxu0 0.0
        %1820 = vmatpush1.xpose.msra.mxu0 0.0
        %1821 = vmatprep.subr.mxu0 0.0
        %1822 = vmatpush1.xpose.msra.mxu0 0.0
        %1823 = vmatprep.subr.mxu0 0.0
        %1824 = vmatpush1.xpose.msra.mxu0 0.0
        %1825 = vmatprep.subr.mxu0 0.0
        %1826 = vmatpush1.xpose.msra.mxu0 0.0
        %1827 = vmatprep.subr.mxu0 0.0
        %1828 = vmatpush1.xpose.msra.mxu0 0.0
        %1829 = vmatprep.subr.mxu0 0.0
        %1830 = vmatpush1.xpose.msra.mxu0 0.0
        %1831 = vmatprep.subr.mxu0 0.0
        %1832 = vmatpush1.xpose.msra.mxu0 0.0
        %1833 = vmatprep.mubr.f32.mxu0 0.0
        %v1834 = vand.u32 %v1664, 4294901760
        %1835 = vmatmul.mubr.f32.gmra.mrb[0].mxu0 %v1834
        %v1836 = vpop.f32.mrb[0].mxu0
        %v1837 = vadd.f32 %v1746, %v1836
        %v1838 = vpop.f32.mrb[0].mxu0
        %1839 = vmatprep.mubr.f32.mxu0 0.0
        %v1840 = vand.u32 %v1666, 4294901760
        %1841 = vmatmul.mubr.f32.gmra.mrb[0].mxu0 %v1840
        %v1842 = vpop.f32.mrb[0].mxu0
        %v1843 = vadd.f32 %v1756, %v1842
        %v1844 = vpop.f32.mrb[0].mxu0
        %1845 = vdwg.mxu0
        %1846 = vmatprep.subr.mxu0 0.0
        %v1847 = vand.u32 %v1668, 4294901760
        %v1848 = vsub.f32 %v1668, %v1847
        %1849 = vmatpush1.xpose.msra.mxu0 %v1848
        %1850 = vmatprep.subr.mxu0 0.0
        %v1851 = vand.u32 %v1670, 4294901760
        %v1852 = vsub.f32 %v1670, %v1851
        %1853 = vmatpush1.xpose.msra.mxu0 %v1852
        %1854 = vmatprep.subr.mxu0 0.0
        %1855 = vmatpush1.xpose.msra.mxu0 0.0
        %1856 = vmatprep.subr.mxu0 0.0
        %1857 = vmatpush1.xpose.msra.mxu0 0.0
        %1858 = vmatprep.subr.mxu0 0.0
        %1859 = vmatpush1.xpose.msra.mxu0 0.0
        %1860 = vmatprep.subr.mxu0 0.0
        %1861 = vmatpush1.xpose.msra.mxu0 0.0
        %1862 = vmatprep.subr.mxu0 0.0
        %1863 = vmatpush1.xpose.msra.mxu0 0.0
        %1864 = vmatprep.subr.mxu0 0.0
        %1865 = vmatpush1.xpose.msra.mxu0 0.0
        %1866 = vmatprep.subr.mxu0 0.0
        %1867 = vmatpush1.xpose.msra.mxu0 0.0
        %1868 = vmatprep.subr.mxu0 0.0
        %1869 = vmatpush1.xpose.msra.mxu0 0.0
        %1870 = vmatprep.subr.mxu0 0.0
        %1871 = vmatpush1.xpose.msra.mxu0 0.0
        %1872 = vmatprep.subr.mxu0 0.0
        %1873 = vmatpush1.xpose.msra.mxu0 0.0
        %1874 = vmatprep.subr.mxu0 0.0
        %1875 = vmatpush1.xpose.msra.mxu0 0.0
        %1876 = vmatprep.subr.mxu0 0.0
        %1877 = vmatpush1.xpose.msra.mxu0 0.0
        %1878 = vmatprep.subr.mxu0 0.0
        %1879 = vmatpush1.xpose.msra.mxu0 0.0
        %1880 = vmatprep.subr.mxu0 0.0
        %1881 = vmatpush1.xpose.msra.mxu0 0.0
        %1882 = vmatprep.subr.mxu0 0.0
        %1883 = vmatpush1.xpose.msra.mxu0 0.0
        %1884 = vmatprep.subr.mxu0 0.0
        %1885 = vmatpush1.xpose.msra.mxu0 0.0
        %1886 = vmatprep.subr.mxu0 0.0
        %1887 = vmatpush1.xpose.msra.mxu0 0.0
        %1888 = vmatprep.subr.mxu0 0.0
        %1889 = vmatpush1.xpose.msra.mxu0 0.0
        %1890 = vmatprep.subr.mxu0 0.0
        %1891 = vmatpush1.xpose.msra.mxu0 0.0
        %1892 = vmatprep.subr.mxu0 0.0
        %1893 = vmatpush1.xpose.msra.mxu0 0.0
        %1894 = vmatprep.subr.mxu0 0.0
        %1895 = vmatpush1.xpose.msra.mxu0 0.0
        %1896 = vmatprep.subr.mxu0 0.0
        %1897 = vmatpush1.xpose.msra.mxu0 0.0
        %1898 = vmatprep.subr.mxu0 0.0
        %1899 = vmatpush1.xpose.msra.mxu0 0.0
        %1900 = vmatprep.subr.mxu0 0.0
        %1901 = vmatpush1.xpose.msra.mxu0 0.0
        %1902 = vmatprep.subr.mxu0 0.0
        %1903 = vmatpush1.xpose.msra.mxu0 0.0
        %1904 = vmatprep.subr.mxu0 0.0
        %1905 = vmatpush1.xpose.msra.mxu0 0.0
        %1906 = vmatprep.subr.mxu0 0.0
        %1907 = vmatpush1.xpose.msra.mxu0 0.0
        %1908 = vmatprep.subr.mxu0 0.0
        %1909 = vmatpush1.xpose.msra.mxu0 0.0
        %1910 = vmatprep.subr.mxu0 0.0
        %1911 = vmatpush1.xpose.msra.mxu0 0.0
        %1912 = vmatprep.subr.mxu0 0.0
        %1913 = vmatpush1.xpose.msra.mxu0 0.0
        %1914 = vmatprep.mubr.f32.mxu0 0.0
        %v1915 = vand.u32 %v1664, 4294901760
        %v1916 = vsub.f32 %v1664, %v1915
        %1917 = vmatmul.mubr.f32.gmra.mrb[0].mxu0 %v1916
        %v1918 = vpop.f32.mrb[0].mxu0
        %v1919 = vadd.f32 %v1837, %v1918
        %v1920 = vpop.f32.mrb[0].mxu0
        %1921 = vmatprep.mubr.f32.mxu0 0.0
        %v1922 = vand.u32 %v1666, 4294901760
        %v1923 = vsub.f32 %v1666, %v1922
        %1924 = vmatmul.mubr.f32.gmra.mrb[0].mxu0 %v1923
        %v1925 = vpop.f32.mrb[0].mxu0
        %v1926 = vadd.f32 %v1843, %v1925
        %v1927 = vpop.f32.mrb[0].mxu0
        %1928 = vdwg.mxu0
        %1929 = vmatprep.subr.mxu0 0.0
        %v1930 = vand.u32 %v1668, 4294901760
        %1931 = vmatpush1.xpose.msra.mxu0 %v1930
        %1932 = vmatprep.subr.mxu0 0.0
        %v1933 = vand.u32 %v1670, 4294901760
        %1934 = vmatpush1.xpose.msra.mxu0 %v1933
        %1935 = vmatprep.subr.mxu0 0.0
        %1936 = vmatpush1.xpose.msra.mxu0 0.0
        %1937 = vmatprep.subr.mxu0 0.0
        %1938 = vmatpush1.xpose.msra.mxu0 0.0
        %1939 = vmatprep.subr.mxu0 0.0
        %1940 = vmatpush1.xpose.msra.mxu0 0.0
        %1941 = vmatprep.subr.mxu0 0.0
        %1942 = vmatpush1.xpose.msra.mxu0 0.0
        %1943 = vmatprep.subr.mxu0 0.0
        %1944 = vmatpush1.xpose.msra.mxu0 0.0
        %1945 = vmatprep.subr.mxu0 0.0
        %1946 = vmatpush1.xpose.msra.mxu0 0.0
        %1947 = vmatprep.subr.mxu0 0.0
        %1948 = vmatpush1.xpose.msra.mxu0 0.0
        %1949 = vmatprep.subr.mxu0 0.0
        %1950 = vmatpush1.xpose.msra.mxu0 0.0
        %1951 = vmatprep.subr.mxu0 0.0
        %1952 = vmatpush1.xpose.msra.mxu0 0.0
        %1953 = vmatprep.subr.mxu0 0.0
        %1954 = vmatpush1.xpose.msra.mxu0 0.0
        %1955 = vmatprep.subr.mxu0 0.0
        %1956 = vmatpush1.xpose.msra.mxu0 0.0
        %1957 = vmatprep.subr.mxu0 0.0
        %1958 = vmatpush1.xpose.msra.mxu0 0.0
        %1959 = vmatprep.subr.mxu0 0.0
        %1960 = vmatpush1.xpose.msra.mxu0 0.0
        %1961 = vmatprep.subr.mxu0 0.0
        %1962 = vmatpush1.xpose.msra.mxu0 0.0
        %1963 = vmatprep.subr.mxu0 0.0
        %1964 = vmatpush1.xpose.msra.mxu0 0.0
        %1965 = vmatprep.subr.mxu0 0.0
        %1966 = vmatpush1.xpose.msra.mxu0 0.0
        %1967 = vmatprep.subr.mxu0 0.0
        %1968 = vmatpush1.xpose.msra.mxu0 0.0
        %1969 = vmatprep.subr.mxu0 0.0
        %1970 = vmatpush1.xpose.msra.mxu0 0.0
        %1971 = vmatprep.subr.mxu0 0.0
        %1972 = vmatpush1.xpose.msra.mxu0 0.0
        %1973 = vmatprep.subr.mxu0 0.0
        %1974 = vmatpush1.xpose.msra.mxu0 0.0
        %1975 = vmatprep.subr.mxu0 0.0
        %1976 = vmatpush1.xpose.msra.mxu0 0.0
        %1977 = vmatprep.subr.mxu0 0.0
        %1978 = vmatpush1.xpose.msra.mxu0 0.0
        %1979 = vmatprep.subr.mxu0 0.0
        %1980 = vmatpush1.xpose.msra.mxu0 0.0
        %1981 = vmatprep.subr.mxu0 0.0
        %1982 = vmatpush1.xpose.msra.mxu0 0.0
        %1983 = vmatprep.subr.mxu0 0.0
        %1984 = vmatpush1.xpose.msra.mxu0 0.0
        %1985 = vmatprep.subr.mxu0 0.0
        %1986 = vmatpush1.xpose.msra.mxu0 0.0
        %1987 = vmatprep.subr.mxu0 0.0
        %1988 = vmatpush1.xpose.msra.mxu0 0.0
        %1989 = vmatprep.subr.mxu0 0.0
        %1990 = vmatpush1.xpose.msra.mxu0 0.0
        %1991 = vmatprep.subr.mxu0 0.0
        %1992 = vmatpush1.xpose.msra.mxu0 0.0
        %1993 = vmatprep.subr.mxu0 0.0
        %1994 = vmatpush1.xpose.msra.mxu0 0.0
        %1995 = vmatprep.mubr.f32.mxu0 0.0
        %v1996 = vand.u32 %v1664, 4294901760
        %v1997 = vsub.f32 %v1664, %v1996
        %v1998 = vand.u32 %v1997, 4294901760
        %1999 = vmatmul.mubr.f32.gmra.mrb[0].mxu0 %v1998
        %v2000 = vpop.f32.mrb[0].mxu0
        %v2001 = vadd.f32 %v1919, %v2000
        %v2002 = vpop.f32.mrb[0].mxu0
        %2003 = vmatprep.mubr.f32.mxu0 0.0
        %v2004 = vand.u32 %v1666, 4294901760
        %v2005 = vsub.f32 %v1666, %v2004
        %v2006 = vand.u32 %v2005, 4294901760
        %2007 = vmatmul.mubr.f32.gmra.mrb[0].mxu0 %v2006
        %v2008 = vpop.f32.mrb[0].mxu0
        %v2009 = vadd.f32 %v1926, %v2008
        %v2010 = vpop.f32.mrb[0].mxu0
        %2011 = vdwg.mxu0
        %2012 = vmatprep.subr.mxu0 0.0
        %v2013 = vand.u32 %v1668, 4294901760
        %v2014 = vsub.f32 %v1668, %v2013
        %v2015 = vand.u32 %v2014, 4294901760
        %2016 = vmatpush1.xpose.msra.mxu0 %v2015
        %2017 = vmatprep.subr.mxu0 0.0
        %v2018 = vand.u32 %v1670, 4294901760
        %v2019 = vsub.f32 %v1670, %v2018
        %v2020 = vand.u32 %v2019, 4294901760
        %2021 = vmatpush1.xpose.msra.mxu0 %v2020
        %2022 = vmatprep.subr.mxu0 0.0
        %2023 = vmatpush1.xpose.msra.mxu0 0.0
        %2024 = vmatprep.subr.mxu0 0.0
        %2025 = vmatpush1.xpose.msra.mxu0 0.0
        %2026 = vmatprep.subr.mxu0 0.0
        %2027 = vmatpush1.xpose.msra.mxu0 0.0
        %2028 = vmatprep.subr.mxu0 0.0
        %2029 = vmatpush1.xpose.msra.mxu0 0.0
        %2030 = vmatprep.subr.mxu0 0.0
        %2031 = vmatpush1.xpose.msra.mxu0 0.0
        %2032 = vmatprep.subr.mxu0 0.0
        %2033 = vmatpush1.xpose.msra.mxu0 0.0
        %2034 = vmatprep.subr.mxu0 0.0
        %2035 = vmatpush1.xpose.msra.mxu0 0.0
        %2036 = vmatprep.subr.mxu0 0.0
        %2037 = vmatpush1.xpose.msra.mxu0 0.0
        %2038 = vmatprep.subr.mxu0 0.0
        %2039 = vmatpush1.xpose.msra.mxu0 0.0
        %2040 = vmatprep.subr.mxu0 0.0
        %2041 = vmatpush1.xpose.msra.mxu0 0.0
        %2042 = vmatprep.subr.mxu0 0.0
        %2043 = vmatpush1.xpose.msra.mxu0 0.0
        %2044 = vmatprep.subr.mxu0 0.0
        %2045 = vmatpush1.xpose.msra.mxu0 0.0
        %2046 = vmatprep.subr.mxu0 0.0
        %2047 = vmatpush1.xpose.msra.mxu0 0.0
        %2048 = vmatprep.subr.mxu0 0.0
        %2049 = vmatpush1.xpose.msra.mxu0 0.0
        %2050 = vmatprep.subr.mxu0 0.0
        %2051 = vmatpush1.xpose.msra.mxu0 0.0
        %2052 = vmatprep.subr.mxu0 0.0
        %2053 = vmatpush1.xpose.msra.mxu0 0.0
        %2054 = vmatprep.subr.mxu0 0.0
        %2055 = vmatpush1.xpose.msra.mxu0 0.0
        %2056 = vmatprep.subr.mxu0 0.0
        %2057 = vmatpush1.xpose.msra.mxu0 0.0
        %2058 = vmatprep.subr.mxu0 0.0
        %2059 = vmatpush1.xpose.msra.mxu0 0.0
        %2060 = vmatprep.subr.mxu0 0.0
        %2061 = vmatpush1.xpose.msra.mxu0 0.0
        %2062 = vmatprep.subr.mxu0 0.0
        %2063 = vmatpush1.xpose.msra.mxu0 0.0
        %2064 = vmatprep.subr.mxu0 0.0
        %2065 = vmatpush1.xpose.msra.mxu0 0.0
        %2066 = vmatprep.subr.mxu0 0.0
        %2067 = vmatpush1.xpose.msra.mxu0 0.0
        %2068 = vmatprep.subr.mxu0 0.0
        %2069 = vmatpush1.xpose.msra.mxu0 0.0
        %2070 = vmatprep.subr.mxu0 0.0
        %2071 = vmatpush1.xpose.msra.mxu0 0.0
        %2072 = vmatprep.subr.mxu0 0.0
        %2073 = vmatpush1.xpose.msra.mxu0 0.0
        %2074 = vmatprep.subr.mxu0 0.0
        %2075 = vmatpush1.xpose.msra.mxu0 0.0
        %2076 = vmatprep.subr.mxu0 0.0
        %2077 = vmatpush1.xpose.msra.mxu0 0.0
        %2078 = vmatprep.subr.mxu0 0.0
        %2079 = vmatpush1.xpose.msra.mxu0 0.0
        %2080 = vmatprep.subr.mxu0 0.0
        %2081 = vmatpush1.xpose.msra.mxu0 0.0
        %2082 = vmatprep.mubr.f32.mxu0 0.0
        %v2083 = vand.u32 %v1664, 4294901760
        %2084 = vmatmul.mubr.f32.gmra.mrb[0].mxu0 %v2083
        %v2085 = vpop.f32.mrb[0].mxu0
        %v2086 = vadd.f32 %v2001, %v2085
        %v2087 = vpop.f32.mrb[0].mxu0
        %2088 = vmatprep.mubr.f32.mxu0 0.0
        %v2089 = vand.u32 %v1666, 4294901760
        %2090 = vmatmul.mubr.f32.gmra.mrb[0].mxu0 %v2089
        %v2091 = vpop.f32.mrb[0].mxu0
        %v2092 = vadd.f32 %v2009, %v2091
        %v2093 = vpop.f32.mrb[0].mxu0
        %2094 = vdwg.mxu0
        %2095 = vmatprep.subr.mxu0 0.0
        %v2096 = vand.u32 %v1668, 4294901760
        %2097 = vmatpush1.xpose.msra.mxu0 %v2096
        %2098 = vmatprep.subr.mxu0 0.0
        %v2099 = vand.u32 %v1670, 4294901760
        %2100 = vmatpush1.xpose.msra.mxu0 %v2099
        %2101 = vmatprep.subr.mxu0 0.0
        %2102 = vmatpush1.xpose.msra.mxu0 0.0
        %2103 = vmatprep.subr.mxu0 0.0
        %2104 = vmatpush1.xpose.msra.mxu0 0.0
        %2105 = vmatprep.subr.mxu0 0.0
        %2106 = vmatpush1.xpose.msra.mxu0 0.0
        %2107 = vmatprep.subr.mxu0 0.0
        %2108 = vmatpush1.xpose.msra.mxu0 0.0
        %2109 = vmatprep.subr.mxu0 0.0
        %2110 = vmatpush1.xpose.msra.mxu0 0.0
        %2111 = vmatprep.subr.mxu0 0.0
        %2112 = vmatpush1.xpose.msra.mxu0 0.0
        %2113 = vmatprep.subr.mxu0 0.0
        %2114 = vmatpush1.xpose.msra.mxu0 0.0
        %2115 = vmatprep.subr.mxu0 0.0
        %2116 = vmatpush1.xpose.msra.mxu0 0.0
        %2117 = vmatprep.subr.mxu0 0.0
        %2118 = vmatpush1.xpose.msra.mxu0 0.0
        %2119 = vmatprep.subr.mxu0 0.0
        %2120 = vmatpush1.xpose.msra.mxu0 0.0
        %2121 = vmatprep.subr.mxu0 0.0
        %2122 = vmatpush1.xpose.msra.mxu0 0.0
        %2123 = vmatprep.subr.mxu0 0.0
        %2124 = vmatpush1.xpose.msra.mxu0 0.0
        %2125 = vmatprep.subr.mxu0 0.0
        %2126 = vmatpush1.xpose.msra.mxu0 0.0
        %2127 = vmatprep.subr.mxu0 0.0
        %2128 = vmatpush1.xpose.msra.mxu0 0.0
        %2129 = vmatprep.subr.mxu0 0.0
        %2130 = vmatpush1.xpose.msra.mxu0 0.0
        %2131 = vmatprep.subr.mxu0 0.0
        %2132 = vmatpush1.xpose.msra.mxu0 0.0
        %2133 = vmatprep.subr.mxu0 0.0
        %2134 = vmatpush1.xpose.msra.mxu0 0.0
        %2135 = vmatprep.subr.mxu0 0.0
        %2136 = vmatpush1.xpose.msra.mxu0 0.0
        %2137 = vmatprep.subr.mxu0 0.0
        %2138 = vmatpush1.xpose.msra.mxu0 0.0
        %2139 = vmatprep.subr.mxu0 0.0
        %2140 = vmatpush1.xpose.msra.mxu0 0.0
        %2141 = vmatprep.subr.mxu0 0.0
        %2142 = vmatpush1.xpose.msra.mxu0 0.0
        %2143 = vmatprep.subr.mxu0 0.0
        %2144 = vmatpush1.xpose.msra.mxu0 0.0
        %2145 = vmatprep.subr.mxu0 0.0
        %2146 = vmatpush1.xpose.msra.mxu0 0.0
        %2147 = vmatprep.subr.mxu0 0.0
        %2148 = vmatpush1.xpose.msra.mxu0 0.0
        %2149 = vmatprep.subr.mxu0 0.0
        %2150 = vmatpush1.xpose.msra.mxu0 0.0
        %2151 = vmatprep.subr.mxu0 0.0
        %2152 = vmatpush1.xpose.msra.mxu0 0.0
        %2153 = vmatprep.subr.mxu0 0.0
        %2154 = vmatpush1.xpose.msra.mxu0 0.0
        %2155 = vmatprep.subr.mxu0 0.0
        %2156 = vmatpush1.xpose.msra.mxu0 0.0
        %2157 = vmatprep.subr.mxu0 0.0
        %2158 = vmatpush1.xpose.msra.mxu0 0.0
        %2159 = vmatprep.subr.mxu0 0.0
        %2160 = vmatpush1.xpose.msra.mxu0 0.0
        %2161 = vmatprep.mubr.f32.mxu0 0.0
        %v2162 = vand.u32 %v1664, 4294901760
        %2163 = vmatmul.mubr.f32.gmra.mrb[0].mxu0 %v2162
        %v2164 = vpop.f32.mrb[0].mxu0
        %v2165 = vadd.f32 %v2086, %v2164
        %v2166 = vpop.f32.mrb[0].mxu0
        %2167 = vmatprep.mubr.f32.mxu0 0.0
        %v2168 = vand.u32 %v1666, 4294901760
        %2169 = vmatmul.mubr.f32.gmra.mrb[0].mxu0 %v2168
        %v2170 = vpop.f32.mrb[0].mxu0
        %v2171 = vadd.f32 %v2092, %v2170
        %v2172 = vpop.f32.mrb[0].mxu0
        %2173 = vdwg.mxu0
        %v2174 = vmul.f32 %v2165, 0.25
        %v2175 = vmul.f32 %v2171, 0.25
        %v2176 = vmul.f32 %v2174, %v2174
        %v2177 = vmul.f32 %v2175, %v2175
        %v2178 = vsel %vm1663, %v2176, 0.0
        %2179 = vadd.xlane.f32.xlu0 %v2178
        %v2180 = vpop.xlane.xlu0 %2179
        %v2181 = vsel %vm1663, %v2177, 0.0
        %2182 = vadd.xlane.f32.xlu0 %v2181
        %v2183 = vpop.xlane.xlu0 %2182
        %v2184 = vrsqrt.pop %v2180
        %v2185 = vmul.f32 %v2180, %v2184
        %vm2186 = vcmp.eq.f32.partialorder %v2180, inf
        %v2187 = vsel %vm2186, %v2180, %v2185
        %vm2188 = vcmp.eq.f32.partialorder %v2180, 0.0
        %v2189 = vand.u32 %v2180, 2147483648
        %v2190 = vsel %vm2188, %v2189, %v2187
        %v2191 = vrsqrt.pop %v2183
        %v2192 = vmul.f32 %v2183, %v2191
        %vm2193 = vcmp.eq.f32.partialorder %v2183, inf
        %v2194 = vsel %vm2193, %v2183, %v2192
        %vm2195 = vcmp.eq.f32.partialorder %v2183, 0.0
        %v2196 = vand.u32 %v2183, 2147483648
        %v2197 = vsel %vm2195, %v2196, %v2194
        %v2198 = vadd.f32 %v2190, 1e-12
        %v2199 = vadd.f32 %v2197, 1e-12
        %v2200 = vrcp.pop %v2198
        %v2201 = vmul.f32 %v2174, %v2200
        %v2202 = vrcp.pop %v2199
        %v2203 = vmul.f32 %v2175, %v2202
        %v2204 = vsel %vm1663, %v2201, -inf
        %2205 = vmax.xlane.f32.xlu0 %v2204
        %v2206 = vpop.xlane.xlu0 %2205
        %v2207 = vsel %vm1663, %v2203, -inf
        %2208 = vmax.xlane.f32.xlu0 %v2207
        %v2209 = vpop.xlane.xlu0 %2208
        %v2210 = vsub.f32 %v2201, %v2206
        %v2211 = vsub.f32 %v2203, %v2209
        %v2212 = vmul.f32 %v2210, 1.442695
        %v2213 = vpow.pop %v2212
        %v2214 = vmul.f32 %v2211, 1.442695
        %v2215 = vpow.pop %v2214
        %v2216 = vsel %vm1663, %v2213, 0.0
        %2217 = vadd.xlane.f32.xlu0 %v2216
        %v2218 = vpop.xlane.xlu0 %2217
        %v2219 = vsel %vm1663, %v2215, 0.0
        %2220 = vadd.xlane.f32.xlu0 %v2219
        %v2221 = vpop.xlane.xlu0 %2220
        %v2222 = vrcp.pop %v2218
        %v2223 = vmul.f32 %v2213, %v2222
        %v2224 = vrcp.pop %v2221
        %v2225 = vmul.f32 %v2215, %v2224
        %2226 = vrot.lane.b32.xlu0 %v1648, 64
        %v2227 = vpop.permute.xlu0 %2226
        %2228 = vrot.lane.b32.xlu0 %v1654, 64
        %v2229 = vpop.permute.xlu0 %2228
        %v2233 = vsel %vm1663, %v2223, 0
        %v2236 = vsel %vm1663, %v2225, 0
        %2238 = vmatprep.subr.mxu0 0.0
        %v2239 = vand.u32 %v2227, 4294901760
        %2240 = vmatpush1.msra.mxu0 %v2239
        %2241 = vmatprep.subr.mxu0 0.0
        %v2242 = vand.u32 %v2229, 4294901760
        %2243 = vmatpush1.msra.mxu0 %v2242
        %2244 = vmatprep.subr.mxu0 0.0
        %2245 = vmatpush1.msra.mxu0 0.0
        %2246 = vmatprep.subr.mxu0 0.0
        %2247 = vmatpush1.msra.mxu0 0.0
        %2248 = vmatprep.subr.mxu0 0.0
        %2249 = vmatpush1.msra.mxu0 0.0
        %2250 = vmatprep.subr.mxu0 0.0
        %2251 = vmatpush1.msra.mxu0 0.0
        %2252 = vmatprep.subr.mxu0 0.0
        %2253 = vmatpush1.msra.mxu0 0.0
        %2254 = vmatprep.subr.mxu0 0.0
        %2255 = vmatpush1.msra.mxu0 0.0
        %2256 = vmatprep.subr.mxu0 0.0
        %2257 = vmatpush1.msra.mxu0 0.0
        %2258 = vmatprep.subr.mxu0 0.0
        %2259 = vmatpush1.msra.mxu0 0.0
        %2260 = vmatprep.subr.mxu0 0.0
        %2261 = vmatpush1.msra.mxu0 0.0
        %2262 = vmatprep.subr.mxu0 0.0
        %2263 = vmatpush1.msra.mxu0 0.0
        %2264 = vmatprep.subr.mxu0 0.0
        %2265 = vmatpush1.msra.mxu0 0.0
        %2266 = vmatprep.subr.mxu0 0.0
        %2267 = vmatpush1.msra.mxu0 0.0
        %2268 = vmatprep.subr.mxu0 0.0
        %2269 = vmatpush1.msra.mxu0 0.0
        %2270 = vmatprep.subr.mxu0 0.0
        %2271 = vmatpush1.msra.mxu0 0.0
        %2272 = vmatprep.subr.mxu0 0.0
        %2273 = vmatpush1.msra.mxu0 0.0
        %2274 = vmatprep.subr.mxu0 0.0
        %2275 = vmatpush1.msra.mxu0 0.0
        %2276 = vmatprep.subr.mxu0 0.0
        %2277 = vmatpush1.msra.mxu0 0.0
        %2278 = vmatprep.subr.mxu0 0.0
        %2279 = vmatpush1.msra.mxu0 0.0
        %2280 = vmatprep.subr.mxu0 0.0
        %2281 = vmatpush1.msra.mxu0 0.0
        %2282 = vmatprep.subr.mxu0 0.0
        %2283 = vmatpush1.msra.mxu0 0.0
        %2284 = vmatprep.subr.mxu0 0.0
        %2285 = vmatpush1.msra.mxu0 0.0
        %2286 = vmatprep.subr.mxu0 0.0
        %2287 = vmatpush1.msra.mxu0 0.0
        %2288 = vmatprep.subr.mxu0 0.0
        %2289 = vmatpush1.msra.mxu0 0.0
        %2290 = vmatprep.subr.mxu0 0.0
        %2291 = vmatpush1.msra.mxu0 0.0
        %2292 = vmatprep.subr.mxu0 0.0
        %2293 = vmatpush1.msra.mxu0 0.0
        %2294 = vmatprep.subr.mxu0 0.0
        %2295 = vmatpush1.msra.mxu0 0.0
        %2296 = vmatprep.subr.mxu0 0.0
        %2297 = vmatpush1.msra.mxu0 0.0
        %2298 = vmatprep.subr.mxu0 0.0
        %2299 = vmatpush1.msra.mxu0 0.0
        %2300 = vmatprep.subr.mxu0 0.0
        %2301 = vmatpush1.msra.mxu0 0.0
        %2302 = vmatprep.subr.mxu0 0.0
        %2303 = vmatpush1.msra.mxu0 0.0
        %2304 = vmatprep.mubr.f32.mxu0 0.0
        %v2305 = vand.u32 %v2233, 4294901760
        %v2306 = vsub.f32 %v2233, %v2305
        %v2307 = vand.u32 %v2306, 4294901760
        %v2308 = vsub.f32 %v2306, %v2307
        %v2309 = vand.u32 %v2308, 4294901760
        %2310 = vmatmul.mubr.f32.gmra.mrb[0].mxu0 %v2309
        %v2311 = vpop.f32.mrb[0].mxu0
        %v2312 = vadd.f32 0.0, %v2311
        %v2313 = vpop.f32.mrb[0].mxu0
        %2314 = vmatprep.mubr.f32.mxu0 0.0
        %v2315 = vand.u32 %v2236, 4294901760
        %v2316 = vsub.f32 %v2236, %v2315
        %v2317 = vand.u32 %v2316, 4294901760
        %v2318 = vsub.f32 %v2316, %v2317
        %v2319 = vand.u32 %v2318, 4294901760
        %2320 = vmatmul.mubr.f32.gmra.mrb[0].mxu0 %v2319
        %v2321 = vpop.f32.mrb[0].mxu0
        %v2322 = vadd.f32 0.0, %v2321
        %v2323 = vpop.f32.mrb[0].mxu0
        %2324 = vdwg.mxu0
        %2325 = vmatprep.subr.mxu0 0.0
        %v2326 = vand.u32 %v2227, 4294901760
        %v2327 = vsub.f32 %v2227, %v2326
        %v2328 = vand.u32 %v2327, 4294901760
        %v2329 = vsub.f32 %v2327, %v2328
        %v2330 = vand.u32 %v2329, 4294901760
        %2331 = vmatpush1.msra.mxu0 %v2330
        %2332 = vmatprep.subr.mxu0 0.0
        %v2333 = vand.u32 %v2229, 4294901760
        %v2334 = vsub.f32 %v2229, %v2333
        %v2335 = vand.u32 %v2334, 4294901760
        %v2336 = vsub.f32 %v2334, %v2335
        %v2337 = vand.u32 %v2336, 4294901760
        %2338 = vmatpush1.msra.mxu0 %v2337
        %2339 = vmatprep.subr.mxu0 0.0
        %2340 = vmatpush1.msra.mxu0 0.0
        %2341 = vmatprep.subr.mxu0 0.0
        %2342 = vmatpush1.msra.mxu0 0.0
        %2343 = vmatprep.subr.mxu0 0.0
        %2344 = vmatpush1.msra.mxu0 0.0
        %2345 = vmatprep.subr.mxu0 0.0
        %2346 = vmatpush1.msra.mxu0 0.0
        %2347 = vmatprep.subr.mxu0 0.0
        %2348 = vmatpush1.msra.mxu0 0.0
        %2349 = vmatprep.subr.mxu0 0.0
        %2350 = vmatpush1.msra.mxu0 0.0
        %2351 = vmatprep.subr.mxu0 0.0
        %2352 = vmatpush1.msra.mxu0 0.0
        %2353 = vmatprep.subr.mxu0 0.0
        %2354 = vmatpush1.msra.mxu0 0.0
        %2355 = vmatprep.subr.mxu0 0.0
        %2356 = vmatpush1.msra.mxu0 0.0
        %2357 = vmatprep.subr.mxu0 0.0
        %2358 = vmatpush1.msra.mxu0 0.0
        %2359 = vmatprep.subr.mxu0 0.0
        %2360 = vmatpush1.msra.mxu0 0.0
        %2361 = vmatprep.subr.mxu0 0.0
        %2362 = vmatpush1.msra.mxu0 0.0
        %2363 = vmatprep.subr.mxu0 0.0
        %2364 = vmatpush1.msra.mxu0 0.0
        %2365 = vmatprep.subr.mxu0 0.0
        %2366 = vmatpush1.msra.mxu0 0.0
        %2367 = vmatprep.subr.mxu0 0.0
        %2368 = vmatpush1.msra.mxu0 0.0
        %2369 = vmatprep.subr.mxu0 0.0
        %2370 = vmatpush1.msra.mxu0 0.0
        %2371 = vmatprep.subr.mxu0 0.0
        %2372 = vmatpush1.msra.mxu0 0.0
        %2373 = vmatprep.subr.mxu0 0.0
        %2374 = vmatpush1.msra.mxu0 0.0
        %2375 = vmatprep.subr.mxu0 0.0
        %2376 = vmatpush1.msra.mxu0 0.0
        %2377 = vmatprep.subr.mxu0 0.0
        %2378 = vmatpush1.msra.mxu0 0.0
        %2379 = vmatprep.subr.mxu0 0.0
        %2380 = vmatpush1.msra.mxu0 0.0
        %2381 = vmatprep.subr.mxu0 0.0
        %2382 = vmatpush1.msra.mxu0 0.0
        %2383 = vmatprep.subr.mxu0 0.0
        %2384 = vmatpush1.msra.mxu0 0.0
        %2385 = vmatprep.subr.mxu0 0.0
        %2386 = vmatpush1.msra.mxu0 0.0
        %2387 = vmatprep.subr.mxu0 0.0
        %2388 = vmatpush1.msra.mxu0 0.0
        %2389 = vmatprep.subr.mxu0 0.0
        %2390 = vmatpush1.msra.mxu0 0.0
        %2391 = vmatprep.subr.mxu0 0.0
        %2392 = vmatpush1.msra.mxu0 0.0
        %2393 = vmatprep.subr.mxu0 0.0
        %2394 = vmatpush1.msra.mxu0 0.0
        %2395 = vmatprep.subr.mxu0 0.0
        %2396 = vmatpush1.msra.mxu0 0.0
        %2397 = vmatprep.subr.mxu0 0.0
        %2398 = vmatpush1.msra.mxu0 0.0
        %2399 = vmatprep.mubr.f32.mxu0 0.0
        %v2400 = vand.u32 %v2233, 4294901760
        %2401 = vmatmul.mubr.f32.gmra.mrb[0].mxu0 %v2400
        %v2402 = vpop.f32.mrb[0].mxu0
        %v2403 = vadd.f32 %v2312, %v2402
        %v2404 = vpop.f32.mrb[0].mxu0
        %2405 = vmatprep.mubr.f32.mxu0 0.0
        %v2406 = vand.u32 %v2236, 4294901760
        %2407 = vmatmul.mubr.f32.gmra.mrb[0].mxu0 %v2406
        %v2408 = vpop.f32.mrb[0].mxu0
        %v2409 = vadd.f32 %v2322, %v2408
        %v2410 = vpop.f32.mrb[0].mxu0
        %2411 = vdwg.mxu0
        %2412 = vmatprep.subr.mxu0 0.0
        %v2413 = vand.u32 %v2227, 4294901760
        %v2414 = vsub.f32 %v2227, %v2413
        %2415 = vmatpush1.msra.mxu0 %v2414
        %2416 = vmatprep.subr.mxu0 0.0
        %v2417 = vand.u32 %v2229, 4294901760
        %v2418 = vsub.f32 %v2229, %v2417
        %2419 = vmatpush1.msra.mxu0 %v2418
        %2420 = vmatprep.subr.mxu0 0.0
        %2421 = vmatpush1.msra.mxu0 0.0
        %2422 = vmatprep.subr.mxu0 0.0
        %2423 = vmatpush1.msra.mxu0 0.0
        %2424 = vmatprep.subr.mxu0 0.0
        %2425 = vmatpush1.msra.mxu0 0.0
        %2426 = vmatprep.subr.mxu0 0.0
        %2427 = vmatpush1.msra.mxu0 0.0
        %2428 = vmatprep.subr.mxu0 0.0
        %2429 = vmatpush1.msra.mxu0 0.0
        %2430 = vmatprep.subr.mxu0 0.0
        %2431 = vmatpush1.msra.mxu0 0.0
        %2432 = vmatprep.subr.mxu0 0.0
        %2433 = vmatpush1.msra.mxu0 0.0
        %2434 = vmatprep.subr.mxu0 0.0
        %2435 = vmatpush1.msra.mxu0 0.0
        %2436 = vmatprep.subr.mxu0 0.0
        %2437 = vmatpush1.msra.mxu0 0.0
        %2438 = vmatprep.subr.mxu0 0.0
        %2439 = vmatpush1.msra.mxu0 0.0
        %2440 = vmatprep.subr.mxu0 0.0
        %2441 = vmatpush1.msra.mxu0 0.0
        %2442 = vmatprep.subr.mxu0 0.0
        %2443 = vmatpush1.msra.mxu0 0.0
        %2444 = vmatprep.subr.mxu0 0.0
        %2445 = vmatpush1.msra.mxu0 0.0
        %2446 = vmatprep.subr.mxu0 0.0
        %2447 = vmatpush1.msra.mxu0 0.0
        %2448 = vmatprep.subr.mxu0 0.0
        %2449 = vmatpush1.msra.mxu0 0.0
        %2450 = vmatprep.subr.mxu0 0.0
        %2451 = vmatpush1.msra.mxu0 0.0
        %2452 = vmatprep.subr.mxu0 0.0
        %2453 = vmatpush1.msra.mxu0 0.0
        %2454 = vmatprep.subr.mxu0 0.0
        %2455 = vmatpush1.msra.mxu0 0.0
        %2456 = vmatprep.subr.mxu0 0.0
        %2457 = vmatpush1.msra.mxu0 0.0
        %2458 = vmatprep.subr.mxu0 0.0
        %2459 = vmatpush1.msra.mxu0 0.0
        %2460 = vmatprep.subr.mxu0 0.0
        %2461 = vmatpush1.msra.mxu0 0.0
        %2462 = vmatprep.subr.mxu0 0.0
        %2463 = vmatpush1.msra.mxu0 0.0
        %2464 = vmatprep.subr.mxu0 0.0
        %2465 = vmatpush1.msra.mxu0 0.0
        %2466 = vmatprep.subr.mxu0 0.0
        %2467 = vmatpush1.msra.mxu0 0.0
        %2468 = vmatprep.subr.mxu0 0.0
        %2469 = vmatpush1.msra.mxu0 0.0
        %2470 = vmatprep.subr.mxu0 0.0
        %2471 = vmatpush1.msra.mxu0 0.0
        %2472 = vmatprep.subr.mxu0 0.0
        %2473 = vmatpush1.msra.mxu0 0.0
        %2474 = vmatprep.subr.mxu0 0.0
        %2475 = vmatpush1.msra.mxu0 0.0
        %2476 = vmatprep.subr.mxu0 0.0
        %2477 = vmatpush1.msra.mxu0 0.0
        %2478 = vmatprep.subr.mxu0 0.0
        %2479 = vmatpush1.msra.mxu0 0.0
        %2480 = vmatprep.mubr.f32.mxu0 0.0
        %v2481 = vand.u32 %v2233, 4294901760
        %v2482 = vsub.f32 %v2233, %v2481
        %2483 = vmatmul.mubr.f32.gmra.mrb[0].mxu0 %v2482
        %v2484 = vpop.f32.mrb[0].mxu0
        %v2485 = vadd.f32 %v2403, %v2484
        %v2486 = vpop.f32.mrb[0].mxu0
        %2487 = vmatprep.mubr.f32.mxu0 0.0
        %v2488 = vand.u32 %v2236, 4294901760
        %v2489 = vsub.f32 %v2236, %v2488
        %2490 = vmatmul.mubr.f32.gmra.mrb[0].mxu0 %v2489
        %v2491 = vpop.f32.mrb[0].mxu0
        %v2492 = vadd.f32 %v2409, %v2491
        %v2493 = vpop.f32.mrb[0].mxu0
        %2494 = vdwg.mxu0
        %2495 = vmatprep.subr.mxu0 0.0
        %v2496 = vand.u32 %v2227, 4294901760
        %2497 = vmatpush1.msra.mxu0 %v2496
        %2498 = vmatprep.subr.mxu0 0.0
        %v2499 = vand.u32 %v2229, 4294901760
        %2500 = vmatpush1.msra.mxu0 %v2499
        %2501 = vmatprep.subr.mxu0 0.0
        %2502 = vmatpush1.msra.mxu0 0.0
        %2503 = vmatprep.subr.mxu0 0.0
        %2504 = vmatpush1.msra.mxu0 0.0
        %2505 = vmatprep.subr.mxu0 0.0
        %2506 = vmatpush1.msra.mxu0 0.0
        %2507 = vmatprep.subr.mxu0 0.0
        %2508 = vmatpush1.msra.mxu0 0.0
        %2509 = vmatprep.subr.mxu0 0.0
        %2510 = vmatpush1.msra.mxu0 0.0
        %2511 = vmatprep.subr.mxu0 0.0
        %2512 = vmatpush1.msra.mxu0 0.0
        %2513 = vmatprep.subr.mxu0 0.0
        %2514 = vmatpush1.msra.mxu0 0.0
        %2515 = vmatprep.subr.mxu0 0.0
        %2516 = vmatpush1.msra.mxu0 0.0
        %2517 = vmatprep.subr.mxu0 0.0
        %2518 = vmatpush1.msra.mxu0 0.0
        %2519 = vmatprep.subr.mxu0 0.0
        %2520 = vmatpush1.msra.mxu0 0.0
        %2521 = vmatprep.subr.mxu0 0.0
        %2522 = vmatpush1.msra.mxu0 0.0
        %2523 = vmatprep.subr.mxu0 0.0
        %2524 = vmatpush1.msra.mxu0 0.0
        %2525 = vmatprep.subr.mxu0 0.0
        %2526 = vmatpush1.msra.mxu0 0.0
        %2527 = vmatprep.subr.mxu0 0.0
        %2528 = vmatpush1.msra.mxu0 0.0
        %2529 = vmatprep.subr.mxu0 0.0
        %2530 = vmatpush1.msra.mxu0 0.0
        %2531 = vmatprep.subr.mxu0 0.0
        %2532 = vmatpush1.msra.mxu0 0.0
        %2533 = vmatprep.subr.mxu0 0.0
        %2534 = vmatpush1.msra.mxu0 0.0
        %2535 = vmatprep.subr.mxu0 0.0
        %2536 = vmatpush1.msra.mxu0 0.0
        %2537 = vmatprep.subr.mxu0 0.0
        %2538 = vmatpush1.msra.mxu0 0.0
        %2539 = vmatprep.subr.mxu0 0.0
        %2540 = vmatpush1.msra.mxu0 0.0
        %2541 = vmatprep.subr.mxu0 0.0
        %2542 = vmatpush1.msra.mxu0 0.0
        %2543 = vmatprep.subr.mxu0 0.0
        %2544 = vmatpush1.msra.mxu0 0.0
        %2545 = vmatprep.subr.mxu0 0.0
        %2546 = vmatpush1.msra.mxu0 0.0
        %2547 = vmatprep.subr.mxu0 0.0
        %2548 = vmatpush1.msra.mxu0 0.0
        %2549 = vmatprep.subr.mxu0 0.0
        %2550 = vmatpush1.msra.mxu0 0.0
        %2551 = vmatprep.subr.mxu0 0.0
        %2552 = vmatpush1.msra.mxu0 0.0
        %2553 = vmatprep.subr.mxu0 0.0
        %2554 = vmatpush1.msra.mxu0 0.0
        %2555 = vmatprep.subr.mxu0 0.0
        %2556 = vmatpush1.msra.mxu0 0.0
        %2557 = vmatprep.subr.mxu0 0.0
        %2558 = vmatpush1.msra.mxu0 0.0
        %2559 = vmatprep.subr.mxu0 0.0
        %2560 = vmatpush1.msra.mxu0 0.0
        %2561 = vmatprep.mubr.f32.mxu0 0.0
        %v2562 = vand.u32 %v2233, 4294901760
        %v2563 = vsub.f32 %v2233, %v2562
        %v2564 = vand.u32 %v2563, 4294901760
        %2565 = vmatmul.mubr.f32.gmra.mrb[0].mxu0 %v2564
        %v2566 = vpop.f32.mrb[0].mxu0
        %v2567 = vadd.f32 %v2485, %v2566
        %v2568 = vpop.f32.mrb[0].mxu0
        %2569 = vmatprep.mubr.f32.mxu0 0.0
        %v2570 = vand.u32 %v2236, 4294901760
        %v2571 = vsub.f32 %v2236, %v2570
        %v2572 = vand.u32 %v2571, 4294901760
        %2573 = vmatmul.mubr.f32.gmra.mrb[0].mxu0 %v2572
        %v2574 = vpop.f32.mrb[0].mxu0
        %v2575 = vadd.f32 %v2492, %v2574
        %v2576 = vpop.f32.mrb[0].mxu0
        %2577 = vdwg.mxu0
        %2578 = vmatprep.subr.mxu0 0.0
        %v2579 = vand.u32 %v2227, 4294901760
        %v2580 = vsub.f32 %v2227, %v2579
        %v2581 = vand.u32 %v2580, 4294901760
        %2582 = vmatpush1.msra.mxu0 %v2581
        %2583 = vmatprep.subr.mxu0 0.0
        %v2584 = vand.u32 %v2229, 4294901760
        %v2585 = vsub.f32 %v2229, %v2584
        %v2586 = vand.u32 %v2585, 4294901760
        %2587 = vmatpush1.msra.mxu0 %v2586
        %2588 = vmatprep.subr.mxu0 0.0
        %2589 = vmatpush1.msra.mxu0 0.0
        %2590 = vmatprep.subr.mxu0 0.0
        %2591 = vmatpush1.msra.mxu0 0.0
        %2592 = vmatprep.subr.mxu0 0.0
        %2593 = vmatpush1.msra.mxu0 0.0
        %2594 = vmatprep.subr.mxu0 0.0
        %2595 = vmatpush1.msra.mxu0 0.0
        %2596 = vmatprep.subr.mxu0 0.0
        %2597 = vmatpush1.msra.mxu0 0.0
        %2598 = vmatprep.subr.mxu0 0.0
        %2599 = vmatpush1.msra.mxu0 0.0
        %2600 = vmatprep.subr.mxu0 0.0
        %2601 = vmatpush1.msra.mxu0 0.0
        %2602 = vmatprep.subr.mxu0 0.0
        %2603 = vmatpush1.msra.mxu0 0.0
        %2604 = vmatprep.subr.mxu0 0.0
        %2605 = vmatpush1.msra.mxu0 0.0
        %2606 = vmatprep.subr.mxu0 0.0
        %2607 = vmatpush1.msra.mxu0 0.0
        %2608 = vmatprep.subr.mxu0 0.0
        %2609 = vmatpush1.msra.mxu0 0.0
        %2610 = vmatprep.subr.mxu0 0.0
        %2611 = vmatpush1.msra.mxu0 0.0
        %2612 = vmatprep.subr.mxu0 0.0
        %2613 = vmatpush1.msra.mxu0 0.0
        %2614 = vmatprep.subr.mxu0 0.0
        %2615 = vmatpush1.msra.mxu0 0.0
        %2616 = vmatprep.subr.mxu0 0.0
        %2617 = vmatpush1.msra.mxu0 0.0
        %2618 = vmatprep.subr.mxu0 0.0
        %2619 = vmatpush1.msra.mxu0 0.0
        %2620 = vmatprep.subr.mxu0 0.0
        %2621 = vmatpush1.msra.mxu0 0.0
        %2622 = vmatprep.subr.mxu0 0.0
        %2623 = vmatpush1.msra.mxu0 0.0
        %2624 = vmatprep.subr.mxu0 0.0
        %2625 = vmatpush1.msra.mxu0 0.0
        %2626 = vmatprep.subr.mxu0 0.0
        %2627 = vmatpush1.msra.mxu0 0.0
        %2628 = vmatprep.subr.mxu0 0.0
        %2629 = vmatpush1.msra.mxu0 0.0
        %2630 = vmatprep.subr.mxu0 0.0
        %2631 = vmatpush1.msra.mxu0 0.0
        %2632 = vmatprep.subr.mxu0 0.0
        %2633 = vmatpush1.msra.mxu0 0.0
        %2634 = vmatprep.subr.mxu0 0.0
        %2635 = vmatpush1.msra.mxu0 0.0
        %2636 = vmatprep.subr.mxu0 0.0
        %2637 = vmatpush1.msra.mxu0 0.0
        %2638 = vmatprep.subr.mxu0 0.0
        %2639 = vmatpush1.msra.mxu0 0.0
        %2640 = vmatprep.subr.mxu0 0.0
        %2641 = vmatpush1.msra.mxu0 0.0
        %2642 = vmatprep.subr.mxu0 0.0
        %2643 = vmatpush1.msra.mxu0 0.0
        %2644 = vmatprep.subr.mxu0 0.0
        %2645 = vmatpush1.msra.mxu0 0.0
        %2646 = vmatprep.subr.mxu0 0.0
        %2647 = vmatpush1.msra.mxu0 0.0
        %2648 = vmatprep.mubr.f32.mxu0 0.0
        %v2649 = vand.u32 %v2233, 4294901760
        %2650 = vmatmul.mubr.f32.gmra.mrb[0].mxu0 %v2649
        %v2651 = vpop.f32.mrb[0].mxu0
        %v2652 = vadd.f32 %v2567, %v2651
        %v2653 = vpop.f32.mrb[0].mxu0
        %2654 = vmatprep.mubr.f32.mxu0 0.0
        %v2655 = vand.u32 %v2236, 4294901760
        %2656 = vmatmul.mubr.f32.gmra.mrb[0].mxu0 %v2655
        %v2657 = vpop.f32.mrb[0].mxu0
        %v2658 = vadd.f32 %v2575, %v2657
        %v2659 = vpop.f32.mrb[0].mxu0
        %2660 = vdwg.mxu0
        %2661 = vmatprep.subr.mxu0 0.0
        %v2662 = vand.u32 %v2227, 4294901760
        %2663 = vmatpush1.msra.mxu0 %v2662
        %2664 = vmatprep.subr.mxu0 0.0
        %v2665 = vand.u32 %v2229, 4294901760
        %2666 = vmatpush1.msra.mxu0 %v2665
        %2667 = vmatprep.subr.mxu0 0.0
        %2668 = vmatpush1.msra.mxu0 0.0
        %2669 = vmatprep.subr.mxu0 0.0
        %2670 = vmatpush1.msra.mxu0 0.0
        %2671 = vmatprep.subr.mxu0 0.0
        %2672 = vmatpush1.msra.mxu0 0.0
        %2673 = vmatprep.subr.mxu0 0.0
        %2674 = vmatpush1.msra.mxu0 0.0
        %2675 = vmatprep.subr.mxu0 0.0
        %2676 = vmatpush1.msra.mxu0 0.0
        %2677 = vmatprep.subr.mxu0 0.0
        %2678 = vmatpush1.msra.mxu0 0.0
        %2679 = vmatprep.subr.mxu0 0.0
        %2680 = vmatpush1.msra.mxu0 0.0
        %2681 = vmatprep.subr.mxu0 0.0
        %2682 = vmatpush1.msra.mxu0 0.0
        %2683 = vmatprep.subr.mxu0 0.0
        %2684 = vmatpush1.msra.mxu0 0.0
        %2685 = vmatprep.subr.mxu0 0.0
        %2686 = vmatpush1.msra.mxu0 0.0
        %2687 = vmatprep.subr.mxu0 0.0
        %2688 = vmatpush1.msra.mxu0 0.0
        %2689 = vmatprep.subr.mxu0 0.0
        %2690 = vmatpush1.msra.mxu0 0.0
        %2691 = vmatprep.subr.mxu0 0.0
        %2692 = vmatpush1.msra.mxu0 0.0
        %2693 = vmatprep.subr.mxu0 0.0
        %2694 = vmatpush1.msra.mxu0 0.0
        %2695 = vmatprep.subr.mxu0 0.0
        %2696 = vmatpush1.msra.mxu0 0.0
        %2697 = vmatprep.subr.mxu0 0.0
        %2698 = vmatpush1.msra.mxu0 0.0
        %2699 = vmatprep.subr.mxu0 0.0
        %2700 = vmatpush1.msra.mxu0 0.0
        %2701 = vmatprep.subr.mxu0 0.0
        %2702 = vmatpush1.msra.mxu0 0.0
        %2703 = vmatprep.subr.mxu0 0.0
        %2704 = vmatpush1.msra.mxu0 0.0
        %2705 = vmatprep.subr.mxu0 0.0
        %2706 = vmatpush1.msra.mxu0 0.0
        %2707 = vmatprep.subr.mxu0 0.0
        %2708 = vmatpush1.msra.mxu0 0.0
        %2709 = vmatprep.subr.mxu0 0.0
        %2710 = vmatpush1.msra.mxu0 0.0
        %2711 = vmatprep.subr.mxu0 0.0
        %2712 = vmatpush1.msra.mxu0 0.0
        %2713 = vmatprep.subr.mxu0 0.0
        %2714 = vmatpush1.msra.mxu0 0.0
        %2715 = vmatprep.subr.mxu0 0.0
        %2716 = vmatpush1.msra.mxu0 0.0
        %2717 = vmatprep.subr.mxu0 0.0
        %2718 = vmatpush1.msra.mxu0 0.0
        %2719 = vmatprep.subr.mxu0 0.0
        %2720 = vmatpush1.msra.mxu0 0.0
        %2721 = vmatprep.subr.mxu0 0.0
        %2722 = vmatpush1.msra.mxu0 0.0
        %2723 = vmatprep.subr.mxu0 0.0
        %2724 = vmatpush1.msra.mxu0 0.0
        %2725 = vmatprep.subr.mxu0 0.0
        %2726 = vmatpush1.msra.mxu0 0.0
        %2727 = vmatprep.mubr.f32.mxu0 0.0
        %v2728 = vand.u32 %v2233, 4294901760
        %2729 = vmatmul.mubr.f32.gmra.mrb[0].mxu0 %v2728
        %v2730 = vpop.f32.mrb[0].mxu0
        %v2731 = vadd.f32 %v2652, %v2730
        %v2732 = vpop.f32.mrb[0].mxu0
        %2733 = vmatprep.mubr.f32.mxu0 0.0
        %v2734 = vand.u32 %v2236, 4294901760
        %2735 = vmatmul.mubr.f32.gmra.mrb[0].mxu0 %v2734
        %v2736 = vpop.f32.mrb[0].mxu0
        %v2737 = vadd.f32 %v2658, %v2736
        %v2738 = vpop.f32.mrb[0].mxu0
        %2739 = vdwg.mxu0
        %2740 = vrot.lane.b32.xlu0 %v1648, 112
        %v2741 = vpop.permute.xlu0 %2740
        %2742 = vrot.lane.b32.xlu0 %v1654, 112
        %v2743 = vpop.permute.xlu0 %2742
        %2744 = vrot.lane.b32.xlu0 %v1648, 80
        %v2745 = vpop.permute.xlu0 %2744
        %2746 = vrot.lane.b32.xlu0 %v1654, 80
        %v2747 = vpop.permute.xlu0 %2746
        %v2748 = vsel %vm1663, %v2741, 0
        %v2750 = vsel %vm1663, %v2743, 0
        %v2752 = vsel %vm1663, %v2745, 0
        %v2754 = vsel %vm1663, %v2747, 0
        %2756 = vmatprep.subr.mxu0 0.0
        %v2757 = vand.u32 %v2752, 4294901760
        %2758 = vmatpush1.xpose.msra.mxu0 %v2757
        %2759 = vmatprep.subr.mxu0 0.0
        %v2760 = vand.u32 %v2754, 4294901760
        %2761 = vmatpush1.xpose.msra.mxu0 %v2760
        %2762 = vmatprep.subr.mxu0 0.0
        %2763 = vmatpush1.xpose.msra.mxu0 0.0
        %2764 = vmatprep.subr.mxu0 0.0
        %2765 = vmatpush1.xpose.msra.mxu0 0.0
        %2766 = vmatprep.subr.mxu0 0.0
        %2767 = vmatpush1.xpose.msra.mxu0 0.0
        %2768 = vmatprep.subr.mxu0 0.0
        %2769 = vmatpush1.xpose.msra.mxu0 0.0
        %2770 = vmatprep.subr.mxu0 0.0
        %2771 = vmatpush1.xpose.msra.mxu0 0.0
        %2772 = vmatprep.subr.mxu0 0.0
        %2773 = vmatpush1.xpose.msra.mxu0 0.0
        %2774 = vmatprep.subr.mxu0 0.0
        %2775 = vmatpush1.xpose.msra.mxu0 0.0
        %2776 = vmatprep.subr.mxu0 0.0
        %2777 = vmatpush1.xpose.msra.mxu0 0.0
        %2778 = vmatprep.subr.mxu0 0.0
        %2779 = vmatpush1.xpose.msra.mxu0 0.0
        %2780 = vmatprep.subr.mxu0 0.0
        %2781 = vmatpush1.xpose.msra.mxu0 0.0
        %2782 = vmatprep.subr.mxu0 0.0
        %2783 = vmatpush1.xpose.msra.mxu0 0.0
        %2784 = vmatprep.subr.mxu0 0.0
        %2785 = vmatpush1.xpose.msra.mxu0 0.0
        %2786 = vmatprep.subr.mxu0 0.0
        %2787 = vmatpush1.xpose.msra.mxu0 0.0
        %2788 = vmatprep.subr.mxu0 0.0
        %2789 = vmatpush1.xpose.msra.mxu0 0.0
        %2790 = vmatprep.subr.mxu0 0.0
        %2791 = vmatpush1.xpose.msra.mxu0 0.0
        %2792 = vmatprep.subr.mxu0 0.0
        %2793 = vmatpush1.xpose.msra.mxu0 0.0
        %2794 = vmatprep.subr.mxu0 0.0
        %2795 = vmatpush1.xpose.msra.mxu0 0.0
        %2796 = vmatprep.subr.mxu0 0.0
        %2797 = vmatpush1.xpose.msra.mxu0 0.0
        %2798 = vmatprep.subr.mxu0 0.0
        %2799 = vmatpush1.xpose.msra.mxu0 0.0
        %2800 = vmatprep.subr.mxu0 0.0
        %2801 = vmatpush1.xpose.msra.mxu0 0.0
        %2802 = vmatprep.subr.mxu0 0.0
        %2803 = vmatpush1.xpose.msra.mxu0 0.0
        %2804 = vmatprep.subr.mxu0 0.0
        %2805 = vmatpush1.xpose.msra.mxu0 0.0
        %2806 = vmatprep.subr.mxu0 0.0
        %2807 = vmatpush1.xpose.msra.mxu0 0.0
        %2808 = vmatprep.subr.mxu0 0.0
        %2809 = vmatpush1.xpose.msra.mxu0 0.0
        %2810 = vmatprep.subr.mxu0 0.0
        %2811 = vmatpush1.xpose.msra.mxu0 0.0
        %2812 = vmatprep.subr.mxu0 0.0
        %2813 = vmatpush1.xpose.msra.mxu0 0.0
        %2814 = vmatprep.subr.mxu0 0.0
        %2815 = vmatpush1.xpose.msra.mxu0 0.0
        %2816 = vmatprep.subr.mxu0 0.0
        %2817 = vmatpush1.xpose.msra.mxu0 0.0
        %2818 = vmatprep.subr.mxu0 0.0
        %2819 = vmatpush1.xpose.msra.mxu0 0.0
        %2820 = vmatprep.subr.mxu0 0.0
        %2821 = vmatpush1.xpose.msra.mxu0 0.0
        %2822 = vmatprep.mubr.f32.mxu0 0.0
        %v2823 = vand.u32 %v2748, 4294901760
        %v2824 = vsub.f32 %v2748, %v2823
        %v2825 = vand.u32 %v2824, 4294901760
        %v2826 = vsub.f32 %v2824, %v2825
        %v2827 = vand.u32 %v2826, 4294901760
        %2828 = vmatmul.mubr.f32.gmra.mrb[0].mxu0 %v2827
        %v2829 = vpop.f32.mrb[0].mxu0
        %v2830 = vadd.f32 0.0, %v2829
        %v2831 = vpop.f32.mrb[0].mxu0
        %2832 = vmatprep.mubr.f32.mxu0 0.0
        %v2833 = vand.u32 %v2750, 4294901760
        %v2834 = vsub.f32 %v2750, %v2833
        %v2835 = vand.u32 %v2834, 4294901760
        %v2836 = vsub.f32 %v2834, %v2835
        %v2837 = vand.u32 %v2836, 4294901760
        %2838 = vmatmul.mubr.f32.gmra.mrb[0].mxu0 %v2837
        %v2839 = vpop.f32.mrb[0].mxu0
        %v2840 = vadd.f32 0.0, %v2839
        %v2841 = vpop.f32.mrb[0].mxu0
        %2842 = vdwg.mxu0
        %2843 = vmatprep.subr.mxu0 0.0
        %v2844 = vand.u32 %v2752, 4294901760
        %v2845 = vsub.f32 %v2752, %v2844
        %v2846 = vand.u32 %v2845, 4294901760
        %v2847 = vsub.f32 %v2845, %v2846
        %v2848 = vand.u32 %v2847, 4294901760
        %2849 = vmatpush1.xpose.msra.mxu0 %v2848
        %2850 = vmatprep.subr.mxu0 0.0
        %v2851 = vand.u32 %v2754, 4294901760
        %v2852 = vsub.f32 %v2754, %v2851
        %v2853 = vand.u32 %v2852, 4294901760
        %v2854 = vsub.f32 %v2852, %v2853
        %v2855 = vand.u32 %v2854, 4294901760
        %2856 = vmatpush1.xpose.msra.mxu0 %v2855
        %2857 = vmatprep.subr.mxu0 0.0
        %2858 = vmatpush1.xpose.msra.mxu0 0.0
        %2859 = vmatprep.subr.mxu0 0.0
        %2860 = vmatpush1.xpose.msra.mxu0 0.0
        %2861 = vmatprep.subr.mxu0 0.0
        %2862 = vmatpush1.xpose.msra.mxu0 0.0
        %2863 = vmatprep.subr.mxu0 0.0
        %2864 = vmatpush1.xpose.msra.mxu0 0.0
        %2865 = vmatprep.subr.mxu0 0.0
        %2866 = vmatpush1.xpose.msra.mxu0 0.0
        %2867 = vmatprep.subr.mxu0 0.0
        %2868 = vmatpush1.xpose.msra.mxu0 0.0
        %2869 = vmatprep.subr.mxu0 0.0
        %2870 = vmatpush1.xpose.msra.mxu0 0.0
        %2871 = vmatprep.subr.mxu0 0.0
        %2872 = vmatpush1.xpose.msra.mxu0 0.0
        %2873 = vmatprep.subr.mxu0 0.0
        %2874 = vmatpush1.xpose.msra.mxu0 0.0
        %2875 = vmatprep.subr.mxu0 0.0
        %2876 = vmatpush1.xpose.msra.mxu0 0.0
        %2877 = vmatprep.subr.mxu0 0.0
        %2878 = vmatpush1.xpose.msra.mxu0 0.0
        %2879 = vmatprep.subr.mxu0 0.0
        %2880 = vmatpush1.xpose.msra.mxu0 0.0
        %2881 = vmatprep.subr.mxu0 0.0
        %2882 = vmatpush1.xpose.msra.mxu0 0.0
        %2883 = vmatprep.subr.mxu0 0.0
        %2884 = vmatpush1.xpose.msra.mxu0 0.0
        %2885 = vmatprep.subr.mxu0 0.0
        %2886 = vmatpush1.xpose.msra.mxu0 0.0
        %2887 = vmatprep.subr.mxu0 0.0
        %2888 = vmatpush1.xpose.msra.mxu0 0.0
        %2889 = vmatprep.subr.mxu0 0.0
        %2890 = vmatpush1.xpose.msra.mxu0 0.0
        %2891 = vmatprep.subr.mxu0 0.0
        %2892 = vmatpush1.xpose.msra.mxu0 0.0
        %2893 = vmatprep.subr.mxu0 0.0
        %2894 = vmatpush1.xpose.msra.mxu0 0.0
        %2895 = vmatprep.subr.mxu0 0.0
        %2896 = vmatpush1.xpose.msra.mxu0 0.0
        %2897 = vmatprep.subr.mxu0 0.0
        %2898 = vmatpush1.xpose.msra.mxu0 0.0
        %2899 = vmatprep.subr.mxu0 0.0
        %2900 = vmatpush1.xpose.msra.mxu0 0.0
        %2901 = vmatprep.subr.mxu0 0.0
        %2902 = vmatpush1.xpose.msra.mxu0 0.0
        %2903 = vmatprep.subr.mxu0 0.0
        %2904 = vmatpush1.xpose.msra.mxu0 0.0
        %2905 = vmatprep.subr.mxu0 0.0
        %2906 = vmatpush1.xpose.msra.mxu0 0.0
        %2907 = vmatprep.subr.mxu0 0.0
        %2908 = vmatpush1.xpose.msra.mxu0 0.0
        %2909 = vmatprep.subr.mxu0 0.0
        %2910 = vmatpush1.xpose.msra.mxu0 0.0
        %2911 = vmatprep.subr.mxu0 0.0
        %2912 = vmatpush1.xpose.msra.mxu0 0.0
        %2913 = vmatprep.subr.mxu0 0.0
        %2914 = vmatpush1.xpose.msra.mxu0 0.0
        %2915 = vmatprep.subr.mxu0 0.0
        %2916 = vmatpush1.xpose.msra.mxu0 0.0
        %2917 = vmatprep.mubr.f32.mxu0 0.0
        %v2918 = vand.u32 %v2748, 4294901760
        %2919 = vmatmul.mubr.f32.gmra.mrb[0].mxu0 %v2918
        %v2920 = vpop.f32.mrb[0].mxu0
        %v2921 = vadd.f32 %v2830, %v2920
        %v2922 = vpop.f32.mrb[0].mxu0
        %2923 = vmatprep.mubr.f32.mxu0 0.0
        %v2924 = vand.u32 %v2750, 4294901760
        %2925 = vmatmul.mubr.f32.gmra.mrb[0].mxu0 %v2924
        %v2926 = vpop.f32.mrb[0].mxu0
        %v2927 = vadd.f32 %v2840, %v2926
        %v2928 = vpop.f32.mrb[0].mxu0
        %2929 = vdwg.mxu0
        %2930 = vmatprep.subr.mxu0 0.0
        %v2931 = vand.u32 %v2752, 4294901760
        %v2932 = vsub.f32 %v2752, %v2931
        %2933 = vmatpush1.xpose.msra.mxu0 %v2932
        %2934 = vmatprep.subr.mxu0 0.0
        %v2935 = vand.u32 %v2754, 4294901760
        %v2936 = vsub.f32 %v2754, %v2935
        %2937 = vmatpush1.xpose.msra.mxu0 %v2936
        %2938 = vmatprep.subr.mxu0 0.0
        %2939 = vmatpush1.xpose.msra.mxu0 0.0
        %2940 = vmatprep.subr.mxu0 0.0
        %2941 = vmatpush1.xpose.msra.mxu0 0.0
        %2942 = vmatprep.subr.mxu0 0.0
        %2943 = vmatpush1.xpose.msra.mxu0 0.0
        %2944 = vmatprep.subr.mxu0 0.0
        %2945 = vmatpush1.xpose.msra.mxu0 0.0
        %2946 = vmatprep.subr.mxu0 0.0
        %2947 = vmatpush1.xpose.msra.mxu0 0.0
        %2948 = vmatprep.subr.mxu0 0.0
        %2949 = vmatpush1.xpose.msra.mxu0 0.0
        %2950 = vmatprep.subr.mxu0 0.0
        %2951 = vmatpush1.xpose.msra.mxu0 0.0
        %2952 = vmatprep.subr.mxu0 0.0
        %2953 = vmatpush1.xpose.msra.mxu0 0.0
        %2954 = vmatprep.subr.mxu0 0.0
        %2955 = vmatpush1.xpose.msra.mxu0 0.0
        %2956 = vmatprep.subr.mxu0 0.0
        %2957 = vmatpush1.xpose.msra.mxu0 0.0
        %2958 = vmatprep.subr.mxu0 0.0
        %2959 = vmatpush1.xpose.msra.mxu0 0.0
        %2960 = vmatprep.subr.mxu0 0.0
        %2961 = vmatpush1.xpose.msra.mxu0 0.0
        %2962 = vmatprep.subr.mxu0 0.0
        %2963 = vmatpush1.xpose.msra.mxu0 0.0
        %2964 = vmatprep.subr.mxu0 0.0
        %2965 = vmatpush1.xpose.msra.mxu0 0.0
        %2966 = vmatprep.subr.mxu0 0.0
        %2967 = vmatpush1.xpose.msra.mxu0 0.0
        %2968 = vmatprep.subr.mxu0 0.0
        %2969 = vmatpush1.xpose.msra.mxu0 0.0
        %2970 = vmatprep.subr.mxu0 0.0
        %2971 = vmatpush1.xpose.msra.mxu0 0.0
        %2972 = vmatprep.subr.mxu0 0.0
        %2973 = vmatpush1.xpose.msra.mxu0 0.0
        %2974 = vmatprep.subr.mxu0 0.0
        %2975 = vmatpush1.xpose.msra.mxu0 0.0
        %2976 = vmatprep.subr.mxu0 0.0
        %2977 = vmatpush1.xpose.msra.mxu0 0.0
        %2978 = vmatprep.subr.mxu0 0.0
        %2979 = vmatpush1.xpose.msra.mxu0 0.0
        %2980 = vmatprep.subr.mxu0 0.0
        %2981 = vmatpush1.xpose.msra.mxu0 0.0
        %2982 = vmatprep.subr.mxu0 0.0
        %2983 = vmatpush1.xpose.msra.mxu0 0.0
        %2984 = vmatprep.subr.mxu0 0.0
        %2985 = vmatpush1.xpose.msra.mxu0 0.0
        %2986 = vmatprep.subr.mxu0 0.0
        %2987 = vmatpush1.xpose.msra.mxu0 0.0
        %2988 = vmatprep.subr.mxu0 0.0
        %2989 = vmatpush1.xpose.msra.mxu0 0.0
        %2990 = vmatprep.subr.mxu0 0.0
        %2991 = vmatpush1.xpose.msra.mxu0 0.0
        %2992 = vmatprep.subr.mxu0 0.0
        %2993 = vmatpush1.xpose.msra.mxu0 0.0
        %2994 = vmatprep.subr.mxu0 0.0
        %2995 = vmatpush1.xpose.msra.mxu0 0.0
        %2996 = vmatprep.subr.mxu0 0.0
        %2997 = vmatpush1.xpose.msra.mxu0 0.0
        %2998 = vmatprep.mubr.f32.mxu0 0.0
        %v2999 = vand.u32 %v2748, 4294901760
        %v3000 = vsub.f32 %v2748, %v2999
        %3001 = vmatmul.mubr.f32.gmra.mrb[0].mxu0 %v3000
        %v3002 = vpop.f32.mrb[0].mxu0
        %v3003 = vadd.f32 %v2921, %v3002
        %v3004 = vpop.f32.mrb[0].mxu0
        %3005 = vmatprep.mubr.f32.mxu0 0.0
        %v3006 = vand.u32 %v2750, 4294901760
        %v3007 = vsub.f32 %v2750, %v3006
        %3008 = vmatmul.mubr.f32.gmra.mrb[0].mxu0 %v3007
        %v3009 = vpop.f32.mrb[0].mxu0
        %v3010 = vadd.f32 %v2927, %v3009
        %v3011 = vpop.f32.mrb[0].mxu0
        %3012 = vdwg.mxu0
        %3013 = vmatprep.subr.mxu0 0.0
        %v3014 = vand.u32 %v2752, 4294901760
        %3015 = vmatpush1.xpose.msra.mxu0 %v3014
        %3016 = vmatprep.subr.mxu0 0.0
        %v3017 = vand.u32 %v2754, 4294901760
        %3018 = vmatpush1.xpose.msra.mxu0 %v3017
        %3019 = vmatprep.subr.mxu0 0.0
        %3020 = vmatpush1.xpose.msra.mxu0 0.0
        %3021 = vmatprep.subr.mxu0 0.0
        %3022 = vmatpush1.xpose.msra.mxu0 0.0
        %3023 = vmatprep.subr.mxu0 0.0
        %3024 = vmatpush1.xpose.msra.mxu0 0.0
        %3025 = vmatprep.subr.mxu0 0.0
        %3026 = vmatpush1.xpose.msra.mxu0 0.0
        %3027 = vmatprep.subr.mxu0 0.0
        %3028 = vmatpush1.xpose.msra.mxu0 0.0
        %3029 = vmatprep.subr.mxu0 0.0
        %3030 = vmatpush1.xpose.msra.mxu0 0.0
        %3031 = vmatprep.subr.mxu0 0.0
        %3032 = vmatpush1.xpose.msra.mxu0 0.0
        %3033 = vmatprep.subr.mxu0 0.0
        %3034 = vmatpush1.xpose.msra.mxu0 0.0
        %3035 = vmatprep.subr.mxu0 0.0
        %3036 = vmatpush1.xpose.msra.mxu0 0.0
        %3037 = vmatprep.subr.mxu0 0.0
        %3038 = vmatpush1.xpose.msra.mxu0 0.0
        %3039 = vmatprep.subr.mxu0 0.0
        %3040 = vmatpush1.xpose.msra.mxu0 0.0
        %3041 = vmatprep.subr.mxu0 0.0
        %3042 = vmatpush1.xpose.msra.mxu0 0.0
        %3043 = vmatprep.subr.mxu0 0.0
        %3044 = vmatpush1.xpose.msra.mxu0 0.0
        %3045 = vmatprep.subr.mxu0 0.0
        %3046 = vmatpush1.xpose.msra.mxu0 0.0
        %3047 = vmatprep.subr.mxu0 0.0
        %3048 = vmatpush1.xpose.msra.mxu0 0.0
        %3049 = vmatprep.subr.mxu0 0.0
        %3050 = vmatpush1.xpose.msra.mxu0 0.0
        %3051 = vmatprep.subr.mxu0 0.0
        %3052 = vmatpush1.xpose.msra.mxu0 0.0
        %3053 = vmatprep.subr.mxu0 0.0
        %3054 = vmatpush1.xpose.msra.mxu0 0.0
        %3055 = vmatprep.subr.mxu0 0.0
        %3056 = vmatpush1.xpose.msra.mxu0 0.0
        %3057 = vmatprep.subr.mxu0 0.0
        %3058 = vmatpush1.xpose.msra.mxu0 0.0
        %3059 = vmatprep.subr.mxu0 0.0
        %3060 = vmatpush1.xpose.msra.mxu0 0.0
        %3061 = vmatprep.subr.mxu0 0.0
        %3062 = vmatpush1.xpose.msra.mxu0 0.0
        %3063 = vmatprep.subr.mxu0 0.0
        %3064 = vmatpush1.xpose.msra.mxu0 0.0
        %3065 = vmatprep.subr.mxu0 0.0
        %3066 = vmatpush1.xpose.msra.mxu0 0.0
        %3067 = vmatprep.subr.mxu0 0.0
        %3068 = vmatpush1.xpose.msra.mxu0 0.0
        %3069 = vmatprep.subr.mxu0 0.0
        %3070 = vmatpush1.xpose.msra.mxu0 0.0
        %3071 = vmatprep.subr.mxu0 0.0
        %3072 = vmatpush1.xpose.msra.mxu0 0.0
        %3073 = vmatprep.subr.mxu0 0.0
        %3074 = vmatpush1.xpose.msra.mxu0 0.0
        %3075 = vmatprep.subr.mxu0 0.0
        %3076 = vmatpush1.xpose.msra.mxu0 0.0
        %3077 = vmatprep.subr.mxu0 0.0
        %3078 = vmatpush1.xpose.msra.mxu0 0.0
        %3079 = vmatprep.mubr.f32.mxu0 0.0
        %v3080 = vand.u32 %v2748, 4294901760
        %v3081 = vsub.f32 %v2748, %v3080
        %v3082 = vand.u32 %v3081, 4294901760
        %3083 = vmatmul.mubr.f32.gmra.mrb[0].mxu0 %v3082
        %v3084 = vpop.f32.mrb[0].mxu0
        %v3085 = vadd.f32 %v3003, %v3084
        %v3086 = vpop.f32.mrb[0].mxu0
        %3087 = vmatprep.mubr.f32.mxu0 0.0
        %v3088 = vand.u32 %v2750, 4294901760
        %v3089 = vsub.f32 %v2750, %v3088
        %v3090 = vand.u32 %v3089, 4294901760
        %3091 = vmatmul.mubr.f32.gmra.mrb[0].mxu0 %v3090
        %v3092 = vpop.f32.mrb[0].mxu0
        %v3093 = vadd.f32 %v3010, %v3092
        %v3094 = vpop.f32.mrb[0].mxu0
        %3095 = vdwg.mxu0
        %3096 = vmatprep.subr.mxu0 0.0
        %v3097 = vand.u32 %v2752, 4294901760
        %v3098 = vsub.f32 %v2752, %v3097
        %v3099 = vand.u32 %v3098, 4294901760
        %3100 = vmatpush1.xpose.msra.mxu0 %v3099
        %3101 = vmatprep.subr.mxu0 0.0
        %v3102 = vand.u32 %v2754, 4294901760
        %v3103 = vsub.f32 %v2754, %v3102
        %v3104 = vand.u32 %v3103, 4294901760
        %3105 = vmatpush1.xpose.msra.mxu0 %v3104
        %3106 = vmatprep.subr.mxu0 0.0
        %3107 = vmatpush1.xpose.msra.mxu0 0.0
        %3108 = vmatprep.subr.mxu0 0.0
        %3109 = vmatpush1.xpose.msra.mxu0 0.0
        %3110 = vmatprep.subr.mxu0 0.0
        %3111 = vmatpush1.xpose.msra.mxu0 0.0
        %3112 = vmatprep.subr.mxu0 0.0
        %3113 = vmatpush1.xpose.msra.mxu0 0.0
        %3114 = vmatprep.subr.mxu0 0.0
        %3115 = vmatpush1.xpose.msra.mxu0 0.0
        %3116 = vmatprep.subr.mxu0 0.0
        %3117 = vmatpush1.xpose.msra.mxu0 0.0
        %3118 = vmatprep.subr.mxu0 0.0
        %3119 = vmatpush1.xpose.msra.mxu0 0.0
        %3120 = vmatprep.subr.mxu0 0.0
        %3121 = vmatpush1.xpose.msra.mxu0 0.0
        %3122 = vmatprep.subr.mxu0 0.0
        %3123 = vmatpush1.xpose.msra.mxu0 0.0
        %3124 = vmatprep.subr.mxu0 0.0
        %3125 = vmatpush1.xpose.msra.mxu0 0.0
        %3126 = vmatprep.subr.mxu0 0.0
        %3127 = vmatpush1.xpose.msra.mxu0 0.0
        %3128 = vmatprep.subr.mxu0 0.0
        %3129 = vmatpush1.xpose.msra.mxu0 0.0
        %3130 = vmatprep.subr.mxu0 0.0
        %3131 = vmatpush1.xpose.msra.mxu0 0.0
        %3132 = vmatprep.subr.mxu0 0.0
        %3133 = vmatpush1.xpose.msra.mxu0 0.0
        %3134 = vmatprep.subr.mxu0 0.0
        %3135 = vmatpush1.xpose.msra.mxu0 0.0
        %3136 = vmatprep.subr.mxu0 0.0
        %3137 = vmatpush1.xpose.msra.mxu0 0.0
        %3138 = vmatprep.subr.mxu0 0.0
        %3139 = vmatpush1.xpose.msra.mxu0 0.0
        %3140 = vmatprep.subr.mxu0 0.0
        %3141 = vmatpush1.xpose.msra.mxu0 0.0
        %3142 = vmatprep.subr.mxu0 0.0
        %3143 = vmatpush1.xpose.msra.mxu0 0.0
        %3144 = vmatprep.subr.mxu0 0.0
        %3145 = vmatpush1.xpose.msra.mxu0 0.0
        %3146 = vmatprep.subr.mxu0 0.0
        %3147 = vmatpush1.xpose.msra.mxu0 0.0
        %3148 = vmatprep.subr.mxu0 0.0
        %3149 = vmatpush1.xpose.msra.mxu0 0.0
        %3150 = vmatprep.subr.mxu0 0.0
        %3151 = vmatpush1.xpose.msra.mxu0 0.0
        %3152 = vmatprep.subr.mxu0 0.0
        %3153 = vmatpush1.xpose.msra.mxu0 0.0
        %3154 = vmatprep.subr.mxu0 0.0
        %3155 = vmatpush1.xpose.msra.mxu0 0.0
        %3156 = vmatprep.subr.mxu0 0.0
        %3157 = vmatpush1.xpose.msra.mxu0 0.0
        %3158 = vmatprep.subr.mxu0 0.0
        %3159 = vmatpush1.xpose.msra.mxu0 0.0
        %3160 = vmatprep.subr.mxu0 0.0
        %3161 = vmatpush1.xpose.msra.mxu0 0.0
        %3162 = vmatprep.subr.mxu0 0.0
        %3163 = vmatpush1.xpose.msra.mxu0 0.0
        %3164 = vmatprep.subr.mxu0 0.0
        %3165 = vmatpush1.xpose.msra.mxu0 0.0
        %3166 = vmatprep.mubr.f32.mxu0 0.0
        %v3167 = vand.u32 %v2748, 4294901760
        %3168 = vmatmul.mubr.f32.gmra.mrb[0].mxu0 %v3167
        %v3169 = vpop.f32.mrb[0].mxu0
        %v3170 = vadd.f32 %v3085, %v3169
        %v3171 = vpop.f32.mrb[0].mxu0
        %3172 = vmatprep.mubr.f32.mxu0 0.0
        %v3173 = vand.u32 %v2750, 4294901760
        %3174 = vmatmul.mubr.f32.gmra.mrb[0].mxu0 %v3173
        %v3175 = vpop.f32.mrb[0].mxu0
        %v3176 = vadd.f32 %v3093, %v3175
        %v3177 = vpop.f32.mrb[0].mxu0
        %3178 = vdwg.mxu0
        %3179 = vmatprep.subr.mxu0 0.0
        %v3180 = vand.u32 %v2752, 4294901760
        %3181 = vmatpush1.xpose.msra.mxu0 %v3180
        %3182 = vmatprep.subr.mxu0 0.0
        %v3183 = vand.u32 %v2754, 4294901760
        %3184 = vmatpush1.xpose.msra.mxu0 %v3183
        %3185 = vmatprep.subr.mxu0 0.0
        %3186 = vmatpush1.xpose.msra.mxu0 0.0
        %3187 = vmatprep.subr.mxu0 0.0
        %3188 = vmatpush1.xpose.msra.mxu0 0.0
        %3189 = vmatprep.subr.mxu0 0.0
        %3190 = vmatpush1.xpose.msra.mxu0 0.0
        %3191 = vmatprep.subr.mxu0 0.0
        %3192 = vmatpush1.xpose.msra.mxu0 0.0
        %3193 = vmatprep.subr.mxu0 0.0
        %3194 = vmatpush1.xpose.msra.mxu0 0.0
        %3195 = vmatprep.subr.mxu0 0.0
        %3196 = vmatpush1.xpose.msra.mxu0 0.0
        %3197 = vmatprep.subr.mxu0 0.0
        %3198 = vmatpush1.xpose.msra.mxu0 0.0
        %3199 = vmatprep.subr.mxu0 0.0
        %3200 = vmatpush1.xpose.msra.mxu0 0.0
        %3201 = vmatprep.subr.mxu0 0.0
        %3202 = vmatpush1.xpose.msra.mxu0 0.0
        %3203 = vmatprep.subr.mxu0 0.0
        %3204 = vmatpush1.xpose.msra.mxu0 0.0
        %3205 = vmatprep.subr.mxu0 0.0
        %3206 = vmatpush1.xpose.msra.mxu0 0.0
        %3207 = vmatprep.subr.mxu0 0.0
        %3208 = vmatpush1.xpose.msra.mxu0 0.0
        %3209 = vmatprep.subr.mxu0 0.0
        %3210 = vmatpush1.xpose.msra.mxu0 0.0
        %3211 = vmatprep.subr.mxu0 0.0
        %3212 = vmatpush1.xpose.msra.mxu0 0.0
        %3213 = vmatprep.subr.mxu0 0.0
        %3214 = vmatpush1.xpose.msra.mxu0 0.0
        %3215 = vmatprep.subr.mxu0 0.0
        %3216 = vmatpush1.xpose.msra.mxu0 0.0
        %3217 = vmatprep.subr.mxu0 0.0
        %3218 = vmatpush1.xpose.msra.mxu0 0.0
        %3219 = vmatprep.subr.mxu0 0.0
        %3220 = vmatpush1.xpose.msra.mxu0 0.0
        %3221 = vmatprep.subr.mxu0 0.0
        %3222 = vmatpush1.xpose.msra.mxu0 0.0
        %3223 = vmatprep.subr.mxu0 0.0
        %3224 = vmatpush1.xpose.msra.mxu0 0.0
        %3225 = vmatprep.subr.mxu0 0.0
        %3226 = vmatpush1.xpose.msra.mxu0 0.0
        %3227 = vmatprep.subr.mxu0 0.0
        %3228 = vmatpush1.xpose.msra.mxu0 0.0
        %3229 = vmatprep.subr.mxu0 0.0
        %3230 = vmatpush1.xpose.msra.mxu0 0.0
        %3231 = vmatprep.subr.mxu0 0.0
        %3232 = vmatpush1.xpose.msra.mxu0 0.0
        %3233 = vmatprep.subr.mxu0 0.0
        %3234 = vmatpush1.xpose.msra.mxu0 0.0
        %3235 = vmatprep.subr.mxu0 0.0
        %3236 = vmatpush1.xpose.msra.mxu0 0.0
        %3237 = vmatprep.subr.mxu0 0.0
        %3238 = vmatpush1.xpose.msra.mxu0 0.0
        %3239 = vmatprep.subr.mxu0 0.0
        %3240 = vmatpush1.xpose.msra.mxu0 0.0
        %3241 = vmatprep.subr.mxu0 0.0
        %3242 = vmatpush1.xpose.msra.mxu0 0.0
        %3243 = vmatprep.subr.mxu0 0.0
        %3244 = vmatpush1.xpose.msra.mxu0 0.0
        %3245 = vmatprep.mubr.f32.mxu0 0.0
        %v3246 = vand.u32 %v2748, 4294901760
        %3247 = vmatmul.mubr.f32.gmra.mrb[0].mxu0 %v3246
        %v3248 = vpop.f32.mrb[0].mxu0
        %v3249 = vadd.f32 %v3170, %v3248
        %v3250 = vpop.f32.mrb[0].mxu0
        %3251 = vmatprep.mubr.f32.mxu0 0.0
        %v3252 = vand.u32 %v2750, 4294901760
        %3253 = vmatmul.mubr.f32.gmra.mrb[0].mxu0 %v3252
        %v3254 = vpop.f32.mrb[0].mxu0
        %v3255 = vadd.f32 %v3176, %v3254
        %v3256 = vpop.f32.mrb[0].mxu0
        %3257 = vdwg.mxu0
        %v3258 = vmul.f32 %v3249, 0.25
        %v3259 = vmul.f32 %v3255, 0.25
        %v3260 = vmul.f32 %v3258, %v3258
        %v3261 = vmul.f32 %v3259, %v3259
        %v3262 = vsel %vm1663, %v3260, 0.0
        %3263 = vadd.xlane.f32.xlu0 %v3262
        %v3264 = vpop.xlane.xlu0 %3263
        %v3265 = vsel %vm1663, %v3261, 0.0
        %3266 = vadd.xlane.f32.xlu0 %v3265
        %v3267 = vpop.xlane.xlu0 %3266
        %v3268 = vrsqrt.pop %v3264
        %v3269 = vmul.f32 %v3264, %v3268
        %vm3270 = vcmp.eq.f32.partialorder %v3264, inf
        %v3271 = vsel %vm3270, %v3264, %v3269
        %vm3272 = vcmp.eq.f32.partialorder %v3264, 0.0
        %v3273 = vand.u32 %v3264, 2147483648
        %v3274 = vsel %vm3272, %v3273, %v3271
        %v3275 = vrsqrt.pop %v3267
        %v3276 = vmul.f32 %v3267, %v3275
        %vm3277 = vcmp.eq.f32.partialorder %v3267, inf
        %v3278 = vsel %vm3277, %v3267, %v3276
        %vm3279 = vcmp.eq.f32.partialorder %v3267, 0.0
        %v3280 = vand.u32 %v3267, 2147483648
        %v3281 = vsel %vm3279, %v3280, %v3278
        %v3282 = vadd.f32 %v3274, 1e-12
        %v3283 = vadd.f32 %v3281, 1e-12
        %v3284 = vrcp.pop %v3282
        %v3285 = vmul.f32 %v3258, %v3284
        %v3286 = vrcp.pop %v3283
        %v3287 = vmul.f32 %v3259, %v3286
        %v3288 = vsel %vm1663, %v3285, -inf
        %3289 = vmax.xlane.f32.xlu0 %v3288
        %v3290 = vpop.xlane.xlu0 %3289
        %v3291 = vsel %vm1663, %v3287, -inf
        %3292 = vmax.xlane.f32.xlu0 %v3291
        %v3293 = vpop.xlane.xlu0 %3292
        %v3294 = vsub.f32 %v3285, %v3290
        %v3295 = vsub.f32 %v3287, %v3293
        %v3296 = vmul.f32 %v3294, 1.442695
        %v3297 = vpow.pop %v3296
        %v3298 = vmul.f32 %v3295, 1.442695
        %v3299 = vpow.pop %v3298
        %v3300 = vsel %vm1663, %v3297, 0.0
        %3301 = vadd.xlane.f32.xlu0 %v3300
        %v3302 = vpop.xlane.xlu0 %3301
        %v3303 = vsel %vm1663, %v3299, 0.0
        %3304 = vadd.xlane.f32.xlu0 %v3303
        %v3305 = vpop.xlane.xlu0 %3304
        %v3306 = vrcp.pop %v3302
        %v3307 = vmul.f32 %v3297, %v3306
        %v3308 = vrcp.pop %v3305
        %v3309 = vmul.f32 %v3299, %v3308
        %3310 = vrot.lane.b32.xlu0 %v1648, 48
        %v3311 = vpop.permute.xlu0 %3310
        %3312 = vrot.lane.b32.xlu0 %v1654, 48
        %v3313 = vpop.permute.xlu0 %3312
        %v3317 = vsel %vm1663, %v3307, 0
        %v3320 = vsel %vm1663, %v3309, 0
        %3322 = vmatprep.subr.mxu0 0.0
        %v3323 = vand.u32 %v3311, 4294901760
        %3324 = vmatpush1.msra.mxu0 %v3323
        %3325 = vmatprep.subr.mxu0 0.0
        %v3326 = vand.u32 %v3313, 4294901760
        %3327 = vmatpush1.msra.mxu0 %v3326
        %3328 = vmatprep.subr.mxu0 0.0
        %3329 = vmatpush1.msra.mxu0 0.0
        %3330 = vmatprep.subr.mxu0 0.0
        %3331 = vmatpush1.msra.mxu0 0.0
        %3332 = vmatprep.subr.mxu0 0.0
        %3333 = vmatpush1.msra.mxu0 0.0
        %3334 = vmatprep.subr.mxu0 0.0
        %3335 = vmatpush1.msra.mxu0 0.0
        %3336 = vmatprep.subr.mxu0 0.0
        %3337 = vmatpush1.msra.mxu0 0.0
        %3338 = vmatprep.subr.mxu0 0.0
        %3339 = vmatpush1.msra.mxu0 0.0
        %3340 = vmatprep.subr.mxu0 0.0
        %3341 = vmatpush1.msra.mxu0 0.0
        %3342 = vmatprep.subr.mxu0 0.0
        %3343 = vmatpush1.msra.mxu0 0.0
        %3344 = vmatprep.subr.mxu0 0.0
        %3345 = vmatpush1.msra.mxu0 0.0
        %3346 = vmatprep.subr.mxu0 0.0
        %3347 = vmatpush1.msra.mxu0 0.0
        %3348 = vmatprep.subr.mxu0 0.0
        %3349 = vmatpush1.msra.mxu0 0.0
        %3350 = vmatprep.subr.mxu0 0.0
        %3351 = vmatpush1.msra.mxu0 0.0
        %3352 = vmatprep.subr.mxu0 0.0
        %3353 = vmatpush1.msra.mxu0 0.0
        %3354 = vmatprep.subr.mxu0 0.0
        %3355 = vmatpush1.msra.mxu0 0.0
        %3356 = vmatprep.subr.mxu0 0.0
        %3357 = vmatpush1.msra.mxu0 0.0
        %3358 = vmatprep.subr.mxu0 0.0
        %3359 = vmatpush1.msra.mxu0 0.0
        %3360 = vmatprep.subr.mxu0 0.0
        %3361 = vmatpush1.msra.mxu0 0.0
        %3362 = vmatprep.subr.mxu0 0.0
        %3363 = vmatpush1.msra.mxu0 0.0
        %3364 = vmatprep.subr.mxu0 0.0
        %3365 = vmatpush1.msra.mxu0 0.0
        %3366 = vmatprep.subr.mxu0 0.0
        %3367 = vmatpush1.msra.mxu0 0.0
        %3368 = vmatprep.subr.mxu0 0.0
        %3369 = vmatpush1.msra.mxu0 0.0
        %3370 = vmatprep.subr.mxu0 0.0
        %3371 = vmatpush1.msra.mxu0 0.0
        %3372 = vmatprep.subr.mxu0 0.0
        %3373 = vmatpush1.msra.mxu0 0.0
        %3374 = vmatprep.subr.mxu0 0.0
        %3375 = vmatpush1.msra.mxu0 0.0
        %3376 = vmatprep.subr.mxu0 0.0
        %3377 = vmatpush1.msra.mxu0 0.0
        %3378 = vmatprep.subr.mxu0 0.0
        %3379 = vmatpush1.msra.mxu0 0.0
        %3380 = vmatprep.subr.mxu0 0.0
        %3381 = vmatpush1.msra.mxu0 0.0
        %3382 = vmatprep.subr.mxu0 0.0
        %3383 = vmatpush1.msra.mxu0 0.0
        %3384 = vmatprep.subr.mxu0 0.0
        %3385 = vmatpush1.msra.mxu0 0.0
        %3386 = vmatprep.subr.mxu0 0.0
        %3387 = vmatpush1.msra.mxu0 0.0
        %3388 = vmatprep.mubr.f32.mxu0 0.0
        %v3389 = vand.u32 %v3317, 4294901760
        %v3390 = vsub.f32 %v3317, %v3389
        %v3391 = vand.u32 %v3390, 4294901760
        %v3392 = vsub.f32 %v3390, %v3391
        %v3393 = vand.u32 %v3392, 4294901760
        %3394 = vmatmul.mubr.f32.gmra.mrb[0].mxu0 %v3393
        %v3395 = vpop.f32.mrb[0].mxu0
        %v3396 = vadd.f32 0.0, %v3395
        %v3397 = vpop.f32.mrb[0].mxu0
        %3398 = vmatprep.mubr.f32.mxu0 0.0
        %v3399 = vand.u32 %v3320, 4294901760
        %v3400 = vsub.f32 %v3320, %v3399
        %v3401 = vand.u32 %v3400, 4294901760
        %v3402 = vsub.f32 %v3400, %v3401
        %v3403 = vand.u32 %v3402, 4294901760
        %3404 = vmatmul.mubr.f32.gmra.mrb[0].mxu0 %v3403
        %v3405 = vpop.f32.mrb[0].mxu0
        %v3406 = vadd.f32 0.0, %v3405
        %v3407 = vpop.f32.mrb[0].mxu0
        %3408 = vdwg.mxu0
        %3409 = vmatprep.subr.mxu0 0.0
        %v3410 = vand.u32 %v3311, 4294901760
        %v3411 = vsub.f32 %v3311, %v3410
        %v3412 = vand.u32 %v3411, 4294901760
        %v3413 = vsub.f32 %v3411, %v3412
        %v3414 = vand.u32 %v3413, 4294901760
        %3415 = vmatpush1.msra.mxu0 %v3414
        %3416 = vmatprep.subr.mxu0 0.0
        %v3417 = vand.u32 %v3313, 4294901760
        %v3418 = vsub.f32 %v3313, %v3417
        %v3419 = vand.u32 %v3418, 4294901760
        %v3420 = vsub.f32 %v3418, %v3419
        %v3421 = vand.u32 %v3420, 4294901760
        %3422 = vmatpush1.msra.mxu0 %v3421
        %3423 = vmatprep.subr.mxu0 0.0
        %3424 = vmatpush1.msra.mxu0 0.0
        %3425 = vmatprep.subr.mxu0 0.0
        %3426 = vmatpush1.msra.mxu0 0.0
        %3427 = vmatprep.subr.mxu0 0.0
        %3428 = vmatpush1.msra.mxu0 0.0
        %3429 = vmatprep.subr.mxu0 0.0
        %3430 = vmatpush1.msra.mxu0 0.0
        %3431 = vmatprep.subr.mxu0 0.0
        %3432 = vmatpush1.msra.mxu0 0.0
        %3433 = vmatprep.subr.mxu0 0.0
        %3434 = vmatpush1.msra.mxu0 0.0
        %3435 = vmatprep.subr.mxu0 0.0
        %3436 = vmatpush1.msra.mxu0 0.0
        %3437 = vmatprep.subr.mxu0 0.0
        %3438 = vmatpush1.msra.mxu0 0.0
        %3439 = vmatprep.subr.mxu0 0.0
        %3440 = vmatpush1.msra.mxu0 0.0
        %3441 = vmatprep.subr.mxu0 0.0
        %3442 = vmatpush1.msra.mxu0 0.0
        %3443 = vmatprep.subr.mxu0 0.0
        %3444 = vmatpush1.msra.mxu0 0.0
        %3445 = vmatprep.subr.mxu0 0.0
        %3446 = vmatpush1.msra.mxu0 0.0
        %3447 = vmatprep.subr.mxu0 0.0
        %3448 = vmatpush1.msra.mxu0 0.0
        %3449 = vmatprep.subr.mxu0 0.0
        %3450 = vmatpush1.msra.mxu0 0.0
        %3451 = vmatprep.subr.mxu0 0.0
        %3452 = vmatpush1.msra.mxu0 0.0
        %3453 = vmatprep.subr.mxu0 0.0
        %3454 = vmatpush1.msra.mxu0 0.0
        %3455 = vmatprep.subr.mxu0 0.0
        %3456 = vmatpush1.msra.mxu0 0.0
        %3457 = vmatprep.subr.mxu0 0.0
        %3458 = vmatpush1.msra.mxu0 0.0
        %3459 = vmatprep.subr.mxu0 0.0
        %3460 = vmatpush1.msra.mxu0 0.0
        %3461 = vmatprep.subr.mxu0 0.0
        %3462 = vmatpush1.msra.mxu0 0.0
        %3463 = vmatprep.subr.mxu0 0.0
        %3464 = vmatpush1.msra.mxu0 0.0
        %3465 = vmatprep.subr.mxu0 0.0
        %3466 = vmatpush1.msra.mxu0 0.0
        %3467 = vmatprep.subr.mxu0 0.0
        %3468 = vmatpush1.msra.mxu0 0.0
        %3469 = vmatprep.subr.mxu0 0.0
        %3470 = vmatpush1.msra.mxu0 0.0
        %3471 = vmatprep.subr.mxu0 0.0
        %3472 = vmatpush1.msra.mxu0 0.0
        %3473 = vmatprep.subr.mxu0 0.0
        %3474 = vmatpush1.msra.mxu0 0.0
        %3475 = vmatprep.subr.mxu0 0.0
        %3476 = vmatpush1.msra.mxu0 0.0
        %3477 = vmatprep.subr.mxu0 0.0
        %3478 = vmatpush1.msra.mxu0 0.0
        %3479 = vmatprep.subr.mxu0 0.0
        %3480 = vmatpush1.msra.mxu0 0.0
        %3481 = vmatprep.subr.mxu0 0.0
        %3482 = vmatpush1.msra.mxu0 0.0
        %3483 = vmatprep.mubr.f32.mxu0 0.0
        %v3484 = vand.u32 %v3317, 4294901760
        %3485 = vmatmul.mubr.f32.gmra.mrb[0].mxu0 %v3484
        %v3486 = vpop.f32.mrb[0].mxu0
        %v3487 = vadd.f32 %v3396, %v3486
        %v3488 = vpop.f32.mrb[0].mxu0
        %3489 = vmatprep.mubr.f32.mxu0 0.0
        %v3490 = vand.u32 %v3320, 4294901760
        %3491 = vmatmul.mubr.f32.gmra.mrb[0].mxu0 %v3490
        %v3492 = vpop.f32.mrb[0].mxu0
        %v3493 = vadd.f32 %v3406, %v3492
        %v3494 = vpop.f32.mrb[0].mxu0
        %3495 = vdwg.mxu0
        %3496 = vmatprep.subr.mxu0 0.0
        %v3497 = vand.u32 %v3311, 4294901760
        %v3498 = vsub.f32 %v3311, %v3497
        %3499 = vmatpush1.msra.mxu0 %v3498
        %3500 = vmatprep.subr.mxu0 0.0
        %v3501 = vand.u32 %v3313, 4294901760
        %v3502 = vsub.f32 %v3313, %v3501
        %3503 = vmatpush1.msra.mxu0 %v3502
        %3504 = vmatprep.subr.mxu0 0.0
        %3505 = vmatpush1.msra.mxu0 0.0
        %3506 = vmatprep.subr.mxu0 0.0
        %3507 = vmatpush1.msra.mxu0 0.0
        %3508 = vmatprep.subr.mxu0 0.0
        %3509 = vmatpush1.msra.mxu0 0.0
        %3510 = vmatprep.subr.mxu0 0.0
        %3511 = vmatpush1.msra.mxu0 0.0
        %3512 = vmatprep.subr.mxu0 0.0
        %3513 = vmatpush1.msra.mxu0 0.0
        %3514 = vmatprep.subr.mxu0 0.0
        %3515 = vmatpush1.msra.mxu0 0.0
        %3516 = vmatprep.subr.mxu0 0.0
        %3517 = vmatpush1.msra.mxu0 0.0
        %3518 = vmatprep.subr.mxu0 0.0
        %3519 = vmatpush1.msra.mxu0 0.0
        %3520 = vmatprep.subr.mxu0 0.0
        %3521 = vmatpush1.msra.mxu0 0.0
        %3522 = vmatprep.subr.mxu0 0.0
        %3523 = vmatpush1.msra.mxu0 0.0
        %3524 = vmatprep.subr.mxu0 0.0
        %3525 = vmatpush1.msra.mxu0 0.0
        %3526 = vmatprep.subr.mxu0 0.0
        %3527 = vmatpush1.msra.mxu0 0.0
        %3528 = vmatprep.subr.mxu0 0.0
        %3529 = vmatpush1.msra.mxu0 0.0
        %3530 = vmatprep.subr.mxu0 0.0
        %3531 = vmatpush1.msra.mxu0 0.0
        %3532 = vmatprep.subr.mxu0 0.0
        %3533 = vmatpush1.msra.mxu0 0.0
        %3534 = vmatprep.subr.mxu0 0.0
        %3535 = vmatpush1.msra.mxu0 0.0
        %3536 = vmatprep.subr.mxu0 0.0
        %3537 = vmatpush1.msra.mxu0 0.0
        %3538 = vmatprep.subr.mxu0 0.0
        %3539 = vmatpush1.msra.mxu0 0.0
        %3540 = vmatprep.subr.mxu0 0.0
        %3541 = vmatpush1.msra.mxu0 0.0
        %3542 = vmatprep.subr.mxu0 0.0
        %3543 = vmatpush1.msra.mxu0 0.0
        %3544 = vmatprep.subr.mxu0 0.0
        %3545 = vmatpush1.msra.mxu0 0.0
        %3546 = vmatprep.subr.mxu0 0.0
        %3547 = vmatpush1.msra.mxu0 0.0
        %3548 = vmatprep.subr.mxu0 0.0
        %3549 = vmatpush1.msra.mxu0 0.0
        %3550 = vmatprep.subr.mxu0 0.0
        %3551 = vmatpush1.msra.mxu0 0.0
        %3552 = vmatprep.subr.mxu0 0.0
        %3553 = vmatpush1.msra.mxu0 0.0
        %3554 = vmatprep.subr.mxu0 0.0
        %3555 = vmatpush1.msra.mxu0 0.0
        %3556 = vmatprep.subr.mxu0 0.0
        %3557 = vmatpush1.msra.mxu0 0.0
        %3558 = vmatprep.subr.mxu0 0.0
        %3559 = vmatpush1.msra.mxu0 0.0
        %3560 = vmatprep.subr.mxu0 0.0
        %3561 = vmatpush1.msra.mxu0 0.0
        %3562 = vmatprep.subr.mxu0 0.0
        %3563 = vmatpush1.msra.mxu0 0.0
        %3564 = vmatprep.mubr.f32.mxu0 0.0
        %v3565 = vand.u32 %v3317, 4294901760
        %v3566 = vsub.f32 %v3317, %v3565
        %3567 = vmatmul.mubr.f32.gmra.mrb[0].mxu0 %v3566
        %v3568 = vpop.f32.mrb[0].mxu0
        %v3569 = vadd.f32 %v3487, %v3568
        %v3570 = vpop.f32.mrb[0].mxu0
        %3571 = vmatprep.mubr.f32.mxu0 0.0
        %v3572 = vand.u32 %v3320, 4294901760
        %v3573 = vsub.f32 %v3320, %v3572
        %3574 = vmatmul.mubr.f32.gmra.mrb[0].mxu0 %v3573
        %v3575 = vpop.f32.mrb[0].mxu0
        %v3576 = vadd.f32 %v3493, %v3575
        %v3577 = vpop.f32.mrb[0].mxu0
        %3578 = vdwg.mxu0
        %3579 = vmatprep.subr.mxu0 0.0
        %v3580 = vand.u32 %v3311, 4294901760
        %3581 = vmatpush1.msra.mxu0 %v3580
        %3582 = vmatprep.subr.mxu0 0.0
        %v3583 = vand.u32 %v3313, 4294901760
        %3584 = vmatpush1.msra.mxu0 %v3583
        %3585 = vmatprep.subr.mxu0 0.0
        %3586 = vmatpush1.msra.mxu0 0.0
        %3587 = vmatprep.subr.mxu0 0.0
        %3588 = vmatpush1.msra.mxu0 0.0
        %3589 = vmatprep.subr.mxu0 0.0
        %3590 = vmatpush1.msra.mxu0 0.0
        %3591 = vmatprep.subr.mxu0 0.0
        %3592 = vmatpush1.msra.mxu0 0.0
        %3593 = vmatprep.subr.mxu0 0.0
        %3594 = vmatpush1.msra.mxu0 0.0
        %3595 = vmatprep.subr.mxu0 0.0
        %3596 = vmatpush1.msra.mxu0 0.0
        %3597 = vmatprep.subr.mxu0 0.0
        %3598 = vmatpush1.msra.mxu0 0.0
        %3599 = vmatprep.subr.mxu0 0.0
        %3600 = vmatpush1.msra.mxu0 0.0
        %3601 = vmatprep.subr.mxu0 0.0
        %3602 = vmatpush1.msra.mxu0 0.0
        %3603 = vmatprep.subr.mxu0 0.0
        %3604 = vmatpush1.msra.mxu0 0.0
        %3605 = vmatprep.subr.mxu0 0.0
        %3606 = vmatpush1.msra.mxu0 0.0
        %3607 = vmatprep.subr.mxu0 0.0
        %3608 = vmatpush1.msra.mxu0 0.0
        %3609 = vmatprep.subr.mxu0 0.0
        %3610 = vmatpush1.msra.mxu0 0.0
        %3611 = vmatprep.subr.mxu0 0.0
        %3612 = vmatpush1.msra.mxu0 0.0
        %3613 = vmatprep.subr.mxu0 0.0
        %3614 = vmatpush1.msra.mxu0 0.0
        %3615 = vmatprep.subr.mxu0 0.0
        %3616 = vmatpush1.msra.mxu0 0.0
        %3617 = vmatprep.subr.mxu0 0.0
        %3618 = vmatpush1.msra.mxu0 0.0
        %3619 = vmatprep.subr.mxu0 0.0
        %3620 = vmatpush1.msra.mxu0 0.0
        %3621 = vmatprep.subr.mxu0 0.0
        %3622 = vmatpush1.msra.mxu0 0.0
        %3623 = vmatprep.subr.mxu0 0.0
        %3624 = vmatpush1.msra.mxu0 0.0
        %3625 = vmatprep.subr.mxu0 0.0
        %3626 = vmatpush1.msra.mxu0 0.0
        %3627 = vmatprep.subr.mxu0 0.0
        %3628 = vmatpush1.msra.mxu0 0.0
        %3629 = vmatprep.subr.mxu0 0.0
        %3630 = vmatpush1.msra.mxu0 0.0
        %3631 = vmatprep.subr.mxu0 0.0
        %3632 = vmatpush1.msra.mxu0 0.0
        %3633 = vmatprep.subr.mxu0 0.0
        %3634 = vmatpush1.msra.mxu0 0.0
        %3635 = vmatprep.subr.mxu0 0.0
        %3636 = vmatpush1.msra.mxu0 0.0
        %3637 = vmatprep.subr.mxu0 0.0
        %3638 = vmatpush1.msra.mxu0 0.0
        %3639 = vmatprep.subr.mxu0 0.0
        %3640 = vmatpush1.msra.mxu0 0.0
        %3641 = vmatprep.subr.mxu0 0.0
        %3642 = vmatpush1.msra.mxu0 0.0
        %3643 = vmatprep.subr.mxu0 0.0
        %3644 = vmatpush1.msra.mxu0 0.0
        %3645 = vmatprep.mubr.f32.mxu0 0.0
        %v3646 = vand.u32 %v3317, 4294901760
        %v3647 = vsub.f32 %v3317, %v3646
        %v3648 = vand.u32 %v3647, 4294901760
        %3649 = vmatmul.mubr.f32.gmra.mrb[0].mxu0 %v3648
        %v3650 = vpop.f32.mrb[0].mxu0
        %v3651 = vadd.f32 %v3569, %v3650
        %v3652 = vpop.f32.mrb[0].mxu0
        %3653 = vmatprep.mubr.f32.mxu0 0.0
        %v3654 = vand.u32 %v3320, 4294901760
        %v3655 = vsub.f32 %v3320, %v3654
        %v3656 = vand.u32 %v3655, 4294901760
        %3657 = vmatmul.mubr.f32.gmra.mrb[0].mxu0 %v3656
        %v3658 = vpop.f32.mrb[0].mxu0
        %v3659 = vadd.f32 %v3576, %v3658
        %v3660 = vpop.f32.mrb[0].mxu0
        %3661 = vdwg.mxu0
        %3662 = vmatprep.subr.mxu0 0.0
        %v3663 = vand.u32 %v3311, 4294901760
        %v3664 = vsub.f32 %v3311, %v3663
        %v3665 = vand.u32 %v3664, 4294901760
        %3666 = vmatpush1.msra.mxu0 %v3665
        %3667 = vmatprep.subr.mxu0 0.0
        %v3668 = vand.u32 %v3313, 4294901760
        %v3669 = vsub.f32 %v3313, %v3668
        %v3670 = vand.u32 %v3669, 4294901760
        %3671 = vmatpush1.msra.mxu0 %v3670
        %3672 = vmatprep.subr.mxu0 0.0
        %3673 = vmatpush1.msra.mxu0 0.0
        %3674 = vmatprep.subr.mxu0 0.0
        %3675 = vmatpush1.msra.mxu0 0.0
        %3676 = vmatprep.subr.mxu0 0.0
        %3677 = vmatpush1.msra.mxu0 0.0
        %3678 = vmatprep.subr.mxu0 0.0
        %3679 = vmatpush1.msra.mxu0 0.0
        %3680 = vmatprep.subr.mxu0 0.0
        %3681 = vmatpush1.msra.mxu0 0.0
        %3682 = vmatprep.subr.mxu0 0.0
        %3683 = vmatpush1.msra.mxu0 0.0
        %3684 = vmatprep.subr.mxu0 0.0
        %3685 = vmatpush1.msra.mxu0 0.0
        %3686 = vmatprep.subr.mxu0 0.0
        %3687 = vmatpush1.msra.mxu0 0.0
        %3688 = vmatprep.subr.mxu0 0.0
        %3689 = vmatpush1.msra.mxu0 0.0
        %3690 = vmatprep.subr.mxu0 0.0
        %3691 = vmatpush1.msra.mxu0 0.0
        %3692 = vmatprep.subr.mxu0 0.0
        %3693 = vmatpush1.msra.mxu0 0.0
        %3694 = vmatprep.subr.mxu0 0.0
        %3695 = vmatpush1.msra.mxu0 0.0
        %3696 = vmatprep.subr.mxu0 0.0
        %3697 = vmatpush1.msra.mxu0 0.0
        %3698 = vmatprep.subr.mxu0 0.0
        %3699 = vmatpush1.msra.mxu0 0.0
        %3700 = vmatprep.subr.mxu0 0.0
        %3701 = vmatpush1.msra.mxu0 0.0
        %3702 = vmatprep.subr.mxu0 0.0
        %3703 = vmatpush1.msra.mxu0 0.0
        %3704 = vmatprep.subr.mxu0 0.0
        %3705 = vmatpush1.msra.mxu0 0.0
        %3706 = vmatprep.subr.mxu0 0.0
        %3707 = vmatpush1.msra.mxu0 0.0
        %3708 = vmatprep.subr.mxu0 0.0
        %3709 = vmatpush1.msra.mxu0 0.0
        %3710 = vmatprep.subr.mxu0 0.0
        %3711 = vmatpush1.msra.mxu0 0.0
        %3712 = vmatprep.subr.mxu0 0.0
        %3713 = vmatpush1.msra.mxu0 0.0
        %3714 = vmatprep.subr.mxu0 0.0
        %3715 = vmatpush1.msra.mxu0 0.0
        %3716 = vmatprep.subr.mxu0 0.0
        %3717 = vmatpush1.msra.mxu0 0.0
        %3718 = vmatprep.subr.mxu0 0.0
        %3719 = vmatpush1.msra.mxu0 0.0
        %3720 = vmatprep.subr.mxu0 0.0
        %3721 = vmatpush1.msra.mxu0 0.0
        %3722 = vmatprep.subr.mxu0 0.0
        %3723 = vmatpush1.msra.mxu0 0.0
        %3724 = vmatprep.subr.mxu0 0.0
        %3725 = vmatpush1.msra.mxu0 0.0
        %3726 = vmatprep.subr.mxu0 0.0
        %3727 = vmatpush1.msra.mxu0 0.0
        %3728 = vmatprep.subr.mxu0 0.0
        %3729 = vmatpush1.msra.mxu0 0.0
        %3730 = vmatprep.subr.mxu0 0.0
        %3731 = vmatpush1.msra.mxu0 0.0
        %3732 = vmatprep.mubr.f32.mxu0 0.0
        %v3733 = vand.u32 %v3317, 4294901760
        %3734 = vmatmul.mubr.f32.gmra.mrb[0].mxu0 %v3733
        %v3735 = vpop.f32.mrb[0].mxu0
        %v3736 = vadd.f32 %v3651, %v3735
        %v3737 = vpop.f32.mrb[0].mxu0
        %3738 = vmatprep.mubr.f32.mxu0 0.0
        %v3739 = vand.u32 %v3320, 4294901760
        %3740 = vmatmul.mubr.f32.gmra.mrb[0].mxu0 %v3739
        %v3741 = vpop.f32.mrb[0].mxu0
        %v3742 = vadd.f32 %v3659, %v3741
        %v3743 = vpop.f32.mrb[0].mxu0
        %3744 = vdwg.mxu0
        %3745 = vmatprep.subr.mxu0 0.0
        %v3746 = vand.u32 %v3311, 4294901760
        %3747 = vmatpush1.msra.mxu0 %v3746
        %3748 = vmatprep.subr.mxu0 0.0
        %v3749 = vand.u32 %v3313, 4294901760
        %3750 = vmatpush1.msra.mxu0 %v3749
        %3751 = vmatprep.subr.mxu0 0.0
        %3752 = vmatpush1.msra.mxu0 0.0
        %3753 = vmatprep.subr.mxu0 0.0
        %3754 = vmatpush1.msra.mxu0 0.0
        %3755 = vmatprep.subr.mxu0 0.0
        %3756 = vmatpush1.msra.mxu0 0.0
        %3757 = vmatprep.subr.mxu0 0.0
        %3758 = vmatpush1.msra.mxu0 0.0
        %3759 = vmatprep.subr.mxu0 0.0
        %3760 = vmatpush1.msra.mxu0 0.0
        %3761 = vmatprep.subr.mxu0 0.0
        %3762 = vmatpush1.msra.mxu0 0.0
        %3763 = vmatprep.subr.mxu0 0.0
        %3764 = vmatpush1.msra.mxu0 0.0
        %3765 = vmatprep.subr.mxu0 0.0
        %3766 = vmatpush1.msra.mxu0 0.0
        %3767 = vmatprep.subr.mxu0 0.0
        %3768 = vmatpush1.msra.mxu0 0.0
        %3769 = vmatprep.subr.mxu0 0.0
        %3770 = vmatpush1.msra.mxu0 0.0
        %3771 = vmatprep.subr.mxu0 0.0
        %3772 = vmatpush1.msra.mxu0 0.0
        %3773 = vmatprep.subr.mxu0 0.0
        %3774 = vmatpush1.msra.mxu0 0.0
        %3775 = vmatprep.subr.mxu0 0.0
        %3776 = vmatpush1.msra.mxu0 0.0
        %3777 = vmatprep.subr.mxu0 0.0
        %3778 = vmatpush1.msra.mxu0 0.0
        %3779 = vmatprep.subr.mxu0 0.0
        %3780 = vmatpush1.msra.mxu0 0.0
        %3781 = vmatprep.subr.mxu0 0.0
        %3782 = vmatpush1.msra.mxu0 0.0
        %3783 = vmatprep.subr.mxu0 0.0
        %3784 = vmatpush1.msra.mxu0 0.0
        %3785 = vmatprep.subr.mxu0 0.0
        %3786 = vmatpush1.msra.mxu0 0.0
        %3787 = vmatprep.subr.mxu0 0.0
        %3788 = vmatpush1.msra.mxu0 0.0
        %3789 = vmatprep.subr.mxu0 0.0
        %3790 = vmatpush1.msra.mxu0 0.0
        %3791 = vmatprep.subr.mxu0 0.0
        %3792 = vmatpush1.msra.mxu0 0.0
        %3793 = vmatprep.subr.mxu0 0.0
        %3794 = vmatpush1.msra.mxu0 0.0
        %3795 = vmatprep.subr.mxu0 0.0
        %3796 = vmatpush1.msra.mxu0 0.0
        %3797 = vmatprep.subr.mxu0 0.0
        %3798 = vmatpush1.msra.mxu0 0.0
        %3799 = vmatprep.subr.mxu0 0.0
        %3800 = vmatpush1.msra.mxu0 0.0
        %3801 = vmatprep.subr.mxu0 0.0
        %3802 = vmatpush1.msra.mxu0 0.0
        %3803 = vmatprep.subr.mxu0 0.0
        %3804 = vmatpush1.msra.mxu0 0.0
        %3805 = vmatprep.subr.mxu0 0.0
        %3806 = vmatpush1.msra.mxu0 0.0
        %3807 = vmatprep.subr.mxu0 0.0
        %3808 = vmatpush1.msra.mxu0 0.0
        %3809 = vmatprep.subr.mxu0 0.0
        %3810 = vmatpush1.msra.mxu0 0.0
        %3811 = vmatprep.mubr.f32.mxu0 0.0
        %v3812 = vand.u32 %v3317, 4294901760
        %3813 = vmatmul.mubr.f32.gmra.mrb[0].mxu0 %v3812
        %v3814 = vpop.f32.mrb[0].mxu0
        %v3815 = vadd.f32 %v3736, %v3814
        %v3816 = vpop.f32.mrb[0].mxu0
        %3817 = vmatprep.mubr.f32.mxu0 0.0
        %v3818 = vand.u32 %v3320, 4294901760
        %3819 = vmatmul.mubr.f32.gmra.mrb[0].mxu0 %v3818
        %v3820 = vpop.f32.mrb[0].mxu0
        %v3821 = vadd.f32 %v3742, %v3820
        %v3822 = vpop.f32.mrb[0].mxu0
        %3823 = vdwg.mxu0
        %3826 = vrot.lane.b32.xlu0 %v3815, 16
        %v3827 = vpop.permute.xlu0 %3826
        %3828 = vrot.lane.b32.xlu0 %v3821, 16
        %v3829 = vpop.permute.xlu0 %3828
        %v3832 = vsel %vm1663, %v2731, %v3827
        %v3833 = vsel %vm1663, %v2737, %v3829
        %v3834 = vld [vmem:[#allocation8] sm:$0xff]
        %v3835 = vld [vmem:[#allocation8 + $0x8] sm:$0xff]
        %v3836 = vld [vmem:[#allocation8 + $0x10] sm:$0xff]
        %v3837 = vld [vmem:[#allocation8 + $0x18] sm:$0xff]
        %v3838 = vld [vmem:[%s6] sm:$0x1]
        %v3840 = vlaneseq
        %v3841 = vshrl.u32 %v3840, 7
        %v3842 = vsub.s32 0, %v3841
        %v3843 = vrot.slane %v3838, %v3842
        %v3846 = vsel %vm410, %v3832, 0
        %v3849 = vsel %vm410, %v3833, 0
        %3851 = vmatprep.subr.mxu0 0.0
        %v3852 = vand.u32 %v3834, 4294901760
        %3853 = vmatpush1.msra.mxu0 %v3852
        %3854 = vmatprep.subr.mxu0 0.0
        %v3855 = vand.u32 %v3835, 4294901760
        %3856 = vmatpush1.msra.mxu0 %v3855
        %3857 = vmatprep.subr.mxu0 0.0
        %v3858 = vand.u32 %v3836, 4294901760
        %3859 = vmatpush1.msra.mxu0 %v3858
        %3860 = vmatprep.subr.mxu0 0.0
        %v3861 = vand.u32 %v3837, 4294901760
        %3862 = vmatpush1.msra.mxu0 %v3861
        %3863 = vmatprep.subr.mxu0 0.0
        %3864 = vmatpush1.msra.mxu0 0.0
        %3865 = vmatprep.subr.mxu0 0.0
        %3866 = vmatpush1.msra.mxu0 0.0
        %3867 = vmatprep.subr.mxu0 0.0
        %3868 = vmatpush1.msra.mxu0 0.0
        %3869 = vmatprep.subr.mxu0 0.0
        %3870 = vmatpush1.msra.mxu0 0.0
        %3871 = vmatprep.subr.mxu0 0.0
        %3872 = vmatpush1.msra.mxu0 0.0
        %3873 = vmatprep.subr.mxu0 0.0
        %3874 = vmatpush1.msra.mxu0 0.0
        %3875 = vmatprep.subr.mxu0 0.0
        %3876 = vmatpush1.msra.mxu0 0.0
        %3877 = vmatprep.subr.mxu0 0.0
        %3878 = vmatpush1.msra.mxu0 0.0
        %3879 = vmatprep.subr.mxu0 0.0
        %3880 = vmatpush1.msra.mxu0 0.0
        %3881 = vmatprep.subr.mxu0 0.0
        %3882 = vmatpush1.msra.mxu0 0.0
        %3883 = vmatprep.subr.mxu0 0.0
        %3884 = vmatpush1.msra.mxu0 0.0
        %3885 = vmatprep.subr.mxu0 0.0
        %3886 = vmatpush1.msra.mxu0 0.0
        %3887 = vmatprep.subr.mxu0 0.0
        %3888 = vmatpush1.msra.mxu0 0.0
        %3889 = vmatprep.subr.mxu0 0.0
        %3890 = vmatpush1.msra.mxu0 0.0
        %3891 = vmatprep.subr.mxu0 0.0
        %3892 = vmatpush1.msra.mxu0 0.0
        %3893 = vmatprep.subr.mxu0 0.0
        %3894 = vmatpush1.msra.mxu0 0.0
        %3895 = vmatprep.subr.mxu0 0.0
        %3896 = vmatpush1.msra.mxu0 0.0
        %3897 = vmatprep.subr.mxu0 0.0
        %3898 = vmatpush1.msra.mxu0 0.0
        %3899 = vmatprep.subr.mxu0 0.0
        %3900 = vmatpush1.msra.mxu0 0.0
        %3901 = vmatprep.subr.mxu0 0.0
        %3902 = vmatpush1.msra.mxu0 0.0
        %3903 = vmatprep.subr.mxu0 0.0
        %3904 = vmatpush1.msra.mxu0 0.0
        %3905 = vmatprep.subr.mxu0 0.0
        %3906 = vmatpush1.msra.mxu0 0.0
        %3907 = vmatprep.subr.mxu0 0.0
        %3908 = vmatpush1.msra.mxu0 0.0
        %3909 = vmatprep.subr.mxu0 0.0
        %3910 = vmatpush1.msra.mxu0 0.0
        %3911 = vmatprep.subr.mxu0 0.0
        %3912 = vmatpush1.msra.mxu0 0.0
        %3913 = vmatprep.subr.mxu0 0.0
        %3914 = vmatpush1.msra.mxu0 0.0
        %3915 = vmatprep.subr.mxu0 0.0
        %3916 = vmatpush1.msra.mxu0 0.0
        %3917 = vmatprep.subr.mxu0 0.0
        %3918 = vmatpush1.msra.mxu0 0.0
        %3919 = vmatprep.mubr.f32.mxu0 0.0
        %v3920 = vand.u32 %v3846, 4294901760
        %v3921 = vsub.f32 %v3846, %v3920
        %v3922 = vand.u32 %v3921, 4294901760
        %v3923 = vsub.f32 %v3921, %v3922
        %v3924 = vand.u32 %v3923, 4294901760
        %3925 = vmatmul.mubr.f32.gmra.mrb[0].mxu0 %v3924
        %v3926 = vpop.f32.mrb[0].mxu0
        %v3927 = vadd.f32 %v3843, %v3926
        %v3928 = vpop.f32.mrb[0].mxu0
        %3929 = vmatprep.mubr.f32.mxu0 0.0
        %v3930 = vand.u32 %v3849, 4294901760
        %v3931 = vsub.f32 %v3849, %v3930
        %v3932 = vand.u32 %v3931, 4294901760
        %v3933 = vsub.f32 %v3931, %v3932
        %v3934 = vand.u32 %v3933, 4294901760
        %3935 = vmatmul.mubr.f32.gmra.mrb[0].mxu0 %v3934
        %v3936 = vpop.f32.mrb[0].mxu0
        %v3937 = vadd.f32 %v3843, %v3936
        %v3938 = vpop.f32.mrb[0].mxu0
        %3939 = vdwg.mxu0
        %3940 = vmatprep.subr.mxu0 0.0
        %v3941 = vand.u32 %v3834, 4294901760
        %v3942 = vsub.f32 %v3834, %v3941
        %v3943 = vand.u32 %v3942, 4294901760
        %v3944 = vsub.f32 %v3942, %v3943
        %v3945 = vand.u32 %v3944, 4294901760
        %3946 = vmatpush1.msra.mxu0 %v3945
        %3947 = vmatprep.subr.mxu0 0.0
        %v3948 = vand.u32 %v3835, 4294901760
        %v3949 = vsub.f32 %v3835, %v3948
        %v3950 = vand.u32 %v3949, 4294901760
        %v3951 = vsub.f32 %v3949, %v3950
        %v3952 = vand.u32 %v3951, 4294901760
        %3953 = vmatpush1.msra.mxu0 %v3952
        %3954 = vmatprep.subr.mxu0 0.0
        %v3955 = vand.u32 %v3836, 4294901760
        %v3956 = vsub.f32 %v3836, %v3955
        %v3957 = vand.u32 %v3956, 4294901760
        %v3958 = vsub.f32 %v3956, %v3957
        %v3959 = vand.u32 %v3958, 4294901760
        %3960 = vmatpush1.msra.mxu0 %v3959
        %3961 = vmatprep.subr.mxu0 0.0
        %v3962 = vand.u32 %v3837, 4294901760
        %v3963 = vsub.f32 %v3837, %v3962
        %v3964 = vand.u32 %v3963, 4294901760
        %v3965 = vsub.f32 %v3963, %v3964
        %v3966 = vand.u32 %v3965, 4294901760
        %3967 = vmatpush1.msra.mxu0 %v3966
        %3968 = vmatprep.subr.mxu0 0.0
        %3969 = vmatpush1.msra.mxu0 0.0
        %3970 = vmatprep.subr.mxu0 0.0
        %3971 = vmatpush1.msra.mxu0 0.0
        %3972 = vmatprep.subr.mxu0 0.0
        %3973 = vmatpush1.msra.mxu0 0.0
        %3974 = vmatprep.subr.mxu0 0.0
        %3975 = vmatpush1.msra.mxu0 0.0
        %3976 = vmatprep.subr.mxu0 0.0
        %3977 = vmatpush1.msra.mxu0 0.0
        %3978 = vmatprep.subr.mxu0 0.0
        %3979 = vmatpush1.msra.mxu0 0.0
        %3980 = vmatprep.subr.mxu0 0.0
        %3981 = vmatpush1.msra.mxu0 0.0
        %3982 = vmatprep.subr.mxu0 0.0
        %3983 = vmatpush1.msra.mxu0 0.0
        %3984 = vmatprep.subr.mxu0 0.0
        %3985 = vmatpush1.msra.mxu0 0.0
        %3986 = vmatprep.subr.mxu0 0.0
        %3987 = vmatpush1.msra.mxu0 0.0
        %3988 = vmatprep.subr.mxu0 0.0
        %3989 = vmatpush1.msra.mxu0 0.0
        %3990 = vmatprep.subr.mxu0 0.0
        %3991 = vmatpush1.msra.mxu0 0.0
        %3992 = vmatprep.subr.mxu0 0.0
        %3993 = vmatpush1.msra.mxu0 0.0
        %3994 = vmatprep.subr.mxu0 0.0
        %3995 = vmatpush1.msra.mxu0 0.0
        %3996 = vmatprep.subr.mxu0 0.0
        %3997 = vmatpush1.msra.mxu0 0.0
        %3998 = vmatprep.subr.mxu0 0.0
        %3999 = vmatpush1.msra.mxu0 0.0
        %4000 = vmatprep.subr.mxu0 0.0
        %4001 = vmatpush1.msra.mxu0 0.0
        %4002 = vmatprep.subr.mxu0 0.0
        %4003 = vmatpush1.msra.mxu0 0.0
        %4004 = vmatprep.subr.mxu0 0.0
        %4005 = vmatpush1.msra.mxu0 0.0
        %4006 = vmatprep.subr.mxu0 0.0
        %4007 = vmatpush1.msra.mxu0 0.0
        %4008 = vmatprep.subr.mxu0 0.0
        %4009 = vmatpush1.msra.mxu0 0.0
        %4010 = vmatprep.subr.mxu0 0.0
        %4011 = vmatpush1.msra.mxu0 0.0
        %4012 = vmatprep.subr.mxu0 0.0
        %4013 = vmatpush1.msra.mxu0 0.0
        %4014 = vmatprep.subr.mxu0 0.0
        %4015 = vmatpush1.msra.mxu0 0.0
        %4016 = vmatprep.subr.mxu0 0.0
        %4017 = vmatpush1.msra.mxu0 0.0
        %4018 = vmatprep.subr.mxu0 0.0
        %4019 = vmatpush1.msra.mxu0 0.0
        %4020 = vmatprep.subr.mxu0 0.0
        %4021 = vmatpush1.msra.mxu0 0.0
        %4022 = vmatprep.subr.mxu0 0.0
        %4023 = vmatpush1.msra.mxu0 0.0
        %4024 = vmatprep.mubr.f32.mxu0 0.0
        %v4025 = vand.u32 %v3846, 4294901760
        %4026 = vmatmul.mubr.f32.gmra.mrb[0].mxu0 %v4025
        %v4027 = vpop.f32.mrb[0].mxu0
        %v4028 = vadd.f32 %v3927, %v4027
        %v4029 = vpop.f32.mrb[0].mxu0
        %4030 = vmatprep.mubr.f32.mxu0 0.0
        %v4031 = vand.u32 %v3849, 4294901760
        %4032 = vmatmul.mubr.f32.gmra.mrb[0].mxu0 %v4031
        %v4033 = vpop.f32.mrb[0].mxu0
        %v4034 = vadd.f32 %v3937, %v4033
        %v4035 = vpop.f32.mrb[0].mxu0
        %4036 = vdwg.mxu0
        %4037 = vmatprep.subr.mxu0 0.0
        %v4038 = vand.u32 %v3834, 4294901760
        %v4039 = vsub.f32 %v3834, %v4038
        %4040 = vmatpush1.msra.mxu0 %v4039
        %4041 = vmatprep.subr.mxu0 0.0
        %v4042 = vand.u32 %v3835, 4294901760
        %v4043 = vsub.f32 %v3835, %v4042
        %4044 = vmatpush1.msra.mxu0 %v4043
        %4045 = vmatprep.subr.mxu0 0.0
        %v4046 = vand.u32 %v3836, 4294901760
        %v4047 = vsub.f32 %v3836, %v4046
        %4048 = vmatpush1.msra.mxu0 %v4047
        %4049 = vmatprep.subr.mxu0 0.0
        %v4050 = vand.u32 %v3837, 4294901760
        %v4051 = vsub.f32 %v3837, %v4050
        %4052 = vmatpush1.msra.mxu0 %v4051
        %4053 = vmatprep.subr.mxu0 0.0
        %4054 = vmatpush1.msra.mxu0 0.0
        %4055 = vmatprep.subr.mxu0 0.0
        %4056 = vmatpush1.msra.mxu0 0.0
        %4057 = vmatprep.subr.mxu0 0.0
        %4058 = vmatpush1.msra.mxu0 0.0
        %4059 = vmatprep.subr.mxu0 0.0
        %4060 = vmatpush1.msra.mxu0 0.0
        %4061 = vmatprep.subr.mxu0 0.0
        %4062 = vmatpush1.msra.mxu0 0.0
        %4063 = vmatprep.subr.mxu0 0.0
        %4064 = vmatpush1.msra.mxu0 0.0
        %4065 = vmatprep.subr.mxu0 0.0
        %4066 = vmatpush1.msra.mxu0 0.0
        %4067 = vmatprep.subr.mxu0 0.0
        %4068 = vmatpush1.msra.mxu0 0.0
        %4069 = vmatprep.subr.mxu0 0.0
        %4070 = vmatpush1.msra.mxu0 0.0
        %4071 = vmatprep.subr.mxu0 0.0
        %4072 = vmatpush1.msra.mxu0 0.0
        %4073 = vmatprep.subr.mxu0 0.0
        %4074 = vmatpush1.msra.mxu0 0.0
        %4075 = vmatprep.subr.mxu0 0.0
        %4076 = vmatpush1.msra.mxu0 0.0
        %4077 = vmatprep.subr.mxu0 0.0
        %4078 = vmatpush1.msra.mxu0 0.0
        %4079 = vmatprep.subr.mxu0 0.0
        %4080 = vmatpush1.msra.mxu0 0.0
        %4081 = vmatprep.subr.mxu0 0.0
        %4082 = vmatpush1.msra.mxu0 0.0
        %4083 = vmatprep.subr.mxu0 0.0
        %4084 = vmatpush1.msra.mxu0 0.0
        %4085 = vmatprep.subr.mxu0 0.0
        %4086 = vmatpush1.msra.mxu0 0.0
        %4087 = vmatprep.subr.mxu0 0.0
        %4088 = vmatpush1.msra.mxu0 0.0
        %4089 = vmatprep.subr.mxu0 0.0
        %4090 = vmatpush1.msra.mxu0 0.0
        %4091 = vmatprep.subr.mxu0 0.0
        %4092 = vmatpush1.msra.mxu0 0.0
        %4093 = vmatprep.subr.mxu0 0.0
        %4094 = vmatpush1.msra.mxu0 0.0
        %4095 = vmatprep.subr.mxu0 0.0
        %4096 = vmatpush1.msra.mxu0 0.0
        %4097 = vmatprep.subr.mxu0 0.0
        %4098 = vmatpush1.msra.mxu0 0.0
        %4099 = vmatprep.subr.mxu0 0.0
        %4100 = vmatpush1.msra.mxu0 0.0
        %4101 = vmatprep.subr.mxu0 0.0
        %4102 = vmatpush1.msra.mxu0 0.0
        %4103 = vmatprep.subr.mxu0 0.0
        %4104 = vmatpush1.msra.mxu0 0.0
        %4105 = vmatprep.subr.mxu0 0.0
        %4106 = vmatpush1.msra.mxu0 0.0
        %4107 = vmatprep.subr.mxu0 0.0
        %4108 = vmatpush1.msra.mxu0 0.0
        %4109 = vmatprep.mubr.f32.mxu0 0.0
        %v4110 = vand.u32 %v3846, 4294901760
        %v4111 = vsub.f32 %v3846, %v4110
        %4112 = vmatmul.mubr.f32.gmra.mrb[0].mxu0 %v4111
        %v4113 = vpop.f32.mrb[0].mxu0
        %v4114 = vadd.f32 %v4028, %v4113
        %v4115 = vpop.f32.mrb[0].mxu0
        %4116 = vmatprep.mubr.f32.mxu0 0.0
        %v4117 = vand.u32 %v3849, 4294901760
        %v4118 = vsub.f32 %v3849, %v4117
        %4119 = vmatmul.mubr.f32.gmra.mrb[0].mxu0 %v4118
        %v4120 = vpop.f32.mrb[0].mxu0
        %v4121 = vadd.f32 %v4034, %v4120
        %v4122 = vpop.f32.mrb[0].mxu0
        %4123 = vdwg.mxu0
        %4124 = vmatprep.subr.mxu0 0.0
        %v4125 = vand.u32 %v3834, 4294901760
        %4126 = vmatpush1.msra.mxu0 %v4125
        %4127 = vmatprep.subr.mxu0 0.0
        %v4128 = vand.u32 %v3835, 4294901760
        %4129 = vmatpush1.msra.mxu0 %v4128
        %4130 = vmatprep.subr.mxu0 0.0
        %v4131 = vand.u32 %v3836, 4294901760
        %4132 = vmatpush1.msra.mxu0 %v4131
        %4133 = vmatprep.subr.mxu0 0.0
        %v4134 = vand.u32 %v3837, 4294901760
        %4135 = vmatpush1.msra.mxu0 %v4134
        %4136 = vmatprep.subr.mxu0 0.0
        %4137 = vmatpush1.msra.mxu0 0.0
        %4138 = vmatprep.subr.mxu0 0.0
        %4139 = vmatpush1.msra.mxu0 0.0
        %4140 = vmatprep.subr.mxu0 0.0
        %4141 = vmatpush1.msra.mxu0 0.0
        %4142 = vmatprep.subr.mxu0 0.0
        %4143 = vmatpush1.msra.mxu0 0.0
        %4144 = vmatprep.subr.mxu0 0.0
        %4145 = vmatpush1.msra.mxu0 0.0
        %4146 = vmatprep.subr.mxu0 0.0
        %4147 = vmatpush1.msra.mxu0 0.0
        %4148 = vmatprep.subr.mxu0 0.0
        %4149 = vmatpush1.msra.mxu0 0.0
        %4150 = vmatprep.subr.mxu0 0.0
        %4151 = vmatpush1.msra.mxu0 0.0
        %4152 = vmatprep.subr.mxu0 0.0
        %4153 = vmatpush1.msra.mxu0 0.0
        %4154 = vmatprep.subr.mxu0 0.0
        %4155 = vmatpush1.msra.mxu0 0.0
        %4156 = vmatprep.subr.mxu0 0.0
        %4157 = vmatpush1.msra.mxu0 0.0
        %4158 = vmatprep.subr.mxu0 0.0
        %4159 = vmatpush1.msra.mxu0 0.0
        %4160 = vmatprep.subr.mxu0 0.0
        %4161 = vmatpush1.msra.mxu0 0.0
        %4162 = vmatprep.subr.mxu0 0.0
        %4163 = vmatpush1.msra.mxu0 0.0
        %4164 = vmatprep.subr.mxu0 0.0
        %4165 = vmatpush1.msra.mxu0 0.0
        %4166 = vmatprep.subr.mxu0 0.0
        %4167 = vmatpush1.msra.mxu0 0.0
        %4168 = vmatprep.subr.mxu0 0.0
        %4169 = vmatpush1.msra.mxu0 0.0
        %4170 = vmatprep.subr.mxu0 0.0
        %4171 = vmatpush1.msra.mxu0 0.0
        %4172 = vmatprep.subr.mxu0 0.0
        %4173 = vmatpush1.msra.mxu0 0.0
        %4174 = vmatprep.subr.mxu0 0.0
        %4175 = vmatpush1.msra.mxu0 0.0
        %4176 = vmatprep.subr.mxu0 0.0
        %4177 = vmatpush1.msra.mxu0 0.0
        %4178 = vmatprep.subr.mxu0 0.0
        %4179 = vmatpush1.msra.mxu0 0.0
        %4180 = vmatprep.subr.mxu0 0.0
        %4181 = vmatpush1.msra.mxu0 0.0
        %4182 = vmatprep.subr.mxu0 0.0
        %4183 = vmatpush1.msra.mxu0 0.0
        %4184 = vmatprep.subr.mxu0 0.0
        %4185 = vmatpush1.msra.mxu0 0.0
        %4186 = vmatprep.subr.mxu0 0.0
        %4187 = vmatpush1.msra.mxu0 0.0
        %4188 = vmatprep.subr.mxu0 0.0
        %4189 = vmatpush1.msra.mxu0 0.0
        %4190 = vmatprep.subr.mxu0 0.0
        %4191 = vmatpush1.msra.mxu0 0.0
        %4192 = vmatprep.mubr.f32.mxu0 0.0
        %v4193 = vand.u32 %v3846, 4294901760
        %v4194 = vsub.f32 %v3846, %v4193
        %v4195 = vand.u32 %v4194, 4294901760
        %4196 = vmatmul.mubr.f32.gmra.mrb[0].mxu0 %v4195
        %v4197 = vpop.f32.mrb[0].mxu0
        %v4198 = vadd.f32 %v4114, %v4197
        %v4199 = vpop.f32.mrb[0].mxu0
        %4200 = vmatprep.mubr.f32.mxu0 0.0
        %v4201 = vand.u32 %v3849, 4294901760
        %v4202 = vsub.f32 %v3849, %v4201
        %v4203 = vand.u32 %v4202, 4294901760
        %4204 = vmatmul.mubr.f32.gmra.mrb[0].mxu0 %v4203
        %v4205 = vpop.f32.mrb[0].mxu0
        %v4206 = vadd.f32 %v4121, %v4205
        %v4207 = vpop.f32.mrb[0].mxu0
        %4208 = vdwg.mxu0
        %4209 = vmatprep.subr.mxu0 0.0
        %v4210 = vand.u32 %v3834, 4294901760
        %v4211 = vsub.f32 %v3834, %v4210
        %v4212 = vand.u32 %v4211, 4294901760
        %4213 = vmatpush1.msra.mxu0 %v4212
        %4214 = vmatprep.subr.mxu0 0.0
        %v4215 = vand.u32 %v3835, 4294901760
        %v4216 = vsub.f32 %v3835, %v4215
        %v4217 = vand.u32 %v4216, 4294901760
        %4218 = vmatpush1.msra.mxu0 %v4217
        %4219 = vmatprep.subr.mxu0 0.0
        %v4220 = vand.u32 %v3836, 4294901760
        %v4221 = vsub.f32 %v3836, %v4220
        %v4222 = vand.u32 %v4221, 4294901760
        %4223 = vmatpush1.msra.mxu0 %v4222
        %4224 = vmatprep.subr.mxu0 0.0
        %v4225 = vand.u32 %v3837, 4294901760
        %v4226 = vsub.f32 %v3837, %v4225
        %v4227 = vand.u32 %v4226, 4294901760
        %4228 = vmatpush1.msra.mxu0 %v4227
        %4229 = vmatprep.subr.mxu0 0.0
        %4230 = vmatpush1.msra.mxu0 0.0
        %4231 = vmatprep.subr.mxu0 0.0
        %4232 = vmatpush1.msra.mxu0 0.0
        %4233 = vmatprep.subr.mxu0 0.0
        %4234 = vmatpush1.msra.mxu0 0.0
        %4235 = vmatprep.subr.mxu0 0.0
        %4236 = vmatpush1.msra.mxu0 0.0
        %4237 = vmatprep.subr.mxu0 0.0
        %4238 = vmatpush1.msra.mxu0 0.0
        %4239 = vmatprep.subr.mxu0 0.0
        %4240 = vmatpush1.msra.mxu0 0.0
        %4241 = vmatprep.subr.mxu0 0.0
        %4242 = vmatpush1.msra.mxu0 0.0
        %4243 = vmatprep.subr.mxu0 0.0
        %4244 = vmatpush1.msra.mxu0 0.0
        %4245 = vmatprep.subr.mxu0 0.0
        %4246 = vmatpush1.msra.mxu0 0.0
        %4247 = vmatprep.subr.mxu0 0.0
        %4248 = vmatpush1.msra.mxu0 0.0
        %4249 = vmatprep.subr.mxu0 0.0
        %4250 = vmatpush1.msra.mxu0 0.0
        %4251 = vmatprep.subr.mxu0 0.0
        %4252 = vmatpush1.msra.mxu0 0.0
        %4253 = vmatprep.subr.mxu0 0.0
        %4254 = vmatpush1.msra.mxu0 0.0
        %4255 = vmatprep.subr.mxu0 0.0
        %4256 = vmatpush1.msra.mxu0 0.0
        %4257 = vmatprep.subr.mxu0 0.0
        %4258 = vmatpush1.msra.mxu0 0.0
        %4259 = vmatprep.subr.mxu0 0.0
        %4260 = vmatpush1.msra.mxu0 0.0
        %4261 = vmatprep.subr.mxu0 0.0
        %4262 = vmatpush1.msra.mxu0 0.0
        %4263 = vmatprep.subr.mxu0 0.0
        %4264 = vmatpush1.msra.mxu0 0.0
        %4265 = vmatprep.subr.mxu0 0.0
        %4266 = vmatpush1.msra.mxu0 0.0
        %4267 = vmatprep.subr.mxu0 0.0
        %4268 = vmatpush1.msra.mxu0 0.0
        %4269 = vmatprep.subr.mxu0 0.0
        %4270 = vmatpush1.msra.mxu0 0.0
        %4271 = vmatprep.subr.mxu0 0.0
        %4272 = vmatpush1.msra.mxu0 0.0
        %4273 = vmatprep.subr.mxu0 0.0
        %4274 = vmatpush1.msra.mxu0 0.0
        %4275 = vmatprep.subr.mxu0 0.0
        %4276 = vmatpush1.msra.mxu0 0.0
        %4277 = vmatprep.subr.mxu0 0.0
        %4278 = vmatpush1.msra.mxu0 0.0
        %4279 = vmatprep.subr.mxu0 0.0
        %4280 = vmatpush1.msra.mxu0 0.0
        %4281 = vmatprep.subr.mxu0 0.0
        %4282 = vmatpush1.msra.mxu0 0.0
        %4283 = vmatprep.subr.mxu0 0.0
        %4284 = vmatpush1.msra.mxu0 0.0
        %4285 = vmatprep.mubr.f32.mxu0 0.0
        %v4286 = vand.u32 %v3846, 4294901760
        %4287 = vmatmul.mubr.f32.gmra.mrb[0].mxu0 %v4286
        %v4288 = vpop.f32.mrb[0].mxu0
        %v4289 = vadd.f32 %v4198, %v4288
        %v4290 = vpop.f32.mrb[0].mxu0
        %4291 = vmatprep.mubr.f32.mxu0 0.0
        %v4292 = vand.u32 %v3849, 4294901760
        %4293 = vmatmul.mubr.f32.gmra.mrb[0].mxu0 %v4292
        %v4294 = vpop.f32.mrb[0].mxu0
        %v4295 = vadd.f32 %v4206, %v4294
        %v4296 = vpop.f32.mrb[0].mxu0
        %4297 = vdwg.mxu0
        %4298 = vmatprep.subr.mxu0 0.0
        %v4299 = vand.u32 %v3834, 4294901760
        %4300 = vmatpush1.msra.mxu0 %v4299
        %4301 = vmatprep.subr.mxu0 0.0
        %v4302 = vand.u32 %v3835, 4294901760
        %4303 = vmatpush1.msra.mxu0 %v4302
        %4304 = vmatprep.subr.mxu0 0.0
        %v4305 = vand.u32 %v3836, 4294901760
        %4306 = vmatpush1.msra.mxu0 %v4305
        %4307 = vmatprep.subr.mxu0 0.0
        %v4308 = vand.u32 %v3837, 4294901760
        %4309 = vmatpush1.msra.mxu0 %v4308
        %4310 = vmatprep.subr.mxu0 0.0
        %4311 = vmatpush1.msra.mxu0 0.0
        %4312 = vmatprep.subr.mxu0 0.0
        %4313 = vmatpush1.msra.mxu0 0.0
        %4314 = vmatprep.subr.mxu0 0.0
        %4315 = vmatpush1.msra.mxu0 0.0
        %4316 = vmatprep.subr.mxu0 0.0
        %4317 = vmatpush1.msra.mxu0 0.0
        %4318 = vmatprep.subr.mxu0 0.0
        %4319 = vmatpush1.msra.mxu0 0.0
        %4320 = vmatprep.subr.mxu0 0.0
        %4321 = vmatpush1.msra.mxu0 0.0
        %4322 = vmatprep.subr.mxu0 0.0
        %4323 = vmatpush1.msra.mxu0 0.0
        %4324 = vmatprep.subr.mxu0 0.0
        %4325 = vmatpush1.msra.mxu0 0.0
        %4326 = vmatprep.subr.mxu0 0.0
        %4327 = vmatpush1.msra.mxu0 0.0
        %4328 = vmatprep.subr.mxu0 0.0
        %4329 = vmatpush1.msra.mxu0 0.0
        %4330 = vmatprep.subr.mxu0 0.0
        %4331 = vmatpush1.msra.mxu0 0.0
        %4332 = vmatprep.subr.mxu0 0.0
        %4333 = vmatpush1.msra.mxu0 0.0
        %4334 = vmatprep.subr.mxu0 0.0
        %4335 = vmatpush1.msra.mxu0 0.0
        %4336 = vmatprep.subr.mxu0 0.0
        %4337 = vmatpush1.msra.mxu0 0.0
        %4338 = vmatprep.subr.mxu0 0.0
        %4339 = vmatpush1.msra.mxu0 0.0
        %4340 = vmatprep.subr.mxu0 0.0
        %4341 = vmatpush1.msra.mxu0 0.0
        %4342 = vmatprep.subr.mxu0 0.0
        %4343 = vmatpush1.msra.mxu0 0.0
        %4344 = vmatprep.subr.mxu0 0.0
        %4345 = vmatpush1.msra.mxu0 0.0
        %4346 = vmatprep.subr.mxu0 0.0
        %4347 = vmatpush1.msra.mxu0 0.0
        %4348 = vmatprep.subr.mxu0 0.0
        %4349 = vmatpush1.msra.mxu0 0.0
        %4350 = vmatprep.subr.mxu0 0.0
        %4351 = vmatpush1.msra.mxu0 0.0
        %4352 = vmatprep.subr.mxu0 0.0
        %4353 = vmatpush1.msra.mxu0 0.0
        %4354 = vmatprep.subr.mxu0 0.0
        %4355 = vmatpush1.msra.mxu0 0.0
        %4356 = vmatprep.subr.mxu0 0.0
        %4357 = vmatpush1.msra.mxu0 0.0
        %4358 = vmatprep.subr.mxu0 0.0
        %4359 = vmatpush1.msra.mxu0 0.0
        %4360 = vmatprep.subr.mxu0 0.0
        %4361 = vmatpush1.msra.mxu0 0.0
        %4362 = vmatprep.subr.mxu0 0.0
        %4363 = vmatpush1.msra.mxu0 0.0
        %4364 = vmatprep.subr.mxu0 0.0
        %4365 = vmatpush1.msra.mxu0 0.0
        %4366 = vmatprep.mubr.f32.mxu0 0.0
        %v4367 = vand.u32 %v3846, 4294901760
        %4368 = vmatmul.mubr.f32.gmra.mrb[0].mxu0 %v4367
        %v4369 = vpop.f32.mrb[0].mxu0
        %v4370 = vadd.f32 %v4289, %v4369
        %v4371 = vpop.f32.mrb[0].mxu0
        %4372 = vmatprep.mubr.f32.mxu0 0.0
        %v4373 = vand.u32 %v3849, 4294901760
        %4374 = vmatmul.mubr.f32.gmra.mrb[0].mxu0 %v4373
        %v4375 = vpop.f32.mrb[0].mxu0
        %v4376 = vadd.f32 %v4295, %v4375
        %v4377 = vpop.f32.mrb[0].mxu0
        %4378 = vdwg.mxu0
        %v4379 = vsel %vm410, %v4370, 0.0
        %4380 = vadd.xlane.f32.xlu0 %v4379
        %v4381 = vpop.xlane.xlu0 %4380
        %v4382 = vsel %vm410, %v4376, 0.0
        %4383 = vadd.xlane.f32.xlu0 %v4382
        %v4384 = vpop.xlane.xlu0 %4383
        %v4385 = vrcp.pop 32.0
        %v4386 = vmul.f32 %v4381, %v4385
        %v4387 = vmul.f32 %v4384, %v4385
        %v4388 = vsub.f32 %v4370, %v4386
        %v4389 = vsub.f32 %v4376, %v4387
        %v4390 = vmul.f32 %v4388, %v4388
        %v4391 = vmul.f32 %v4389, %v4389
        %v4392 = vsel %vm410, %v4390, 0.0
        %4393 = vadd.xlane.f32.xlu0 %v4392
        %v4394 = vpop.xlane.xlu0 %4393
        %v4395 = vsel %vm410, %v4391, 0.0
        %4396 = vadd.xlane.f32.xlu0 %v4395
        %v4397 = vpop.xlane.xlu0 %4396
        %v4398 = vmul.f32 %v4394, %v4385
        %v4399 = vmul.f32 %v4397, %v4385
        %v4400 = vadd.f32 %v4398, 1e-05
        %v4401 = vadd.f32 %v4399, 1e-05
        %v4402 = vrsqrt.pop %v4400
        %v4403 = vmul.f32 %v4400, %v4402
        %vm4404 = vcmp.eq.f32.partialorder %v4400, inf
        %v4405 = vsel %vm4404, %v4400, %v4403
        %vm4406 = vcmp.eq.f32.partialorder %v4400, 0.0
        %v4407 = vand.u32 %v4400, 2147483648
        %v4408 = vsel %vm4406, %v4407, %v4405
        %v4409 = vrsqrt.pop %v4401
        %v4410 = vmul.f32 %v4401, %v4409
        %vm4411 = vcmp.eq.f32.partialorder %v4401, inf
        %v4412 = vsel %vm4411, %v4401, %v4410
        %vm4413 = vcmp.eq.f32.partialorder %v4401, 0.0
        %v4414 = vand.u32 %v4401, 2147483648
        %v4415 = vsel %vm4413, %v4414, %v4412
        %v4416 = vrcp.pop %v4408
        %v4417 = vmul.f32 %v4388, %v4416
        %v4418 = vrcp.pop %v4415
        %v4419 = vmul.f32 %v4389, %v4418
        %v4420 = vld [vmem:[%s7] sm:$0x1]
        %v4422 = vlaneseq
        %v4423 = vshrl.u32 %v4422, 7
        %v4424 = vsub.s32 0, %v4423
        %v4425 = vrot.slane %v4420, %v4424
        %v4427 = vmul.f32 %v4417, %v4425
        %v4428 = vmul.f32 %v4419, %v4425
        %v4429 = vld [vmem:[%s8] sm:$0x1]
        %v4431 = vlaneseq
        %v4432 = vshrl.u32 %v4431, 7
        %v4433 = vsub.s32 0, %v4432
        %v4434 = vrot.slane %v4429, %v4433
        %v4436 = vadd.f32 %v4427, %v4434
        %v4437 = vadd.f32 %v4428, %v4434
        %vm4438 = vcmp.gt.f32.partialorder %v4436, 0.0
        %vm4439 = vcmp.gt.f32.partialorder %v4437, 0.0
        %v4440 = vmin.f32 %v4436, 0.0
        %v4441 = vmin.f32 %v4437, 0.0
        %v4442 = vmul.f32 %v4440, 1.442695
        %v4443 = vpow.pop %v4442
        %v4444 = vmul.f32 %v4441, 1.442695
        %v4445 = vpow.pop %v4444
        %v4446 = vsub.f32 %v4443, 1.0
        %v4447 = vsub.f32 %v4445, 1.0
        %v4448 = vsel %vm4438, %v4436, %v4446
        %v4449 = vsel %vm4439, %v4437, %v4447
        %v4450 = vadd.f32 %v4448, %v397
        %v4451 = vadd.f32 %v4449, %v398
        %4452 = vst.msk [vmem:[%s394] sm:$0xff] %vm410, %v4450
        %4453 = vst.msk [vmem:[%s394 + $0x8] sm:$0xff] %vm410, %v4451
        %s4454 = sand.u32 %s230, 1
        %s4455 = scalar_lea.sflag [#allocation4], %s4454
        %s4456 = sand.u32 %s230, 1
        %s4457 = smul.addr %s4456, 16
        %s4458 = scalar_lea.vmem [#allocation10], %s4457
        // Predicated region
        $region73: #{tpu_custom_call.1} parent=55 // pred_check
          %p4459 = pneg %p240
        $region74: #{tpu_custom_call.1} parent=55 // pred_check_branch
          %4461 = sbr.rel (%p4459) target = $region76
        $region75: #{tpu_custom_call.1} parent=55 // pred_region
          %s4462 = smul.u32 2, %s28
          %s4464 = ssub.s32 256, 256
          %4465 = vsyncadd %s4455, %s4464
          %s4466 = smul.addr %s4462, 128
          %s4467 = scalar_lea.hbm %s9, %s4466
          %s4468 = sshll.u32 %s4458, 4
          %s4469 = int_to_ptr.vmem [resolvable:$true] %s4468
          %4474 = dma.vmem_to_hbm [thread:$0]  %s4469, 256, %s4467, %s4455, 128, 128, 8
        $region76: #{tpu_custom_call.1} parent=55 // pred_fallthru
          _
      $region56: #{tpu_custom_call.1} parent=5 // pred_fallthru
        _
      %p4475 = scmp.le.s32.totalorder 2, %s23
      // Predicated region
      $region77: #{tpu_custom_call.1} parent=5 // pred_check
        %p4476 = pneg %p4475
      $region78: #{tpu_custom_call.1} parent=5 // pred_check_branch
        %4478 = sbr.rel (%p4476) target = $region80
      $region79: #{tpu_custom_call.1} parent=5 // pred_region
        %s4479 = ssub.s32 %s23, 2
        // Predicated region
        $region81: #{tpu_custom_call.1} parent=79 // pred_check
          %p4480 = pneg %p246
        $region82: #{tpu_custom_call.1} parent=79 // pred_check_branch
          %4482 = sbr.rel (%p4480) target = $region84
        $region83: #{tpu_custom_call.1} parent=79 // pred_region
          %s4483 = sand.u32 %s231, 1
          %s4484 = scalar_lea.sflag [#allocation4], %s4483
          %s4485 = sand.u32 %s231, 1
          %s4486 = smul.addr %s4485, 16
          %s4487 = scalar_lea.vmem [#allocation10], %s4486
          %4488 = dma.done %s4484, 256
        $region84: #{tpu_custom_call.1} parent=79 // pred_fallthru
          _
      $region80: #{tpu_custom_call.1} parent=5 // pred_fallthru
        _
    $region6: #{tpu_custom_call.1} parent=1 // loop_footer
      %s27 = sadd.s32 1, %s23
    $region7: #{tpu_custom_call.1} parent=1 // loop_footer_branch
      %22 = sbr.rel target = $region3
    $region8: #{tpu_custom_call.1} parent=1 // loop_exit
      _
    %4489 = vsyncpa [#allocation3], 1
    %s4490 = scalar_lea.sflag [#allocation3], 1
    %4491 = vsyncpa %s4490, 1
    %4492 = vsyncpa [#allocation6], 1
    %4493 = vsyncpa [#allocation9], 1
    %4494 = vsyncpa [#allocation4], 1
    %s4495 = scalar_lea.sflag [#allocation4], 1
    %4496 = vsyncpa %s4495, 1

</llo_original>
